<compile_context>
chip_gen: v7x
topology: tpu7x:2x2x1
jax: 0.10.0
libtpu: 0.0.40
codegen_flags: <defaults>
</compile_context>

<pallas_src>
import jax
import jax.numpy as jnp
from jax import lax
from jax.experimental import pallas as pl
from jax.experimental.pallas import tpu as pltpu


# --------------------------------------------------------------------------
# Fused kernel: emb-sum prologue + fc1 tile body + optional softmax epilogue
# --------------------------------------------------------------------------
def _make_cbow_kernel(B, S, tile_v, apply_activator):
    def kernel(ids_ref, emb_ref, w_ref, b_ref, out_ref, emb_sum_ref):
        # ids_ref:     (S*B, 1) int32, s-major flat token ids, VMEM (full)
        # emb_ref:     (V, E)   bf16 embedding table, VMEM (full, resident)
        # w_ref:       (E, tile_v) bf16 fc1 weight tile (pipelined per step)
        # b_ref:       (1, tile_v) f32  fc1 bias tile
        # out_ref:     (B, tile_v) f32  [no softmax]  or  (B, V) f32 resident
        # emb_sum_ref: (B, E) bf16 scratch (persists across grid steps)
        j = pl.program_id(0)
        V = emb_ref.shape[0]

        # ---- step-0 prologue: emb_sum = Embedding(x).sum(dim=1) ------------
        @pl.when(j == 0)
        def _prologue():
            # counts[b, v] = #{s : x[b, s] == v}; all-VPU compares in f32
            # (v5e-safe), then a single counts @ table MXU matmul.
            v_iota = lax.broadcasted_iota(jnp.int32, (B, V), 1)

            def body(s, counts):
                start = pl.multiple_of(s * B, B)
                ids_col = ids_ref[pl.ds(start, B)]            # (B, 1) int32
                return counts + (ids_col == v_iota).astype(jnp.float32)

            counts = lax.fori_loop(0, S, body,
                                   jnp.zeros((B, V), jnp.float32),
                                   unroll=True)
            emb_sum = jnp.dot(counts.astype(jnp.bfloat16), emb_ref[...],
                              preferred_element_type=jnp.float32)  # (B, E) f32
            emb_sum_ref[...] = emb_sum.astype(jnp.bfloat16)

        # ---- per-step body: one fc1 vocab tile (bf16 MXU, f32 accum) -------
        tile = jnp.dot(emb_sum_ref[...], w_ref[...],
                       preferred_element_type=jnp.float32) + b_ref[...]

        if apply_activator:
            # Output block is the full (B, V) row, resident in VMEM across the
            # grid; write this tile's columns, softmax once at the last step.
            start = pl.multiple_of(j * tile_v, tile_v)
            out_ref[:, pl.ds(start, tile_v)] = tile

            @pl.when(j == pl.num_programs(0) - 1)
            def _epilogue():
                x = out_ref[...]
                m = jnp.max(x, axis=-1, keepdims=True)
                e = jnp.exp(x - m)
                denom = jnp.sum(e, axis=-1, keepdims=True)
                out_ref[...] = e * pl.reciprocal(denom, approx=True)
        else:
            out_ref[...] = tile            # lane-dense (B, tile_v) store

    return kernel


# --------------------------------------------------------------------------
# One-time model setup (hoisted out of the forward pass per review)
# --------------------------------------------------------------------------
def prepare_params(emb_table_f32, fc1_weight_f32, fc1_bias_f32):
    emb_bf16 = emb_table_f32.astype(jnp.bfloat16)              # (V, E)
    w_t_bf16 = fc1_weight_f32.T.astype(jnp.bfloat16)           # (E, V)
    bias2d = fc1_bias_f32.reshape(1, -1).astype(jnp.float32)   # (1, V)
    return emb_bf16, w_t_bf16, bias2d


# --------------------------------------------------------------------------
# Forward wrapper
# --------------------------------------------------------------------------
def cbow_forward(x_in, emb_bf16, w_t_bf16, bias2d, *, apply_activator=False,
                 tile_v=256):
    B, S = x_in.shape
    V, E = emb_bf16.shape
    assert w_t_bf16.shape == (E, V) and bias2d.shape == (1, V)
    assert V % tile_v == 0 and tile_v % 128 == 0
    assert B % 8 == 0 and E % 128 == 0
    n_tiles = V // tile_v

    # s-major flat ids: row s*B + b == x_in[b, s]  ->  (B, 1) column slices in
    # the kernel without any in-kernel transpose.
    ids_smaj = x_in.T.reshape(S * B, 1).astype(jnp.int32)

    if apply_activator:
        # Full row stays resident in VMEM so the softmax epilogue sees all tiles.
        out_spec = pl.BlockSpec((B, V), lambda j: (0, 0))
    else:
        out_spec = pl.BlockSpec((B, tile_v), lambda j: (0, j))

    kernel = _make_cbow_kernel(B, S, tile_v, apply_activator)

    # TODO(synk): for realistic vocab sizes keep the table/weights HBM-resident (memory_space=pl.ANY) and DMA-gather/stream them instead of holding (V,E) in VMEM.
    return pl.pallas_call(
        kernel,
        out_shape=jax.ShapeDtypeStruct((B, V), jnp.float32),
        grid_spec=pltpu.PrefetchScalarGridSpec(
            num_scalar_prefetch=0,
            grid=(n_tiles,),
            in_specs=[
                pl.BlockSpec((S * B, 1), lambda j: (0, 0)),    # token ids
                pl.BlockSpec((V, E), lambda j: (0, 0)),        # emb table (bf16)
                pl.BlockSpec((E, tile_v), lambda j: (0, j)),   # fc1 weight tile
                pl.BlockSpec((1, tile_v), lambda j: (0, j)),   # fc1 bias tile
            ],
            out_specs=out_spec,
            scratch_shapes=[pltpu.VMEM((B, E), jnp.bfloat16)], # emb_sum
        ),
        # The V axis must be "arbitrary": the step-0 prologue writes the
        # emb_sum scratch that every later step reads (and with softmax the
        # output block is resident across steps).
        # TODO(synk): for v7x megacore, hoist emb-sum into its own tiny parallel-grid kernel so the fc1 axis can be marked "parallel".
        compiler_params=pltpu.CompilerParams(
            dimension_semantics=("arbitrary",),
        ),
    )(ids_smaj, emb_bf16, w_t_bf16, bias2d)


# --------------------------------------------------------------------------
# Pure-JAX references
# --------------------------------------------------------------------------
def _reference(x_in, emb_table, fc1_w, fc1_b, apply_activator=False,
               match_kernel_precision=True):
    if match_kernel_precision:
        # Same bf16 table / bf16 MXU operands / f32 accumulation as the kernel.
        table = emb_table.astype(jnp.bfloat16).astype(jnp.float32)
        emb_sum = jnp.take(table, x_in, axis=0).sum(axis=1)
        y = jnp.dot(emb_sum.astype(jnp.bfloat16),
                    fc1_w.T.astype(jnp.bfloat16),
                    preferred_element_type=jnp.float32) + fc1_b[None, :]
    else:
        emb_sum = jnp.take(emb_table, x_in, axis=0).sum(axis=1)
        y = emb_sum @ fc1_w.T + fc1_b[None, :]
    if apply_activator:
        y = jax.nn.softmax(y, axis=1)
    return y


if __name__ == "__main__":
    VOCAB = 1024         # vocabulary_size
    EMB = 128            # embedding_size
    PADDING_IDX = 0
    B, S = 32, 16        # batch (multiple of 8), context window length
    TILE_V = 256         # 4-step grid -> weight-tile DMA pipeline has overlap

    key = jax.random.PRNGKey(0)
    k_emb, k_w, k_b, k_x = jax.random.split(key, 4)

    # Embedding: N(0,1) like torch.nn.Embedding, padding row zeroed.
    emb_table = jax.random.normal(k_emb, (VOCAB, EMB), dtype=jnp.float32)
    emb_table = emb_table.at[PADDING_IDX].set(0.0)

    # Linear(EMB -> VOCAB): torch default uniform(-1/sqrt(in), 1/sqrt(in)).
    bound = 1.0 / (EMB ** 0.5)
    fc1_w = jax.random.uniform(k_w, (VOCAB, EMB), jnp.float32, -bound, bound)
    fc1_b = jax.random.uniform(k_b, (VOCAB,), jnp.float32, -bound, bound)

    # Token ids (includes some padding_idx entries).
    x_in = jax.random.randint(k_x, (B, S), 0, VOCAB, dtype=jnp.int32)

    # One-time parameter prep (bf16 casts / transpose hoisted out of forward).
    emb_bf16, w_t_bf16, bias2d = prepare_params(emb_table, fc1_w, fc1_b)

    out_logits = jax.block_until_ready(
        cbow_forward(x_in, emb_bf16, w_t_bf16, bias2d,
                     apply_activator=False, tile_v=TILE_V))
    out_probs = jax.block_until_ready(
        cbow_forward(x_in, emb_bf16, w_t_bf16, bias2d,
                     apply_activator=True, tile_v=TILE_V))

    # Tight check vs a reference at the kernel's (bf16-operand) precision.
    ref_logits_m = _reference(x_in, emb_table, fc1_w, fc1_b, False, True)
    ref_probs_m = _reference(x_in, emb_table, fc1_w, fc1_b, True, True)
    assert jnp.allclose(out_logits, ref_logits_m, atol=1e-2, rtol=1e-2)
    assert jnp.allclose(out_probs, ref_probs_m, atol=1e-2, rtol=1e-2)

    # Loose sanity check vs the full-f32 reference (documents the intentional
    # bf16 table / MXU-operand precision tradeoff).
    ref_logits_f32 = _reference(x_in, emb_table, fc1_w, fc1_b, False, False)
    assert jnp.allclose(out_logits, ref_logits_f32, atol=5e-2, rtol=5e-2)

    print("KERNEL_OK")
</pallas_src>

<mosaic_0001>
module attributes {stable_mosaic.version = 11 : i64} {
  func.func @kernel(%arg0: i32, %arg1: memref<512x1xi32, #tpu.memory_space<vmem>>, %arg2: memref<1024x128xbf16, #tpu.memory_space<vmem>>, %arg3: memref<128x256xbf16, #tpu.memory_space<vmem>>, %arg4: memref<1x256xf32, #tpu.memory_space<vmem>>, %arg5: memref<32x256xf32, #tpu.memory_space<vmem>>, %arg6: memref<32x128xbf16, #tpu.memory_space<vmem>>) attributes {dimension_semantics = [#tpu.dimension_semantics<arbitrary>], iteration_bounds = array<i64: 4>, scalar_prefetch = 0 : i64, scratch_operands = 1 : i64, tpu.core_type = #tpu.core_type<tc>, window_params = [{pipeline_mode = #tpu.pipeline_mode<synchronous>, transform_indices = @transform_0, window_bounds = array<i64: 512, 1>}, {pipeline_mode = #tpu.pipeline_mode<synchronous>, transform_indices = @transform_1, window_bounds = array<i64: 1024, 128>}, {transform_indices = @transform_2, window_bounds = array<i64: 128, 256>}, {transform_indices = @transform_3, window_bounds = array<i64: 1, 256>}, {transform_indices = @transform_4, window_bounds = array<i64: 32, 256>}]} {
    %c0_i32 = arith.constant 0 : i32
    %0 = arith.cmpi eq, %arg0, %c0_i32 : i32
    %1 = arith.extui %0 : i1 to i32
    %c0_i32_0 = arith.constant 0 : i32
    %2 = arith.cmpi ne, %1, %c0_i32_0 : i32
    scf.if %2 {
      %10 = tpu.iota {dimensions = array<i32: 1>} : vector<32x1024xi32>
      %cst_8 = arith.constant 0.000000e+00 : f32
      %11 = vector.broadcast %cst_8 : f32 to vector<32x1024xf32>
      %c0_i32_9 = arith.constant 0 : i32
      %c32_i32 = arith.constant 32 : i32
      %12 = arith.muli %c0_i32_9, %c32_i32 : i32
      %13 = tpu.assume_multiple %12, 32 : i32
      %14 = arith.index_cast %13 : i32 to index
      %c0_10 = arith.constant 0 : index
      %15 = vector.load %arg1[%14, %c0_10] : memref<512x1xi32, #tpu.memory_space<vmem>>, vector<32x1xi32>
      %16 = vector.broadcast %15 : vector<32x1xi32> to vector<32x1024xi32>
      %17 = arith.cmpi eq, %16, %10 : vector<32x1024xi32>
      %18 = arith.extui %17 : vector<32x1024xi1> to vector<32x1024xi32>
      %19 = arith.sitofp %18 : vector<32x1024xi32> to vector<32x1024xf32>
      %20 = arith.addf %11, %19 : vector<32x1024xf32>
      %c1_i32 = arith.constant 1 : i32
      %c32_i32_11 = arith.constant 32 : i32
      %21 = arith.muli %c1_i32, %c32_i32_11 : i32
      %22 = tpu.assume_multiple %21, 32 : i32
      %23 = arith.index_cast %22 : i32 to index
      %c0_12 = arith.constant 0 : index
      %24 = vector.load %arg1[%23, %c0_12] : memref<512x1xi32, #tpu.memory_space<vmem>>, vector<32x1xi32>
      %25 = vector.broadcast %24 : vector<32x1xi32> to vector<32x1024xi32>
      %26 = arith.cmpi eq, %25, %10 : vector<32x1024xi32>
      %27 = arith.extui %26 : vector<32x1024xi1> to vector<32x1024xi32>
      %28 = arith.sitofp %27 : vector<32x1024xi32> to vector<32x1024xf32>
      %29 = arith.addf %20, %28 : vector<32x1024xf32>
      %c2_i32 = arith.constant 2 : i32
      %c32_i32_13 = arith.constant 32 : i32
      %30 = arith.muli %c2_i32, %c32_i32_13 : i32
      %31 = tpu.assume_multiple %30, 32 : i32
      %32 = arith.index_cast %31 : i32 to index
      %c0_14 = arith.constant 0 : index
      %33 = vector.load %arg1[%32, %c0_14] : memref<512x1xi32, #tpu.memory_space<vmem>>, vector<32x1xi32>
      %34 = vector.broadcast %33 : vector<32x1xi32> to vector<32x1024xi32>
      %35 = arith.cmpi eq, %34, %10 : vector<32x1024xi32>
      %36 = arith.extui %35 : vector<32x1024xi1> to vector<32x1024xi32>
      %37 = arith.sitofp %36 : vector<32x1024xi32> to vector<32x1024xf32>
      %38 = arith.addf %29, %37 : vector<32x1024xf32>
      %c3_i32 = arith.constant 3 : i32
      %c32_i32_15 = arith.constant 32 : i32
      %39 = arith.muli %c3_i32, %c32_i32_15 : i32
      %40 = tpu.assume_multiple %39, 32 : i32
      %41 = arith.index_cast %40 : i32 to index
      %c0_16 = arith.constant 0 : index
      %42 = vector.load %arg1[%41, %c0_16] : memref<512x1xi32, #tpu.memory_space<vmem>>, vector<32x1xi32>
      %43 = vector.broadcast %42 : vector<32x1xi32> to vector<32x1024xi32>
      %44 = arith.cmpi eq, %43, %10 : vector<32x1024xi32>
      %45 = arith.extui %44 : vector<32x1024xi1> to vector<32x1024xi32>
      %46 = arith.sitofp %45 : vector<32x1024xi32> to vector<32x1024xf32>
      %47 = arith.addf %38, %46 : vector<32x1024xf32>
      %c4_i32 = arith.constant 4 : i32
      %c32_i32_17 = arith.constant 32 : i32
      %48 = arith.muli %c4_i32, %c32_i32_17 : i32
      %49 = tpu.assume_multiple %48, 32 : i32
      %50 = arith.index_cast %49 : i32 to index
      %c0_18 = arith.constant 0 : index
      %51 = vector.load %arg1[%50, %c0_18] : memref<512x1xi32, #tpu.memory_space<vmem>>, vector<32x1xi32>
      %52 = vector.broadcast %51 : vector<32x1xi32> to vector<32x1024xi32>
      %53 = arith.cmpi eq, %52, %10 : vector<32x1024xi32>
      %54 = arith.extui %53 : vector<32x1024xi1> to vector<32x1024xi32>
      %55 = arith.sitofp %54 : vector<32x1024xi32> to vector<32x1024xf32>
      %56 = arith.addf %47, %55 : vector<32x1024xf32>
      %c5_i32 = arith.constant 5 : i32
      %c32_i32_19 = arith.constant 32 : i32
      %57 = arith.muli %c5_i32, %c32_i32_19 : i32
      %58 = tpu.assume_multiple %57, 32 : i32
      %59 = arith.index_cast %58 : i32 to index
      %c0_20 = arith.constant 0 : index
      %60 = vector.load %arg1[%59, %c0_20] : memref<512x1xi32, #tpu.memory_space<vmem>>, vector<32x1xi32>
      %61 = vector.broadcast %60 : vector<32x1xi32> to vector<32x1024xi32>
      %62 = arith.cmpi eq, %61, %10 : vector<32x1024xi32>
      %63 = arith.extui %62 : vector<32x1024xi1> to vector<32x1024xi32>
      %64 = arith.sitofp %63 : vector<32x1024xi32> to vector<32x1024xf32>
      %65 = arith.addf %56, %64 : vector<32x1024xf32>
      %c6_i32 = arith.constant 6 : i32
      %c32_i32_21 = arith.constant 32 : i32
      %66 = arith.muli %c6_i32, %c32_i32_21 : i32
      %67 = tpu.assume_multiple %66, 32 : i32
      %68 = arith.index_cast %67 : i32 to index
      %c0_22 = arith.constant 0 : index
      %69 = vector.load %arg1[%68, %c0_22] : memref<512x1xi32, #tpu.memory_space<vmem>>, vector<32x1xi32>
      %70 = vector.broadcast %69 : vector<32x1xi32> to vector<32x1024xi32>
      %71 = arith.cmpi eq, %70, %10 : vector<32x1024xi32>
      %72 = arith.extui %71 : vector<32x1024xi1> to vector<32x1024xi32>
      %73 = arith.sitofp %72 : vector<32x1024xi32> to vector<32x1024xf32>
      %74 = arith.addf %65, %73 : vector<32x1024xf32>
      %c7_i32 = arith.constant 7 : i32
      %c32_i32_23 = arith.constant 32 : i32
      %75 = arith.muli %c7_i32, %c32_i32_23 : i32
      %76 = tpu.assume_multiple %75, 32 : i32
      %77 = arith.index_cast %76 : i32 to index
      %c0_24 = arith.constant 0 : index
      %78 = vector.load %arg1[%77, %c0_24] : memref<512x1xi32, #tpu.memory_space<vmem>>, vector<32x1xi32>
      %79 = vector.broadcast %78 : vector<32x1xi32> to vector<32x1024xi32>
      %80 = arith.cmpi eq, %79, %10 : vector<32x1024xi32>
      %81 = arith.extui %80 : vector<32x1024xi1> to vector<32x1024xi32>
      %82 = arith.sitofp %81 : vector<32x1024xi32> to vector<32x1024xf32>
      %83 = arith.addf %74, %82 : vector<32x1024xf32>
      %c8_i32 = arith.constant 8 : i32
      %c32_i32_25 = arith.constant 32 : i32
      %84 = arith.muli %c8_i32, %c32_i32_25 : i32
      %85 = tpu.assume_multiple %84, 32 : i32
      %86 = arith.index_cast %85 : i32 to index
      %c0_26 = arith.constant 0 : index
      %87 = vector.load %arg1[%86, %c0_26] : memref<512x1xi32, #tpu.memory_space<vmem>>, vector<32x1xi32>
      %88 = vector.broadcast %87 : vector<32x1xi32> to vector<32x1024xi32>
      %89 = arith.cmpi eq, %88, %10 : vector<32x1024xi32>
      %90 = arith.extui %89 : vector<32x1024xi1> to vector<32x1024xi32>
      %91 = arith.sitofp %90 : vector<32x1024xi32> to vector<32x1024xf32>
      %92 = arith.addf %83, %91 : vector<32x1024xf32>
      %c9_i32 = arith.constant 9 : i32
      %c32_i32_27 = arith.constant 32 : i32
      %93 = arith.muli %c9_i32, %c32_i32_27 : i32
      %94 = tpu.assume_multiple %93, 32 : i32
      %95 = arith.index_cast %94 : i32 to index
      %c0_28 = arith.constant 0 : index
      %96 = vector.load %arg1[%95, %c0_28] : memref<512x1xi32, #tpu.memory_space<vmem>>, vector<32x1xi32>
      %97 = vector.broadcast %96 : vector<32x1xi32> to vector<32x1024xi32>
      %98 = arith.cmpi eq, %97, %10 : vector<32x1024xi32>
      %99 = arith.extui %98 : vector<32x1024xi1> to vector<32x1024xi32>
      %100 = arith.sitofp %99 : vector<32x1024xi32> to vector<32x1024xf32>
      %101 = arith.addf %92, %100 : vector<32x1024xf32>
      %c10_i32 = arith.constant 10 : i32
      %c32_i32_29 = arith.constant 32 : i32
      %102 = arith.muli %c10_i32, %c32_i32_29 : i32
      %103 = tpu.assume_multiple %102, 32 : i32
      %104 = arith.index_cast %103 : i32 to index
      %c0_30 = arith.constant 0 : index
      %105 = vector.load %arg1[%104, %c0_30] : memref<512x1xi32, #tpu.memory_space<vmem>>, vector<32x1xi32>
      %106 = vector.broadcast %105 : vector<32x1xi32> to vector<32x1024xi32>
      %107 = arith.cmpi eq, %106, %10 : vector<32x1024xi32>
      %108 = arith.extui %107 : vector<32x1024xi1> to vector<32x1024xi32>
      %109 = arith.sitofp %108 : vector<32x1024xi32> to vector<32x1024xf32>
      %110 = arith.addf %101, %109 : vector<32x1024xf32>
      %c11_i32 = arith.constant 11 : i32
      %c32_i32_31 = arith.constant 32 : i32
      %111 = arith.muli %c11_i32, %c32_i32_31 : i32
      %112 = tpu.assume_multiple %111, 32 : i32
      %113 = arith.index_cast %112 : i32 to index
      %c0_32 = arith.constant 0 : index
      %114 = vector.load %arg1[%113, %c0_32] : memref<512x1xi32, #tpu.memory_space<vmem>>, vector<32x1xi32>
      %115 = vector.broadcast %114 : vector<32x1xi32> to vector<32x1024xi32>
      %116 = arith.cmpi eq, %115, %10 : vector<32x1024xi32>
      %117 = arith.extui %116 : vector<32x1024xi1> to vector<32x1024xi32>
      %118 = arith.sitofp %117 : vector<32x1024xi32> to vector<32x1024xf32>
      %119 = arith.addf %110, %118 : vector<32x1024xf32>
      %c12_i32 = arith.constant 12 : i32
      %c32_i32_33 = arith.constant 32 : i32
      %120 = arith.muli %c12_i32, %c32_i32_33 : i32
      %121 = tpu.assume_multiple %120, 32 : i32
      %122 = arith.index_cast %121 : i32 to index
      %c0_34 = arith.constant 0 : index
      %123 = vector.load %arg1[%122, %c0_34] : memref<512x1xi32, #tpu.memory_space<vmem>>, vector<32x1xi32>
      %124 = vector.broadcast %123 : vector<32x1xi32> to vector<32x1024xi32>
      %125 = arith.cmpi eq, %124, %10 : vector<32x1024xi32>
      %126 = arith.extui %125 : vector<32x1024xi1> to vector<32x1024xi32>
      %127 = arith.sitofp %126 : vector<32x1024xi32> to vector<32x1024xf32>
      %128 = arith.addf %119, %127 : vector<32x1024xf32>
      %c13_i32 = arith.constant 13 : i32
      %c32_i32_35 = arith.constant 32 : i32
      %129 = arith.muli %c13_i32, %c32_i32_35 : i32
      %130 = tpu.assume_multiple %129, 32 : i32
      %131 = arith.index_cast %130 : i32 to index
      %c0_36 = arith.constant 0 : index
      %132 = vector.load %arg1[%131, %c0_36] : memref<512x1xi32, #tpu.memory_space<vmem>>, vector<32x1xi32>
      %133 = vector.broadcast %132 : vector<32x1xi32> to vector<32x1024xi32>
      %134 = arith.cmpi eq, %133, %10 : vector<32x1024xi32>
      %135 = arith.extui %134 : vector<32x1024xi1> to vector<32x1024xi32>
      %136 = arith.sitofp %135 : vector<32x1024xi32> to vector<32x1024xf32>
      %137 = arith.addf %128, %136 : vector<32x1024xf32>
      %c14_i32 = arith.constant 14 : i32
      %c32_i32_37 = arith.constant 32 : i32
      %138 = arith.muli %c14_i32, %c32_i32_37 : i32
      %139 = tpu.assume_multiple %138, 32 : i32
      %140 = arith.index_cast %139 : i32 to index
      %c0_38 = arith.constant 0 : index
      %141 = vector.load %arg1[%140, %c0_38] : memref<512x1xi32, #tpu.memory_space<vmem>>, vector<32x1xi32>
      %142 = vector.broadcast %141 : vector<32x1xi32> to vector<32x1024xi32>
      %143 = arith.cmpi eq, %142, %10 : vector<32x1024xi32>
      %144 = arith.extui %143 : vector<32x1024xi1> to vector<32x1024xi32>
      %145 = arith.sitofp %144 : vector<32x1024xi32> to vector<32x1024xf32>
      %146 = arith.addf %137, %145 : vector<32x1024xf32>
      %c15_i32 = arith.constant 15 : i32
      %c32_i32_39 = arith.constant 32 : i32
      %147 = arith.muli %c15_i32, %c32_i32_39 : i32
      %148 = tpu.assume_multiple %147, 32 : i32
      %149 = arith.index_cast %148 : i32 to index
      %c0_40 = arith.constant 0 : index
      %150 = vector.load %arg1[%149, %c0_40] : memref<512x1xi32, #tpu.memory_space<vmem>>, vector<32x1xi32>
      %151 = vector.broadcast %150 : vector<32x1xi32> to vector<32x1024xi32>
      %152 = arith.cmpi eq, %151, %10 : vector<32x1024xi32>
      %153 = arith.extui %152 : vector<32x1024xi1> to vector<32x1024xi32>
      %154 = arith.sitofp %153 : vector<32x1024xi32> to vector<32x1024xf32>
      %155 = arith.addf %146, %154 : vector<32x1024xf32>
      %c16_i32 = arith.constant 16 : i32
      %156 = arith.truncf %155 : vector<32x1024xf32> to vector<32x1024xbf16>
      %c0_41 = arith.constant 0 : index
      %c0_42 = arith.constant 0 : index
      %157 = vector.load %arg2[%c0_41, %c0_42] : memref<1024x128xbf16, #tpu.memory_space<vmem>>, vector<1024x128xbf16>
      %cst_43 = arith.constant dense<0.000000e+00> : vector<32x128xf32>
      %158 = tpu.matmul %156, %157, %cst_43 {dimension_numbers = #tpu.dot_dimension_numbers<[1], [0], [0], [1], [0, 0, 1, 1], [], []>} : vector<32x1024xbf16>, vector<1024x128xbf16>, vector<32x128xf32> -> vector<32x128xf32>
      %159 = arith.truncf %158 : vector<32x128xf32> to vector<32x128xbf16>
      %c0_44 = arith.constant 0 : index
      %c0_45 = arith.constant 0 : index
      %160 = vector.load %arg6[%c0_44, %c0_45] : memref<32x128xbf16, #tpu.memory_space<vmem>>, vector<32x128xbf16>
      tpu.vector_store %arg6[%c0_44, %c0_45], %159 {strides = array<i32>} : memref<32x128xbf16, #tpu.memory_space<vmem>>, vector<32x128xbf16>,
    } else {
    }
    %c0 = arith.constant 0 : index
    %c0_1 = arith.constant 0 : index
    %3 = vector.load %arg6[%c0, %c0_1] : memref<32x128xbf16, #tpu.memory_space<vmem>>, vector<32x128xbf16>
    %c0_2 = arith.constant 0 : index
    %c0_3 = arith.constant 0 : index
    %4 = vector.load %arg3[%c0_2, %c0_3] : memref<128x256xbf16, #tpu.memory_space<vmem>>, vector<128x256xbf16>
    %cst = arith.constant dense<0.000000e+00> : vector<32x256xf32>
    %5 = tpu.matmul %3, %4, %cst {dimension_numbers = #tpu.dot_dimension_numbers<[1], [0], [0], [1], [0, 0, 1, 1], [], []>} : vector<32x128xbf16>, vector<128x256xbf16>, vector<32x256xf32> -> vector<32x256xf32>
    %c0_4 = arith.constant 0 : index
    %c0_5 = arith.constant 0 : index
    %6 = vector.load %arg4[%c0_4, %c0_5] : memref<1x256xf32, #tpu.memory_space<vmem>>, vector<1x256xf32>
    %7 = vector.broadcast %6 : vector<1x256xf32> to vector<32x256xf32>
    %8 = arith.addf %5, %7 : vector<32x256xf32>
    %c0_6 = arith.constant 0 : index
    %c0_7 = arith.constant 0 : index
    %9 = vector.load %arg5[%c0_6, %c0_7] : memref<32x256xf32, #tpu.memory_space<vmem>>, vector<32x256xf32>
    tpu.vector_store %arg5[%c0_6, %c0_7], %8 {strides = array<i32>} : memref<32x256xf32, #tpu.memory_space<vmem>>, vector<32x256xf32>,
    return
  }
  func.func @transform_0(%arg0: i32) -> (i32, i32) {
    %c0_i32 = arith.constant 0 : i32
    %c0_i32_0 = arith.constant 0 : i32
    %c0_i32_1 = arith.constant 0 : i32
    return %c0_i32, %c0_i32_0 : i32, i32
  }
  func.func @transform_1(%arg0: i32) -> (i32, i32) {
    %c0_i32 = arith.constant 0 : i32
    %c0_i32_0 = arith.constant 0 : i32
    %c0_i32_1 = arith.constant 0 : i32
    return %c0_i32, %c0_i32_0 : i32, i32
  }
  func.func @transform_2(%arg0: i32) -> (i32, i32) {
    %c0_i32 = arith.constant 0 : i32
    %c0_i32_0 = arith.constant 0 : i32
    return %c0_i32, %arg0 : i32, i32
  }
  func.func @transform_3(%arg0: i32) -> (i32, i32) {
    %c0_i32 = arith.constant 0 : i32
    %c0_i32_0 = arith.constant 0 : i32
    return %c0_i32, %arg0 : i32, i32
  }
  func.func @transform_4(%arg0: i32) -> (i32, i32) {
    %c0_i32 = arith.constant 0 : i32
    %c0_i32_0 = arith.constant 0 : i32
    return %c0_i32, %arg0 : i32, i32
  }
}

</mosaic_0001>

<llo_original>
// kernel: tpu_custom_call.1
$region0: #{tpu_custom_call.1}
  #allocation0 [shape = 'u32[]', space=smem, size = 0x4, offset = 0x4, fixed_abs, tag = 'smem constant byte address 0x4 - core index']
  #allocation1 [shape = 'u32[144,128]{1,0:T(1,128)}', space=vmem, size = 0x12000, scoped, tag = 'internal scratch']
  #allocation2 [shape = 'bf16[32,128]{1,0:T(16,128)(2,1)}', space=vmem, size = 0x2000, scoped, tag = 'scratch operand']
  %s0 = inlined_call_operand.vmem [shape: s32[512,1], index: 0, kind: input, shape index: {}]
  %s1 = inlined_call_operand.vmem [shape: bf16[1024,128], index: 1, kind: input, shape index: {}]
  %s2 = inlined_call_operand.hbm [shape: bf16[128,1024], index: 2, kind: input, shape index: {}]
  %s3 = inlined_call_operand.vmem [shape: f32[1,1024], index: 3, kind: input, shape index: {}]
  %s4 = inlined_call_operand.hbm [shape: f32[32,1024], index: 4, kind: output, shape index: {}]
  %s5 = sld [smem:[#allocation0]]
  $region57: #{tpu_custom_call.1} parent=0
    _
  %s7 = ssub.s32 1, %s5
  %s8 = scalar_select 0, %s7, %s5
  $region1: #{tpu_custom_call.1} parent=0
    #allocation3 [shape = 'u8[131072]{0}', space=vmem, size = 0x20000, scoped, tag = 'input window, operand 2']
    #allocation4 [shape = 's32[2]{0}', space=sflag, size = 0x8, scoped, tag = 'scoped memory for tpu_custom_call.1']
    #allocation5 [shape = 's32[2]{0}', space=sflag, size = 0x8, scoped, tag = 'scoped memory for tpu_custom_call.1']
    #allocation6 [shape = 'u8[65536]{0}', space=vmem, size = 0x10000, scoped, tag = 'output window, operand 0']
    %9 = vsyncpa [#allocation4], 0
    %s10 = scalar_lea.sflag [#allocation4], 1
    %11 = vsyncpa %s10, 0
    %12 = vsyncpa [#allocation5], 0
    %s13 = scalar_lea.sflag [#allocation5], 1
    %14 = vsyncpa %s13, 0
    loop: start=0, step=1, limit=6
    $region2: #{tpu_custom_call.1} parent=1 // loop_pre_header
      _
    $region3: #{tpu_custom_call.1} parent=1 // loop_header
      %s16 = sphi 0, %s20
      %p17 = scmp.ge.s32.totalorder %s16, 6
      %s24 = sphi 0, %s24
      %s26 = sphi 0, %s24
      %s27 = sphi 0, %s26
      %s41 = sphi 0, %s27
      %s45 = sphi 0, %s45
      %s47 = sphi 0, %s45
      %s48 = sphi 0, %s47
      %s62 = sphi 0, %s48
      %s68 = sphi 0, %s70
      %s71 = sphi 0, %s68
      %s72 = sphi 0, %s71
      %s88 = sphi 0, %s72
      %s94 = sphi 0, %s96
      %s97 = sphi 0, %s94
      %s98 = sphi 0, %s97
      %s114 = sphi 0, %s98
      %s120 = sphi 0, %s122
      %s123 = sphi 0, %s120
      %s124 = sphi 0, %s123
      %s140 = sphi 0, %s124
    $region4: #{tpu_custom_call.1} parent=1 // loop_header_branch
      %19 = sbr.rel (%p17) target = $region8
    $region5: #{tpu_custom_call.1} parent=1 // loop_body
      %s21 = ssub.s32 %s16, 1
      %s22 = ssub.s32 %s16, 2
      %s23 = sadd.s32 %s16, 1
      %s25 = sadd.s32 %s24, 1
      %p28 = scmp.eq.s32.totalorder %s16, 3
      %p29 = scmp.ne.s32.totalorder %s24, %s26
      %p30 = scmp.eq.s32.totalorder %s16, 0
      %p31 = por %p29, %p30
      %p32 = scmp.ne.s32.totalorder %s24, %s26
      %p33 = scmp.eq.s32.totalorder %s21, 3
      %p34 = por %p32, %p33
      %p35 = scmp.ne.s32.totalorder %s26, %s27
      %p36 = scmp.eq.s32.totalorder %s21, 0
      %p37 = por %p35, %p36
      %p38 = scmp.ne.s32.totalorder %s26, %s27
      %p39 = scmp.eq.s32.totalorder %s22, 3
      %p40 = por %p38, %p39
      %p42 = scmp.ne.s32.totalorder %s27, %s41
      %p43 = scmp.eq.s32.totalorder %s22, 0
      %p44 = por %p42, %p43
      %s46 = sadd.s32 %s45, 1
      %p49 = scmp.eq.s32.totalorder %s16, 3
      %p50 = scmp.ne.s32.totalorder %s45, %s47
      %p51 = scmp.eq.s32.totalorder %s16, 0
      %p52 = por %p50, %p51
      %p53 = scmp.ne.s32.totalorder %s45, %s47
      %p54 = scmp.eq.s32.totalorder %s21, 3
      %p55 = por %p53, %p54
      %p56 = scmp.ne.s32.totalorder %s47, %s48
      %p57 = scmp.eq.s32.totalorder %s21, 0
      %p58 = por %p56, %p57
      %p59 = scmp.ne.s32.totalorder %s47, %s48
      %p60 = scmp.eq.s32.totalorder %s22, 3
      %p61 = por %p59, %p60
      %p63 = scmp.ne.s32.totalorder %s48, %s62
      %p64 = scmp.eq.s32.totalorder %s22, 0
      %p65 = por %p63, %p64
      %s66 = ssub.s32 %s16, %s23
      %p67 = scmp.eq.s32.totalorder %s66, 0
      %s69 = sadd.s32 %s68, 1
      %s70 = scalar_select %p67, %s68, %s69
      %p73 = pneg %p67
      %p74 = scmp.eq.s32.totalorder %s16, 3
      %p75 = por %p73, %p74
      %p76 = scmp.ne.s32.totalorder %s68, %s71
      %p77 = scmp.eq.s32.totalorder %s16, 0
      %p78 = por %p76, %p77
      %p79 = scmp.ne.s32.totalorder %s68, %s71
      %p80 = scmp.eq.s32.totalorder %s21, 3
      %p81 = por %p79, %p80
      %p82 = scmp.ne.s32.totalorder %s71, %s72
      %p83 = scmp.eq.s32.totalorder %s21, 0
      %p84 = por %p82, %p83
      %p85 = scmp.ne.s32.totalorder %s71, %s72
      %p86 = scmp.eq.s32.totalorder %s22, 3
      %p87 = por %p85, %p86
      %p89 = scmp.ne.s32.totalorder %s72, %s88
      %p90 = scmp.eq.s32.totalorder %s22, 0
      %p91 = por %p89, %p90
      %s92 = ssub.s32 %s16, %s23
      %p93 = scmp.eq.s32.totalorder %s92, 0
      %s95 = sadd.s32 %s94, 1
      %s96 = scalar_select %p93, %s94, %s95
      %p99 = pneg %p93
      %p100 = scmp.eq.s32.totalorder %s16, 3
      %p101 = por %p99, %p100
      %p102 = scmp.ne.s32.totalorder %s94, %s97
      %p103 = scmp.eq.s32.totalorder %s16, 0
      %p104 = por %p102, %p103
      %p105 = scmp.ne.s32.totalorder %s94, %s97
      %p106 = scmp.eq.s32.totalorder %s21, 3
      %p107 = por %p105, %p106
      %p108 = scmp.ne.s32.totalorder %s97, %s98
      %p109 = scmp.eq.s32.totalorder %s21, 0
      %p110 = por %p108, %p109
      %p111 = scmp.ne.s32.totalorder %s97, %s98
      %p112 = scmp.eq.s32.totalorder %s22, 3
      %p113 = por %p111, %p112
      %p115 = scmp.ne.s32.totalorder %s98, %s114
      %p116 = scmp.eq.s32.totalorder %s22, 0
      %p117 = por %p115, %p116
      %s118 = ssub.s32 %s16, %s23
      %p119 = scmp.eq.s32.totalorder %s118, 0
      %s121 = sadd.s32 %s120, 1
      %s122 = scalar_select %p119, %s120, %s121
      %p125 = pneg %p119
      %p126 = scmp.eq.s32.totalorder %s16, 3
      %p127 = por %p125, %p126
      %p128 = scmp.ne.s32.totalorder %s120, %s123
      %p129 = scmp.eq.s32.totalorder %s16, 0
      %p130 = por %p128, %p129
      %p131 = scmp.ne.s32.totalorder %s120, %s123
      %p132 = scmp.eq.s32.totalorder %s21, 3
      %p133 = por %p131, %p132
      %p134 = scmp.ne.s32.totalorder %s123, %s124
      %p135 = scmp.eq.s32.totalorder %s21, 0
      %p136 = por %p134, %p135
      %p137 = scmp.ne.s32.totalorder %s123, %s124
      %p138 = scmp.eq.s32.totalorder %s22, 3
      %p139 = por %p137, %p138
      %p141 = scmp.ne.s32.totalorder %s124, %s140
      %p142 = scmp.eq.s32.totalorder %s22, 0
      %p143 = por %p141, %p142
      %p144 = scmp.le.s32.totalorder 1, %s16
      %p145 = scmp.lt.s32.totalorder %s16, 5
      %p146 = pnand %p144, %p145
      %p147 = pneg %p146
      // Predicated region
      $region9: #{tpu_custom_call.1} parent=5 // pred_check
        _
      $region10: #{tpu_custom_call.1} parent=5 // pred_check_branch
        %149 = sbr.rel (%p146) target = $region12
      $region11: #{tpu_custom_call.1} parent=5 // pred_region
        %s150 = ssub.s32 %s16, 1
        // Predicated region
        $region13: #{tpu_custom_call.1} parent=11 // pred_check
          %p151 = pneg %p37
        $region14: #{tpu_custom_call.1} parent=11 // pred_check_branch
          %153 = sbr.rel (%p151) target = $region16
        $region15: #{tpu_custom_call.1} parent=11 // pred_region
          _
        $region16: #{tpu_custom_call.1} parent=11 // pred_fallthru
          _
        // Predicated region
        $region17: #{tpu_custom_call.1} parent=11 // pred_check
          %p154 = pneg %p58
        $region18: #{tpu_custom_call.1} parent=11 // pred_check_branch
          %156 = sbr.rel (%p154) target = $region20
        $region19: #{tpu_custom_call.1} parent=11 // pred_region
          _
        $region20: #{tpu_custom_call.1} parent=11 // pred_fallthru
          _
      $region12: #{tpu_custom_call.1} parent=5 // pred_fallthru
        _
      %p157 = scmp.lt.s32.totalorder %s16, 4
      // Predicated region
      $region21: #{tpu_custom_call.1} parent=5 // pred_check
        %p158 = pneg %p157
      $region22: #{tpu_custom_call.1} parent=5 // pred_check_branch
        %160 = sbr.rel (%p158) target = $region24
      $region23: #{tpu_custom_call.1} parent=5 // pred_region
        // Predicated region
        $region25: #{tpu_custom_call.1} parent=23 // pred_check
          %p161 = pneg %p78
        $region26: #{tpu_custom_call.1} parent=23 // pred_check_branch
          %163 = sbr.rel (%p161) target = $region28
        $region27: #{tpu_custom_call.1} parent=23 // pred_region
          %s164 = sand.u32 %s68, 1
          %s165 = scalar_lea.sflag [#allocation4], %s164
          %s166 = sand.u32 %s68, 1
          %s167 = smul.addr %s166, 128
          %s168 = scalar_lea.vmem [#allocation3], %s167
          %s169 = smul.u32 2, %s16
          %s171 = ssub.s32 2048, 2048
          %172 = vsyncadd %s165, %s171
          %s173 = smul.addr %s169, 64
          %s174 = scalar_lea.hbm %s2, %s173
          %s175 = sshll.u32 %s168, 4
          %s176 = int_to_ptr.vmem [resolvable:$true] %s175
          %181 = dma.hbm_to_vmem [thread:$0]  %s174, 2048, %s176, %s165, 512, 128, 8
        $region28: #{tpu_custom_call.1} parent=23 // pred_fallthru
          _
        // Predicated region
        $region29: #{tpu_custom_call.1} parent=23 // pred_check
          %p182 = pneg %p104
        $region30: #{tpu_custom_call.1} parent=23 // pred_check_branch
          %184 = sbr.rel (%p182) target = $region32
        $region31: #{tpu_custom_call.1} parent=23 // pred_region
          %s185 = smul.u32 2, %s16
          %p186 = scmp.lt.s32.totalorder %s185, 7
          %s187 = scalar_select %p186, %s185, 7
          %s188 = scalar_lea.vmem %s3, %s187
          %s189 = smul.u32 2, %s16
        $region32: #{tpu_custom_call.1} parent=23 // pred_fallthru
          _
      $region24: #{tpu_custom_call.1} parent=5 // pred_fallthru
        _
      %p190 = scmp.le.s32.totalorder 1, %s16
      %p191 = scmp.lt.s32.totalorder %s16, 5
      %p192 = pnand %p190, %p191
      %p193 = pneg %p192
      // Predicated region
      $region33: #{tpu_custom_call.1} parent=5 // pred_check
        _
      $region34: #{tpu_custom_call.1} parent=5 // pred_check_branch
        %195 = sbr.rel (%p192) target = $region36
      $region35: #{tpu_custom_call.1} parent=5 // pred_region
        %s196 = ssub.s32 %s16, 1
        %s197 = sand.u32 %s71, 1
        %s198 = scalar_lea.sflag [#allocation4], %s197
        %s199 = sand.u32 %s71, 1
        %s200 = smul.addr %s199, 128
        %s201 = scalar_lea.vmem [#allocation3], %s200
        // Predicated region
        $region37: #{tpu_custom_call.1} parent=35 // pred_check
          %p202 = pneg %p84
        $region38: #{tpu_custom_call.1} parent=35 // pred_check_branch
          %204 = sbr.rel (%p202) target = $region40
        $region39: #{tpu_custom_call.1} parent=35 // pred_region
          %205 = dma.done %s198, 2048
        $region40: #{tpu_custom_call.1} parent=35 // pred_fallthru
          _
        %p206 = pneg %p37
        %p207 = pneg %p34
        %p208 = pneg %p58
        %p209 = pneg %p55
        %s210 = sand.u32 %s71, 1
        %s211 = scalar_lea.sflag [#allocation4], %s210
        %s212 = sand.u32 %s71, 1
        %s213 = smul.addr %s212, 128
        %s214 = scalar_lea.vmem [#allocation3], %s213
        %p215 = pneg %p84
        %p216 = pneg %p81
        %s217 = smul.u32 2, %s21
        %p218 = scmp.lt.s32.totalorder %s217, 7
        %s219 = scalar_select %p218, %s217, 7
        %s220 = scalar_lea.vmem %s3, %s219
        %p221 = pneg %p110
        %p222 = pneg %p107
        %p223 = pneg %p136
        %p224 = pneg %p133
        %s225 = sand.u32 %s123, 1
        %s226 = scalar_lea.sflag [#allocation5], %s225
        %s227 = sand.u32 %s123, 1
        %s228 = smul.addr %s227, 64
        %s229 = scalar_lea.vmem [#allocation6], %s228
        %s230 = smul.u32 2, %s21
        %s231 = smul.u32 2, %s21
        %p232 = scmp.lt.s32.totalorder %s231, 7
        %s233 = scalar_select %p232, %s231, 7
        %s234 = scalar_lea.vmem %s3, %s233
        %s235 = smul.u32 2, %s21
        %s236 = smul.u32 2, %s21
        %p238 = scmp.eq.s32.totalorder %s21, 0
        // Predicated region
        $region41: #{tpu_custom_call.1} parent=35 // pred_check
          %p239 = pneg %p238
        $region42: #{tpu_custom_call.1} parent=35 // pred_check_branch
          %241 = sbr.rel (%p239) target = $region44
        $region43: #{tpu_custom_call.1} parent=35 // pred_region
          %v242 = vlaneseq
          %v243 = vand.u32 %v242, 127
          %v244 = vadd.s32 %v243, 128
          %v245 = vadd.s32 %v243, 256
          %v246 = vadd.s32 %v243, 384
          %v247 = vadd.s32 %v243, 512
          %v248 = vadd.s32 %v243, 640
          %v249 = vadd.s32 %v243, 768
          %v250 = vadd.s32 %v243, 896
          %v251 = vld [vmem:[%s0] sm:$0xff]
          %v252 = vld [vmem:[%s0 + $0x8] sm:$0xff]
          %v253 = vld [vmem:[%s0 + $0x10] sm:$0xff]
          %v254 = vld [vmem:[%s0 + $0x18] sm:$0xff]
          %255 = vset.pattern.permute.xlu0 0
          %256 = vperm.xlu0 %255, %v251
          %v257 = vpop.permute.xlu0 %256
          %258 = vset.pattern.permute.xlu0 0
          %259 = vperm.xlu0 %258, %v252
          %v260 = vpop.permute.xlu0 %259
          %261 = vset.pattern.permute.xlu0 0
          %262 = vperm.xlu0 %261, %v253
          %v263 = vpop.permute.xlu0 %262
          %264 = vset.pattern.permute.xlu0 0
          %265 = vperm.xlu0 %264, %v254
          %v266 = vpop.permute.xlu0 %265
          %vm267 = vcmp.eq.s32.totalorder %v257, %v243
          %vm268 = vcmp.eq.s32.totalorder %v257, %v244
          %vm269 = vcmp.eq.s32.totalorder %v257, %v245
          %vm270 = vcmp.eq.s32.totalorder %v257, %v246
          %vm271 = vcmp.eq.s32.totalorder %v257, %v247
          %vm272 = vcmp.eq.s32.totalorder %v257, %v248
          %vm273 = vcmp.eq.s32.totalorder %v257, %v249
          %vm274 = vcmp.eq.s32.totalorder %v257, %v250
          %vm275 = vcmp.eq.s32.totalorder %v260, %v243
          %vm276 = vcmp.eq.s32.totalorder %v260, %v244
          %vm277 = vcmp.eq.s32.totalorder %v260, %v245
          %vm278 = vcmp.eq.s32.totalorder %v260, %v246
          %vm279 = vcmp.eq.s32.totalorder %v260, %v247
          %vm280 = vcmp.eq.s32.totalorder %v260, %v248
          %vm281 = vcmp.eq.s32.totalorder %v260, %v249
          %vm282 = vcmp.eq.s32.totalorder %v260, %v250
          %vm283 = vcmp.eq.s32.totalorder %v263, %v243
          %vm284 = vcmp.eq.s32.totalorder %v263, %v244
          %vm285 = vcmp.eq.s32.totalorder %v263, %v245
          %vm286 = vcmp.eq.s32.totalorder %v263, %v246
          %vm287 = vcmp.eq.s32.totalorder %v263, %v247
          %vm288 = vcmp.eq.s32.totalorder %v263, %v248
          %vm289 = vcmp.eq.s32.totalorder %v263, %v249
          %vm290 = vcmp.eq.s32.totalorder %v263, %v250
          %vm291 = vcmp.eq.s32.totalorder %v266, %v243
          %vm292 = vcmp.eq.s32.totalorder %v266, %v244
          %vm293 = vcmp.eq.s32.totalorder %v266, %v245
          %vm294 = vcmp.eq.s32.totalorder %v266, %v246
          %vm295 = vcmp.eq.s32.totalorder %v266, %v247
          %vm296 = vcmp.eq.s32.totalorder %v266, %v248
          %vm297 = vcmp.eq.s32.totalorder %v266, %v249
          %vm298 = vcmp.eq.s32.totalorder %v266, %v250
          %v299 = vsel %vm267, 1, 0
          %v300 = vsel %vm268, 1, 0
          %v301 = vsel %vm269, 1, 0
          %v302 = vsel %vm270, 1, 0
          %v303 = vsel %vm271, 1, 0
          %v304 = vsel %vm272, 1, 0
          %v305 = vsel %vm273, 1, 0
          %v306 = vsel %vm274, 1, 0
          %v307 = vsel %vm275, 1, 0
          %v308 = vsel %vm276, 1, 0
          %v309 = vsel %vm277, 1, 0
          %v310 = vsel %vm278, 1, 0
          %v311 = vsel %vm279, 1, 0
          %v312 = vsel %vm280, 1, 0
          %v313 = vsel %vm281, 1, 0
          %v314 = vsel %vm282, 1, 0
          %v315 = vsel %vm283, 1, 0
          %v316 = vsel %vm284, 1, 0
          %v317 = vsel %vm285, 1, 0
          %v318 = vsel %vm286, 1, 0
          %v319 = vsel %vm287, 1, 0
          %v320 = vsel %vm288, 1, 0
          %v321 = vsel %vm289, 1, 0
          %v322 = vsel %vm290, 1, 0
          %v323 = vsel %vm291, 1, 0
          %v324 = vsel %vm292, 1, 0
          %v325 = vsel %vm293, 1, 0
          %v326 = vsel %vm294, 1, 0
          %v327 = vsel %vm295, 1, 0
          %v328 = vsel %vm296, 1, 0
          %v329 = vsel %vm297, 1, 0
          %v330 = vsel %vm298, 1, 0
          %v331 = vcvt.s32.f32 %v299
          %v332 = vcvt.s32.f32 %v300
          %v333 = vcvt.s32.f32 %v301
          %v334 = vcvt.s32.f32 %v302
          %v335 = vcvt.s32.f32 %v303
          %v336 = vcvt.s32.f32 %v304
          %v337 = vcvt.s32.f32 %v305
          %v338 = vcvt.s32.f32 %v306
          %v339 = vcvt.s32.f32 %v307
          %v340 = vcvt.s32.f32 %v308
          %v341 = vcvt.s32.f32 %v309
          %v342 = vcvt.s32.f32 %v310
          %v343 = vcvt.s32.f32 %v311
          %v344 = vcvt.s32.f32 %v312
          %v345 = vcvt.s32.f32 %v313
          %v346 = vcvt.s32.f32 %v314
          %v347 = vcvt.s32.f32 %v315
          %v348 = vcvt.s32.f32 %v316
          %v349 = vcvt.s32.f32 %v317
          %v350 = vcvt.s32.f32 %v318
          %v351 = vcvt.s32.f32 %v319
          %v352 = vcvt.s32.f32 %v320
          %v353 = vcvt.s32.f32 %v321
          %v354 = vcvt.s32.f32 %v322
          %v355 = vcvt.s32.f32 %v323
          %v356 = vcvt.s32.f32 %v324
          %v357 = vcvt.s32.f32 %v325
          %v358 = vcvt.s32.f32 %v326
          %v359 = vcvt.s32.f32 %v327
          %v360 = vcvt.s32.f32 %v328
          %v361 = vcvt.s32.f32 %v329
          %v362 = vcvt.s32.f32 %v330
          %v363 = vadd.f32 %v331, 0.0
          %v364 = vadd.f32 %v332, 0.0
          %v365 = vadd.f32 %v333, 0.0
          %v366 = vadd.f32 %v334, 0.0
          %v367 = vadd.f32 %v335, 0.0
          %v368 = vadd.f32 %v336, 0.0
          %v369 = vadd.f32 %v337, 0.0
          %v370 = vadd.f32 %v338, 0.0
          %v371 = vadd.f32 %v339, 0.0
          %v372 = vadd.f32 %v340, 0.0
          %v373 = vadd.f32 %v341, 0.0
          %v374 = vadd.f32 %v342, 0.0
          %v375 = vadd.f32 %v343, 0.0
          %v376 = vadd.f32 %v344, 0.0
          %v377 = vadd.f32 %v345, 0.0
          %v378 = vadd.f32 %v346, 0.0
          %v379 = vadd.f32 %v347, 0.0
          %v380 = vadd.f32 %v348, 0.0
          %v381 = vadd.f32 %v349, 0.0
          %v382 = vadd.f32 %v350, 0.0
          %v383 = vadd.f32 %v351, 0.0
          %v384 = vadd.f32 %v352, 0.0
          %v385 = vadd.f32 %v353, 0.0
          %v386 = vadd.f32 %v354, 0.0
          %v387 = vadd.f32 %v355, 0.0
          %v388 = vadd.f32 %v356, 0.0
          %v389 = vadd.f32 %v357, 0.0
          %v390 = vadd.f32 %v358, 0.0
          %v391 = vadd.f32 %v359, 0.0
          %v392 = vadd.f32 %v360, 0.0
          %v393 = vadd.f32 %v361, 0.0
          %v394 = vadd.f32 %v362, 0.0
          %s395 = scalar_lea.vmem %s0, 32
          %v396 = vld [vmem:[%s395] sm:$0xff]
          %v397 = vld [vmem:[%s395 + $0x8] sm:$0xff]
          %v398 = vld [vmem:[%s395 + $0x10] sm:$0xff]
          %v399 = vld [vmem:[%s395 + $0x18] sm:$0xff]
          %400 = vset.pattern.permute.xlu0 0
          %401 = vperm.xlu0 %400, %v396
          %v402 = vpop.permute.xlu0 %401
          %403 = vset.pattern.permute.xlu0 0
          %404 = vperm.xlu0 %403, %v397
          %v405 = vpop.permute.xlu0 %404
          %406 = vset.pattern.permute.xlu0 0
          %407 = vperm.xlu0 %406, %v398
          %v408 = vpop.permute.xlu0 %407
          %409 = vset.pattern.permute.xlu0 0
          %410 = vperm.xlu0 %409, %v399
          %v411 = vpop.permute.xlu0 %410
          %vm412 = vcmp.eq.s32.totalorder %v402, %v243
          %vm413 = vcmp.eq.s32.totalorder %v402, %v244
          %vm414 = vcmp.eq.s32.totalorder %v402, %v245
          %vm415 = vcmp.eq.s32.totalorder %v402, %v246
          %vm416 = vcmp.eq.s32.totalorder %v402, %v247
          %vm417 = vcmp.eq.s32.totalorder %v402, %v248
          %vm418 = vcmp.eq.s32.totalorder %v402, %v249
          %vm419 = vcmp.eq.s32.totalorder %v402, %v250
          %vm420 = vcmp.eq.s32.totalorder %v405, %v243
          %vm421 = vcmp.eq.s32.totalorder %v405, %v244
          %vm422 = vcmp.eq.s32.totalorder %v405, %v245
          %vm423 = vcmp.eq.s32.totalorder %v405, %v246
          %vm424 = vcmp.eq.s32.totalorder %v405, %v247
          %vm425 = vcmp.eq.s32.totalorder %v405, %v248
          %vm426 = vcmp.eq.s32.totalorder %v405, %v249
          %vm427 = vcmp.eq.s32.totalorder %v405, %v250
          %vm428 = vcmp.eq.s32.totalorder %v408, %v243
          %vm429 = vcmp.eq.s32.totalorder %v408, %v244
          %vm430 = vcmp.eq.s32.totalorder %v408, %v245
          %vm431 = vcmp.eq.s32.totalorder %v408, %v246
          %vm432 = vcmp.eq.s32.totalorder %v408, %v247
          %vm433 = vcmp.eq.s32.totalorder %v408, %v248
          %vm434 = vcmp.eq.s32.totalorder %v408, %v249
          %vm435 = vcmp.eq.s32.totalorder %v408, %v250
          %vm436 = vcmp.eq.s32.totalorder %v411, %v243
          %vm437 = vcmp.eq.s32.totalorder %v411, %v244
          %vm438 = vcmp.eq.s32.totalorder %v411, %v245
          %vm439 = vcmp.eq.s32.totalorder %v411, %v246
          %vm440 = vcmp.eq.s32.totalorder %v411, %v247
          %vm441 = vcmp.eq.s32.totalorder %v411, %v248
          %vm442 = vcmp.eq.s32.totalorder %v411, %v249
          %vm443 = vcmp.eq.s32.totalorder %v411, %v250
          %v444 = vsel %vm412, 1, 0
          %v445 = vsel %vm413, 1, 0
          %v446 = vsel %vm414, 1, 0
          %v447 = vsel %vm415, 1, 0
          %v448 = vsel %vm416, 1, 0
          %v449 = vsel %vm417, 1, 0
          %v450 = vsel %vm418, 1, 0
          %v451 = vsel %vm419, 1, 0
          %v452 = vsel %vm420, 1, 0
          %v453 = vsel %vm421, 1, 0
          %v454 = vsel %vm422, 1, 0
          %v455 = vsel %vm423, 1, 0
          %v456 = vsel %vm424, 1, 0
          %v457 = vsel %vm425, 1, 0
          %v458 = vsel %vm426, 1, 0
          %v459 = vsel %vm427, 1, 0
          %v460 = vsel %vm428, 1, 0
          %v461 = vsel %vm429, 1, 0
          %v462 = vsel %vm430, 1, 0
          %v463 = vsel %vm431, 1, 0
          %v464 = vsel %vm432, 1, 0
          %v465 = vsel %vm433, 1, 0
          %v466 = vsel %vm434, 1, 0
          %v467 = vsel %vm435, 1, 0
          %v468 = vsel %vm436, 1, 0
          %v469 = vsel %vm437, 1, 0
          %v470 = vsel %vm438, 1, 0
          %v471 = vsel %vm439, 1, 0
          %v472 = vsel %vm440, 1, 0
          %v473 = vsel %vm441, 1, 0
          %v474 = vsel %vm442, 1, 0
          %v475 = vsel %vm443, 1, 0
          %v476 = vcvt.s32.f32 %v444
          %v477 = vcvt.s32.f32 %v445
          %v478 = vcvt.s32.f32 %v446
          %v479 = vcvt.s32.f32 %v447
          %v480 = vcvt.s32.f32 %v448
          %v481 = vcvt.s32.f32 %v449
          %v482 = vcvt.s32.f32 %v450
          %v483 = vcvt.s32.f32 %v451
          %v484 = vcvt.s32.f32 %v452
          %v485 = vcvt.s32.f32 %v453
          %v486 = vcvt.s32.f32 %v454
          %v487 = vcvt.s32.f32 %v455
          %v488 = vcvt.s32.f32 %v456
          %v489 = vcvt.s32.f32 %v457
          %v490 = vcvt.s32.f32 %v458
          %v491 = vcvt.s32.f32 %v459
          %v492 = vcvt.s32.f32 %v460
          %v493 = vcvt.s32.f32 %v461
          %v494 = vcvt.s32.f32 %v462
          %v495 = vcvt.s32.f32 %v463
          %v496 = vcvt.s32.f32 %v464
          %v497 = vcvt.s32.f32 %v465
          %v498 = vcvt.s32.f32 %v466
          %v499 = vcvt.s32.f32 %v467
          %v500 = vcvt.s32.f32 %v468
          %v501 = vcvt.s32.f32 %v469
          %v502 = vcvt.s32.f32 %v470
          %v503 = vcvt.s32.f32 %v471
          %v504 = vcvt.s32.f32 %v472
          %v505 = vcvt.s32.f32 %v473
          %v506 = vcvt.s32.f32 %v474
          %v507 = vcvt.s32.f32 %v475
          %v508 = vadd.f32 %v363, %v476
          %v509 = vadd.f32 %v364, %v477
          %v510 = vadd.f32 %v365, %v478
          %v511 = vadd.f32 %v366, %v479
          %v512 = vadd.f32 %v367, %v480
          %v513 = vadd.f32 %v368, %v481
          %v514 = vadd.f32 %v369, %v482
          %v515 = vadd.f32 %v370, %v483
          %v516 = vadd.f32 %v371, %v484
          %v517 = vadd.f32 %v372, %v485
          %v518 = vadd.f32 %v373, %v486
          %v519 = vadd.f32 %v374, %v487
          %v520 = vadd.f32 %v375, %v488
          %v521 = vadd.f32 %v376, %v489
          %v522 = vadd.f32 %v377, %v490
          %v523 = vadd.f32 %v378, %v491
          %v524 = vadd.f32 %v379, %v492
          %v525 = vadd.f32 %v380, %v493
          %v526 = vadd.f32 %v381, %v494
          %v527 = vadd.f32 %v382, %v495
          %v528 = vadd.f32 %v383, %v496
          %v529 = vadd.f32 %v384, %v497
          %v530 = vadd.f32 %v385, %v498
          %v531 = vadd.f32 %v386, %v499
          %v532 = vadd.f32 %v387, %v500
          %v533 = vadd.f32 %v388, %v501
          %v534 = vadd.f32 %v389, %v502
          %v535 = vadd.f32 %v390, %v503
          %v536 = vadd.f32 %v391, %v504
          %v537 = vadd.f32 %v392, %v505
          %v538 = vadd.f32 %v393, %v506
          %v539 = vadd.f32 %v394, %v507
          %s540 = scalar_lea.vmem %s0, 64
          %v541 = vld [vmem:[%s540] sm:$0xff]
          %v542 = vld [vmem:[%s540 + $0x8] sm:$0xff]
          %v543 = vld [vmem:[%s540 + $0x10] sm:$0xff]
          %v544 = vld [vmem:[%s540 + $0x18] sm:$0xff]
          %545 = vset.pattern.permute.xlu0 0
          %546 = vperm.xlu0 %545, %v541
          %v547 = vpop.permute.xlu0 %546
          %548 = vset.pattern.permute.xlu0 0
          %549 = vperm.xlu0 %548, %v542
          %v550 = vpop.permute.xlu0 %549
          %551 = vset.pattern.permute.xlu0 0
          %552 = vperm.xlu0 %551, %v543
          %v553 = vpop.permute.xlu0 %552
          %554 = vset.pattern.permute.xlu0 0
          %555 = vperm.xlu0 %554, %v544
          %v556 = vpop.permute.xlu0 %555
          %vm557 = vcmp.eq.s32.totalorder %v547, %v243
          %vm558 = vcmp.eq.s32.totalorder %v547, %v244
          %vm559 = vcmp.eq.s32.totalorder %v547, %v245
          %vm560 = vcmp.eq.s32.totalorder %v547, %v246
          %vm561 = vcmp.eq.s32.totalorder %v547, %v247
          %vm562 = vcmp.eq.s32.totalorder %v547, %v248
          %vm563 = vcmp.eq.s32.totalorder %v547, %v249
          %vm564 = vcmp.eq.s32.totalorder %v547, %v250
          %vm565 = vcmp.eq.s32.totalorder %v550, %v243
          %vm566 = vcmp.eq.s32.totalorder %v550, %v244
          %vm567 = vcmp.eq.s32.totalorder %v550, %v245
          %vm568 = vcmp.eq.s32.totalorder %v550, %v246
          %vm569 = vcmp.eq.s32.totalorder %v550, %v247
          %vm570 = vcmp.eq.s32.totalorder %v550, %v248
          %vm571 = vcmp.eq.s32.totalorder %v550, %v249
          %vm572 = vcmp.eq.s32.totalorder %v550, %v250
          %vm573 = vcmp.eq.s32.totalorder %v553, %v243
          %vm574 = vcmp.eq.s32.totalorder %v553, %v244
          %vm575 = vcmp.eq.s32.totalorder %v553, %v245
          %vm576 = vcmp.eq.s32.totalorder %v553, %v246
          %vm577 = vcmp.eq.s32.totalorder %v553, %v247
          %vm578 = vcmp.eq.s32.totalorder %v553, %v248
          %vm579 = vcmp.eq.s32.totalorder %v553, %v249
          %vm580 = vcmp.eq.s32.totalorder %v553, %v250
          %vm581 = vcmp.eq.s32.totalorder %v556, %v243
          %vm582 = vcmp.eq.s32.totalorder %v556, %v244
          %vm583 = vcmp.eq.s32.totalorder %v556, %v245
          %vm584 = vcmp.eq.s32.totalorder %v556, %v246
          %vm585 = vcmp.eq.s32.totalorder %v556, %v247
          %vm586 = vcmp.eq.s32.totalorder %v556, %v248
          %vm587 = vcmp.eq.s32.totalorder %v556, %v249
          %vm588 = vcmp.eq.s32.totalorder %v556, %v250
          %v589 = vsel %vm557, 1, 0
          %v590 = vsel %vm558, 1, 0
          %v591 = vsel %vm559, 1, 0
          %v592 = vsel %vm560, 1, 0
          %v593 = vsel %vm561, 1, 0
          %v594 = vsel %vm562, 1, 0
          %v595 = vsel %vm563, 1, 0
          %v596 = vsel %vm564, 1, 0
          %v597 = vsel %vm565, 1, 0
          %v598 = vsel %vm566, 1, 0
          %v599 = vsel %vm567, 1, 0
          %v600 = vsel %vm568, 1, 0
          %v601 = vsel %vm569, 1, 0
          %v602 = vsel %vm570, 1, 0
          %v603 = vsel %vm571, 1, 0
          %v604 = vsel %vm572, 1, 0
          %v605 = vsel %vm573, 1, 0
          %v606 = vsel %vm574, 1, 0
          %v607 = vsel %vm575, 1, 0
          %v608 = vsel %vm576, 1, 0
          %v609 = vsel %vm577, 1, 0
          %v610 = vsel %vm578, 1, 0
          %v611 = vsel %vm579, 1, 0
          %v612 = vsel %vm580, 1, 0
          %v613 = vsel %vm581, 1, 0
          %v614 = vsel %vm582, 1, 0
          %v615 = vsel %vm583, 1, 0
          %v616 = vsel %vm584, 1, 0
          %v617 = vsel %vm585, 1, 0
          %v618 = vsel %vm586, 1, 0
          %v619 = vsel %vm587, 1, 0
          %v620 = vsel %vm588, 1, 0
          %v621 = vcvt.s32.f32 %v589
          %v622 = vcvt.s32.f32 %v590
          %v623 = vcvt.s32.f32 %v591
          %v624 = vcvt.s32.f32 %v592
          %v625 = vcvt.s32.f32 %v593
          %v626 = vcvt.s32.f32 %v594
          %v627 = vcvt.s32.f32 %v595
          %v628 = vcvt.s32.f32 %v596
          %v629 = vcvt.s32.f32 %v597
          %v630 = vcvt.s32.f32 %v598
          %v631 = vcvt.s32.f32 %v599
          %v632 = vcvt.s32.f32 %v600
          %v633 = vcvt.s32.f32 %v601
          %v634 = vcvt.s32.f32 %v602
          %v635 = vcvt.s32.f32 %v603
          %v636 = vcvt.s32.f32 %v604
          %v637 = vcvt.s32.f32 %v605
          %v638 = vcvt.s32.f32 %v606
          %v639 = vcvt.s32.f32 %v607
          %v640 = vcvt.s32.f32 %v608
          %v641 = vcvt.s32.f32 %v609
          %v642 = vcvt.s32.f32 %v610
          %v643 = vcvt.s32.f32 %v611
          %v644 = vcvt.s32.f32 %v612
          %v645 = vcvt.s32.f32 %v613
          %v646 = vcvt.s32.f32 %v614
          %v647 = vcvt.s32.f32 %v615
          %v648 = vcvt.s32.f32 %v616
          %v649 = vcvt.s32.f32 %v617
          %v650 = vcvt.s32.f32 %v618
          %v651 = vcvt.s32.f32 %v619
          %v652 = vcvt.s32.f32 %v620
          %v653 = vadd.f32 %v508, %v621
          %v654 = vadd.f32 %v509, %v622
          %v655 = vadd.f32 %v510, %v623
          %v656 = vadd.f32 %v511, %v624
          %v657 = vadd.f32 %v512, %v625
          %v658 = vadd.f32 %v513, %v626
          %v659 = vadd.f32 %v514, %v627
          %v660 = vadd.f32 %v515, %v628
          %v661 = vadd.f32 %v516, %v629
          %v662 = vadd.f32 %v517, %v630
          %v663 = vadd.f32 %v518, %v631
          %v664 = vadd.f32 %v519, %v632
          %v665 = vadd.f32 %v520, %v633
          %v666 = vadd.f32 %v521, %v634
          %v667 = vadd.f32 %v522, %v635
          %v668 = vadd.f32 %v523, %v636
          %v669 = vadd.f32 %v524, %v637
          %v670 = vadd.f32 %v525, %v638
          %v671 = vadd.f32 %v526, %v639
          %v672 = vadd.f32 %v527, %v640
          %v673 = vadd.f32 %v528, %v641
          %v674 = vadd.f32 %v529, %v642
          %v675 = vadd.f32 %v530, %v643
          %v676 = vadd.f32 %v531, %v644
          %v677 = vadd.f32 %v532, %v645
          %v678 = vadd.f32 %v533, %v646
          %v679 = vadd.f32 %v534, %v647
          %v680 = vadd.f32 %v535, %v648
          %v681 = vadd.f32 %v536, %v649
          %v682 = vadd.f32 %v537, %v650
          %v683 = vadd.f32 %v538, %v651
          %v684 = vadd.f32 %v539, %v652
          %s685 = scalar_lea.vmem %s0, 96
          %v686 = vld [vmem:[%s685] sm:$0xff]
          %v687 = vld [vmem:[%s685 + $0x8] sm:$0xff]
          %v688 = vld [vmem:[%s685 + $0x10] sm:$0xff]
          %v689 = vld [vmem:[%s685 + $0x18] sm:$0xff]
          %690 = vset.pattern.permute.xlu0 0
          %691 = vperm.xlu0 %690, %v686
          %v692 = vpop.permute.xlu0 %691
          %693 = vset.pattern.permute.xlu0 0
          %694 = vperm.xlu0 %693, %v687
          %v695 = vpop.permute.xlu0 %694
          %696 = vset.pattern.permute.xlu0 0
          %697 = vperm.xlu0 %696, %v688
          %v698 = vpop.permute.xlu0 %697
          %699 = vset.pattern.permute.xlu0 0
          %700 = vperm.xlu0 %699, %v689
          %v701 = vpop.permute.xlu0 %700
          %vm702 = vcmp.eq.s32.totalorder %v692, %v243
          %vm703 = vcmp.eq.s32.totalorder %v692, %v244
          %vm704 = vcmp.eq.s32.totalorder %v692, %v245
          %vm705 = vcmp.eq.s32.totalorder %v692, %v246
          %vm706 = vcmp.eq.s32.totalorder %v692, %v247
          %vm707 = vcmp.eq.s32.totalorder %v692, %v248
          %vm708 = vcmp.eq.s32.totalorder %v692, %v249
          %vm709 = vcmp.eq.s32.totalorder %v692, %v250
          %vm710 = vcmp.eq.s32.totalorder %v695, %v243
          %vm711 = vcmp.eq.s32.totalorder %v695, %v244
          %vm712 = vcmp.eq.s32.totalorder %v695, %v245
          %vm713 = vcmp.eq.s32.totalorder %v695, %v246
          %vm714 = vcmp.eq.s32.totalorder %v695, %v247
          %vm715 = vcmp.eq.s32.totalorder %v695, %v248
          %vm716 = vcmp.eq.s32.totalorder %v695, %v249
          %vm717 = vcmp.eq.s32.totalorder %v695, %v250
          %vm718 = vcmp.eq.s32.totalorder %v698, %v243
          %vm719 = vcmp.eq.s32.totalorder %v698, %v244
          %vm720 = vcmp.eq.s32.totalorder %v698, %v245
          %vm721 = vcmp.eq.s32.totalorder %v698, %v246
          %vm722 = vcmp.eq.s32.totalorder %v698, %v247
          %vm723 = vcmp.eq.s32.totalorder %v698, %v248
          %vm724 = vcmp.eq.s32.totalorder %v698, %v249
          %vm725 = vcmp.eq.s32.totalorder %v698, %v250
          %vm726 = vcmp.eq.s32.totalorder %v701, %v243
          %vm727 = vcmp.eq.s32.totalorder %v701, %v244
          %vm728 = vcmp.eq.s32.totalorder %v701, %v245
          %vm729 = vcmp.eq.s32.totalorder %v701, %v246
          %vm730 = vcmp.eq.s32.totalorder %v701, %v247
          %vm731 = vcmp.eq.s32.totalorder %v701, %v248
          %vm732 = vcmp.eq.s32.totalorder %v701, %v249
          %vm733 = vcmp.eq.s32.totalorder %v701, %v250
          %v734 = vsel %vm702, 1, 0
          %v735 = vsel %vm703, 1, 0
          %v736 = vsel %vm704, 1, 0
          %v737 = vsel %vm705, 1, 0
          %v738 = vsel %vm706, 1, 0
          %v739 = vsel %vm707, 1, 0
          %v740 = vsel %vm708, 1, 0
          %v741 = vsel %vm709, 1, 0
          %v742 = vsel %vm710, 1, 0
          %v743 = vsel %vm711, 1, 0
          %v744 = vsel %vm712, 1, 0
          %v745 = vsel %vm713, 1, 0
          %v746 = vsel %vm714, 1, 0
          %v747 = vsel %vm715, 1, 0
          %v748 = vsel %vm716, 1, 0
          %v749 = vsel %vm717, 1, 0
          %v750 = vsel %vm718, 1, 0
          %v751 = vsel %vm719, 1, 0
          %v752 = vsel %vm720, 1, 0
          %v753 = vsel %vm721, 1, 0
          %v754 = vsel %vm722, 1, 0
          %v755 = vsel %vm723, 1, 0
          %v756 = vsel %vm724, 1, 0
          %v757 = vsel %vm725, 1, 0
          %v758 = vsel %vm726, 1, 0
          %v759 = vsel %vm727, 1, 0
          %v760 = vsel %vm728, 1, 0
          %v761 = vsel %vm729, 1, 0
          %v762 = vsel %vm730, 1, 0
          %v763 = vsel %vm731, 1, 0
          %v764 = vsel %vm732, 1, 0
          %v765 = vsel %vm733, 1, 0
          %v766 = vcvt.s32.f32 %v734
          %v767 = vcvt.s32.f32 %v735
          %v768 = vcvt.s32.f32 %v736
          %v769 = vcvt.s32.f32 %v737
          %v770 = vcvt.s32.f32 %v738
          %v771 = vcvt.s32.f32 %v739
          %v772 = vcvt.s32.f32 %v740
          %v773 = vcvt.s32.f32 %v741
          %v774 = vcvt.s32.f32 %v742
          %v775 = vcvt.s32.f32 %v743
          %v776 = vcvt.s32.f32 %v744
          %v777 = vcvt.s32.f32 %v745
          %v778 = vcvt.s32.f32 %v746
          %v779 = vcvt.s32.f32 %v747
          %v780 = vcvt.s32.f32 %v748
          %v781 = vcvt.s32.f32 %v749
          %v782 = vcvt.s32.f32 %v750
          %v783 = vcvt.s32.f32 %v751
          %v784 = vcvt.s32.f32 %v752
          %v785 = vcvt.s32.f32 %v753
          %v786 = vcvt.s32.f32 %v754
          %v787 = vcvt.s32.f32 %v755
          %v788 = vcvt.s32.f32 %v756
          %v789 = vcvt.s32.f32 %v757
          %v790 = vcvt.s32.f32 %v758
          %v791 = vcvt.s32.f32 %v759
          %v792 = vcvt.s32.f32 %v760
          %v793 = vcvt.s32.f32 %v761
          %v794 = vcvt.s32.f32 %v762
          %v795 = vcvt.s32.f32 %v763
          %v796 = vcvt.s32.f32 %v764
          %v797 = vcvt.s32.f32 %v765
          %v798 = vadd.f32 %v653, %v766
          %v799 = vadd.f32 %v654, %v767
          %v800 = vadd.f32 %v655, %v768
          %v801 = vadd.f32 %v656, %v769
          %v802 = vadd.f32 %v657, %v770
          %v803 = vadd.f32 %v658, %v771
          %v804 = vadd.f32 %v659, %v772
          %v805 = vadd.f32 %v660, %v773
          %v806 = vadd.f32 %v661, %v774
          %v807 = vadd.f32 %v662, %v775
          %v808 = vadd.f32 %v663, %v776
          %v809 = vadd.f32 %v664, %v777
          %v810 = vadd.f32 %v665, %v778
          %v811 = vadd.f32 %v666, %v779
          %v812 = vadd.f32 %v667, %v780
          %v813 = vadd.f32 %v668, %v781
          %v814 = vadd.f32 %v669, %v782
          %v815 = vadd.f32 %v670, %v783
          %v816 = vadd.f32 %v671, %v784
          %v817 = vadd.f32 %v672, %v785
          %v818 = vadd.f32 %v673, %v786
          %v819 = vadd.f32 %v674, %v787
          %v820 = vadd.f32 %v675, %v788
          %v821 = vadd.f32 %v676, %v789
          %v822 = vadd.f32 %v677, %v790
          %v823 = vadd.f32 %v678, %v791
          %v824 = vadd.f32 %v679, %v792
          %v825 = vadd.f32 %v680, %v793
          %v826 = vadd.f32 %v681, %v794
          %v827 = vadd.f32 %v682, %v795
          %v828 = vadd.f32 %v683, %v796
          %v829 = vadd.f32 %v684, %v797
          %s830 = scalar_lea.vmem %s0, 128
          %v831 = vld [vmem:[%s830] sm:$0xff]
          %v832 = vld [vmem:[%s830 + $0x8] sm:$0xff]
          %v833 = vld [vmem:[%s830 + $0x10] sm:$0xff]
          %v834 = vld [vmem:[%s830 + $0x18] sm:$0xff]
          %835 = vset.pattern.permute.xlu0 0
          %836 = vperm.xlu0 %835, %v831
          %v837 = vpop.permute.xlu0 %836
          %838 = vset.pattern.permute.xlu0 0
          %839 = vperm.xlu0 %838, %v832
          %v840 = vpop.permute.xlu0 %839
          %841 = vset.pattern.permute.xlu0 0
          %842 = vperm.xlu0 %841, %v833
          %v843 = vpop.permute.xlu0 %842
          %844 = vset.pattern.permute.xlu0 0
          %845 = vperm.xlu0 %844, %v834
          %v846 = vpop.permute.xlu0 %845
          %vm847 = vcmp.eq.s32.totalorder %v837, %v243
          %vm848 = vcmp.eq.s32.totalorder %v837, %v244
          %vm849 = vcmp.eq.s32.totalorder %v837, %v245
          %vm850 = vcmp.eq.s32.totalorder %v837, %v246
          %vm851 = vcmp.eq.s32.totalorder %v837, %v247
          %vm852 = vcmp.eq.s32.totalorder %v837, %v248
          %vm853 = vcmp.eq.s32.totalorder %v837, %v249
          %vm854 = vcmp.eq.s32.totalorder %v837, %v250
          %vm855 = vcmp.eq.s32.totalorder %v840, %v243
          %vm856 = vcmp.eq.s32.totalorder %v840, %v244
          %vm857 = vcmp.eq.s32.totalorder %v840, %v245
          %vm858 = vcmp.eq.s32.totalorder %v840, %v246
          %vm859 = vcmp.eq.s32.totalorder %v840, %v247
          %vm860 = vcmp.eq.s32.totalorder %v840, %v248
          %vm861 = vcmp.eq.s32.totalorder %v840, %v249
          %vm862 = vcmp.eq.s32.totalorder %v840, %v250
          %vm863 = vcmp.eq.s32.totalorder %v843, %v243
          %vm864 = vcmp.eq.s32.totalorder %v843, %v244
          %vm865 = vcmp.eq.s32.totalorder %v843, %v245
          %vm866 = vcmp.eq.s32.totalorder %v843, %v246
          %vm867 = vcmp.eq.s32.totalorder %v843, %v247
          %vm868 = vcmp.eq.s32.totalorder %v843, %v248
          %vm869 = vcmp.eq.s32.totalorder %v843, %v249
          %vm870 = vcmp.eq.s32.totalorder %v843, %v250
          %vm871 = vcmp.eq.s32.totalorder %v846, %v243
          %vm872 = vcmp.eq.s32.totalorder %v846, %v244
          %vm873 = vcmp.eq.s32.totalorder %v846, %v245
          %vm874 = vcmp.eq.s32.totalorder %v846, %v246
          %vm875 = vcmp.eq.s32.totalorder %v846, %v247
          %vm876 = vcmp.eq.s32.totalorder %v846, %v248
          %vm877 = vcmp.eq.s32.totalorder %v846, %v249
          %vm878 = vcmp.eq.s32.totalorder %v846, %v250
          %v879 = vsel %vm847, 1, 0
          %v880 = vsel %vm848, 1, 0
          %v881 = vsel %vm849, 1, 0
          %v882 = vsel %vm850, 1, 0
          %v883 = vsel %vm851, 1, 0
          %v884 = vsel %vm852, 1, 0
          %v885 = vsel %vm853, 1, 0
          %v886 = vsel %vm854, 1, 0
          %v887 = vsel %vm855, 1, 0
          %v888 = vsel %vm856, 1, 0
          %v889 = vsel %vm857, 1, 0
          %v890 = vsel %vm858, 1, 0
          %v891 = vsel %vm859, 1, 0
          %v892 = vsel %vm860, 1, 0
          %v893 = vsel %vm861, 1, 0
          %v894 = vsel %vm862, 1, 0
          %v895 = vsel %vm863, 1, 0
          %v896 = vsel %vm864, 1, 0
          %v897 = vsel %vm865, 1, 0
          %v898 = vsel %vm866, 1, 0
          %v899 = vsel %vm867, 1, 0
          %v900 = vsel %vm868, 1, 0
          %v901 = vsel %vm869, 1, 0
          %v902 = vsel %vm870, 1, 0
          %v903 = vsel %vm871, 1, 0
          %v904 = vsel %vm872, 1, 0
          %v905 = vsel %vm873, 1, 0
          %v906 = vsel %vm874, 1, 0
          %v907 = vsel %vm875, 1, 0
          %v908 = vsel %vm876, 1, 0
          %v909 = vsel %vm877, 1, 0
          %v910 = vsel %vm878, 1, 0
          %v911 = vcvt.s32.f32 %v879
          %v912 = vcvt.s32.f32 %v880
          %v913 = vcvt.s32.f32 %v881
          %v914 = vcvt.s32.f32 %v882
          %v915 = vcvt.s32.f32 %v883
          %v916 = vcvt.s32.f32 %v884
          %v917 = vcvt.s32.f32 %v885
          %v918 = vcvt.s32.f32 %v886
          %v919 = vcvt.s32.f32 %v887
          %v920 = vcvt.s32.f32 %v888
          %v921 = vcvt.s32.f32 %v889
          %v922 = vcvt.s32.f32 %v890
          %v923 = vcvt.s32.f32 %v891
          %v924 = vcvt.s32.f32 %v892
          %v925 = vcvt.s32.f32 %v893
          %v926 = vcvt.s32.f32 %v894
          %v927 = vcvt.s32.f32 %v895
          %v928 = vcvt.s32.f32 %v896
          %v929 = vcvt.s32.f32 %v897
          %v930 = vcvt.s32.f32 %v898
          %v931 = vcvt.s32.f32 %v899
          %v932 = vcvt.s32.f32 %v900
          %v933 = vcvt.s32.f32 %v901
          %v934 = vcvt.s32.f32 %v902
          %v935 = vcvt.s32.f32 %v903
          %v936 = vcvt.s32.f32 %v904
          %v937 = vcvt.s32.f32 %v905
          %v938 = vcvt.s32.f32 %v906
          %v939 = vcvt.s32.f32 %v907
          %v940 = vcvt.s32.f32 %v908
          %v941 = vcvt.s32.f32 %v909
          %v942 = vcvt.s32.f32 %v910
          %v943 = vadd.f32 %v798, %v911
          %v944 = vadd.f32 %v799, %v912
          %v945 = vadd.f32 %v800, %v913
          %v946 = vadd.f32 %v801, %v914
          %v947 = vadd.f32 %v802, %v915
          %v948 = vadd.f32 %v803, %v916
          %v949 = vadd.f32 %v804, %v917
          %v950 = vadd.f32 %v805, %v918
          %v951 = vadd.f32 %v806, %v919
          %v952 = vadd.f32 %v807, %v920
          %v953 = vadd.f32 %v808, %v921
          %v954 = vadd.f32 %v809, %v922
          %v955 = vadd.f32 %v810, %v923
          %v956 = vadd.f32 %v811, %v924
          %v957 = vadd.f32 %v812, %v925
          %v958 = vadd.f32 %v813, %v926
          %v959 = vadd.f32 %v814, %v927
          %v960 = vadd.f32 %v815, %v928
          %v961 = vadd.f32 %v816, %v929
          %v962 = vadd.f32 %v817, %v930
          %v963 = vadd.f32 %v818, %v931
          %v964 = vadd.f32 %v819, %v932
          %v965 = vadd.f32 %v820, %v933
          %v966 = vadd.f32 %v821, %v934
          %v967 = vadd.f32 %v822, %v935
          %v968 = vadd.f32 %v823, %v936
          %v969 = vadd.f32 %v824, %v937
          %v970 = vadd.f32 %v825, %v938
          %v971 = vadd.f32 %v826, %v939
          %v972 = vadd.f32 %v827, %v940
          %v973 = vadd.f32 %v828, %v941
          %v974 = vadd.f32 %v829, %v942
          %s975 = scalar_lea.vmem %s0, 160
          %v976 = vld [vmem:[%s975] sm:$0xff]
          %v977 = vld [vmem:[%s975 + $0x8] sm:$0xff]
          %v978 = vld [vmem:[%s975 + $0x10] sm:$0xff]
          %v979 = vld [vmem:[%s975 + $0x18] sm:$0xff]
          %980 = vset.pattern.permute.xlu0 0
          %981 = vperm.xlu0 %980, %v976
          %v982 = vpop.permute.xlu0 %981
          %983 = vset.pattern.permute.xlu0 0
          %984 = vperm.xlu0 %983, %v977
          %v985 = vpop.permute.xlu0 %984
          %986 = vset.pattern.permute.xlu0 0
          %987 = vperm.xlu0 %986, %v978
          %v988 = vpop.permute.xlu0 %987
          %989 = vset.pattern.permute.xlu0 0
          %990 = vperm.xlu0 %989, %v979
          %v991 = vpop.permute.xlu0 %990
          %vm992 = vcmp.eq.s32.totalorder %v982, %v243
          %vm993 = vcmp.eq.s32.totalorder %v982, %v244
          %vm994 = vcmp.eq.s32.totalorder %v982, %v245
          %vm995 = vcmp.eq.s32.totalorder %v982, %v246
          %vm996 = vcmp.eq.s32.totalorder %v982, %v247
          %vm997 = vcmp.eq.s32.totalorder %v982, %v248
          %vm998 = vcmp.eq.s32.totalorder %v982, %v249
          %vm999 = vcmp.eq.s32.totalorder %v982, %v250
          %vm1000 = vcmp.eq.s32.totalorder %v985, %v243
          %vm1001 = vcmp.eq.s32.totalorder %v985, %v244
          %vm1002 = vcmp.eq.s32.totalorder %v985, %v245
          %vm1003 = vcmp.eq.s32.totalorder %v985, %v246
          %vm1004 = vcmp.eq.s32.totalorder %v985, %v247
          %vm1005 = vcmp.eq.s32.totalorder %v985, %v248
          %vm1006 = vcmp.eq.s32.totalorder %v985, %v249
          %vm1007 = vcmp.eq.s32.totalorder %v985, %v250
          %vm1008 = vcmp.eq.s32.totalorder %v988, %v243
          %vm1009 = vcmp.eq.s32.totalorder %v988, %v244
          %vm1010 = vcmp.eq.s32.totalorder %v988, %v245
          %vm1011 = vcmp.eq.s32.totalorder %v988, %v246
          %vm1012 = vcmp.eq.s32.totalorder %v988, %v247
          %vm1013 = vcmp.eq.s32.totalorder %v988, %v248
          %vm1014 = vcmp.eq.s32.totalorder %v988, %v249
          %vm1015 = vcmp.eq.s32.totalorder %v988, %v250
          %vm1016 = vcmp.eq.s32.totalorder %v991, %v243
          %vm1017 = vcmp.eq.s32.totalorder %v991, %v244
          %vm1018 = vcmp.eq.s32.totalorder %v991, %v245
          %vm1019 = vcmp.eq.s32.totalorder %v991, %v246
          %vm1020 = vcmp.eq.s32.totalorder %v991, %v247
          %vm1021 = vcmp.eq.s32.totalorder %v991, %v248
          %vm1022 = vcmp.eq.s32.totalorder %v991, %v249
          %vm1023 = vcmp.eq.s32.totalorder %v991, %v250
          %v1024 = vsel %vm992, 1, 0
          %v1025 = vsel %vm993, 1, 0
          %v1026 = vsel %vm994, 1, 0
          %v1027 = vsel %vm995, 1, 0
          %v1028 = vsel %vm996, 1, 0
          %v1029 = vsel %vm997, 1, 0
          %v1030 = vsel %vm998, 1, 0
          %v1031 = vsel %vm999, 1, 0
          %v1032 = vsel %vm1000, 1, 0
          %v1033 = vsel %vm1001, 1, 0
          %v1034 = vsel %vm1002, 1, 0
          %v1035 = vsel %vm1003, 1, 0
          %v1036 = vsel %vm1004, 1, 0
          %v1037 = vsel %vm1005, 1, 0
          %v1038 = vsel %vm1006, 1, 0
          %v1039 = vsel %vm1007, 1, 0
          %v1040 = vsel %vm1008, 1, 0
          %v1041 = vsel %vm1009, 1, 0
          %v1042 = vsel %vm1010, 1, 0
          %v1043 = vsel %vm1011, 1, 0
          %v1044 = vsel %vm1012, 1, 0
          %v1045 = vsel %vm1013, 1, 0
          %v1046 = vsel %vm1014, 1, 0
          %v1047 = vsel %vm1015, 1, 0
          %v1048 = vsel %vm1016, 1, 0
          %v1049 = vsel %vm1017, 1, 0
          %v1050 = vsel %vm1018, 1, 0
          %v1051 = vsel %vm1019, 1, 0
          %v1052 = vsel %vm1020, 1, 0
          %v1053 = vsel %vm1021, 1, 0
          %v1054 = vsel %vm1022, 1, 0
          %v1055 = vsel %vm1023, 1, 0
          %v1056 = vcvt.s32.f32 %v1024
          %v1057 = vcvt.s32.f32 %v1025
          %v1058 = vcvt.s32.f32 %v1026
          %v1059 = vcvt.s32.f32 %v1027
          %v1060 = vcvt.s32.f32 %v1028
          %v1061 = vcvt.s32.f32 %v1029
          %v1062 = vcvt.s32.f32 %v1030
          %v1063 = vcvt.s32.f32 %v1031
          %v1064 = vcvt.s32.f32 %v1032
          %v1065 = vcvt.s32.f32 %v1033
          %v1066 = vcvt.s32.f32 %v1034
          %v1067 = vcvt.s32.f32 %v1035
          %v1068 = vcvt.s32.f32 %v1036
          %v1069 = vcvt.s32.f32 %v1037
          %v1070 = vcvt.s32.f32 %v1038
          %v1071 = vcvt.s32.f32 %v1039
          %v1072 = vcvt.s32.f32 %v1040
          %v1073 = vcvt.s32.f32 %v1041
          %v1074 = vcvt.s32.f32 %v1042
          %v1075 = vcvt.s32.f32 %v1043
          %v1076 = vcvt.s32.f32 %v1044
          %v1077 = vcvt.s32.f32 %v1045
          %v1078 = vcvt.s32.f32 %v1046
          %v1079 = vcvt.s32.f32 %v1047
          %v1080 = vcvt.s32.f32 %v1048
          %v1081 = vcvt.s32.f32 %v1049
          %v1082 = vcvt.s32.f32 %v1050
          %v1083 = vcvt.s32.f32 %v1051
          %v1084 = vcvt.s32.f32 %v1052
          %v1085 = vcvt.s32.f32 %v1053
          %v1086 = vcvt.s32.f32 %v1054
          %v1087 = vcvt.s32.f32 %v1055
          %v1088 = vadd.f32 %v943, %v1056
          %v1089 = vadd.f32 %v944, %v1057
          %v1090 = vadd.f32 %v945, %v1058
          %v1091 = vadd.f32 %v946, %v1059
          %v1092 = vadd.f32 %v947, %v1060
          %v1093 = vadd.f32 %v948, %v1061
          %v1094 = vadd.f32 %v949, %v1062
          %v1095 = vadd.f32 %v950, %v1063
          %v1096 = vadd.f32 %v951, %v1064
          %v1097 = vadd.f32 %v952, %v1065
          %v1098 = vadd.f32 %v953, %v1066
          %v1099 = vadd.f32 %v954, %v1067
          %v1100 = vadd.f32 %v955, %v1068
          %v1101 = vadd.f32 %v956, %v1069
          %v1102 = vadd.f32 %v957, %v1070
          %v1103 = vadd.f32 %v958, %v1071
          %v1104 = vadd.f32 %v959, %v1072
          %v1105 = vadd.f32 %v960, %v1073
          %v1106 = vadd.f32 %v961, %v1074
          %v1107 = vadd.f32 %v962, %v1075
          %v1108 = vadd.f32 %v963, %v1076
          %v1109 = vadd.f32 %v964, %v1077
          %v1110 = vadd.f32 %v965, %v1078
          %v1111 = vadd.f32 %v966, %v1079
          %v1112 = vadd.f32 %v967, %v1080
          %v1113 = vadd.f32 %v968, %v1081
          %v1114 = vadd.f32 %v969, %v1082
          %v1115 = vadd.f32 %v970, %v1083
          %v1116 = vadd.f32 %v971, %v1084
          %v1117 = vadd.f32 %v972, %v1085
          %v1118 = vadd.f32 %v973, %v1086
          %v1119 = vadd.f32 %v974, %v1087
          %s1120 = scalar_lea.vmem %s0, 192
          %v1121 = vld [vmem:[%s1120] sm:$0xff]
          %v1122 = vld [vmem:[%s1120 + $0x8] sm:$0xff]
          %v1123 = vld [vmem:[%s1120 + $0x10] sm:$0xff]
          %v1124 = vld [vmem:[%s1120 + $0x18] sm:$0xff]
          %1125 = vset.pattern.permute.xlu0 0
          %1126 = vperm.xlu0 %1125, %v1121
          %v1127 = vpop.permute.xlu0 %1126
          %1128 = vset.pattern.permute.xlu0 0
          %1129 = vperm.xlu0 %1128, %v1122
          %v1130 = vpop.permute.xlu0 %1129
          %1131 = vset.pattern.permute.xlu0 0
          %1132 = vperm.xlu0 %1131, %v1123
          %v1133 = vpop.permute.xlu0 %1132
          %1134 = vset.pattern.permute.xlu0 0
          %1135 = vperm.xlu0 %1134, %v1124
          %v1136 = vpop.permute.xlu0 %1135
          %vm1137 = vcmp.eq.s32.totalorder %v1127, %v243
          %vm1138 = vcmp.eq.s32.totalorder %v1127, %v244
          %vm1139 = vcmp.eq.s32.totalorder %v1127, %v245
          %vm1140 = vcmp.eq.s32.totalorder %v1127, %v246
          %vm1141 = vcmp.eq.s32.totalorder %v1127, %v247
          %vm1142 = vcmp.eq.s32.totalorder %v1127, %v248
          %vm1143 = vcmp.eq.s32.totalorder %v1127, %v249
          %vm1144 = vcmp.eq.s32.totalorder %v1127, %v250
          %vm1145 = vcmp.eq.s32.totalorder %v1130, %v243
          %vm1146 = vcmp.eq.s32.totalorder %v1130, %v244
          %vm1147 = vcmp.eq.s32.totalorder %v1130, %v245
          %vm1148 = vcmp.eq.s32.totalorder %v1130, %v246
          %vm1149 = vcmp.eq.s32.totalorder %v1130, %v247
          %vm1150 = vcmp.eq.s32.totalorder %v1130, %v248
          %vm1151 = vcmp.eq.s32.totalorder %v1130, %v249
          %vm1152 = vcmp.eq.s32.totalorder %v1130, %v250
          %vm1153 = vcmp.eq.s32.totalorder %v1133, %v243
          %vm1154 = vcmp.eq.s32.totalorder %v1133, %v244
          %vm1155 = vcmp.eq.s32.totalorder %v1133, %v245
          %vm1156 = vcmp.eq.s32.totalorder %v1133, %v246
          %vm1157 = vcmp.eq.s32.totalorder %v1133, %v247
          %vm1158 = vcmp.eq.s32.totalorder %v1133, %v248
          %vm1159 = vcmp.eq.s32.totalorder %v1133, %v249
          %vm1160 = vcmp.eq.s32.totalorder %v1133, %v250
          %vm1161 = vcmp.eq.s32.totalorder %v1136, %v243
          %vm1162 = vcmp.eq.s32.totalorder %v1136, %v244
          %vm1163 = vcmp.eq.s32.totalorder %v1136, %v245
          %vm1164 = vcmp.eq.s32.totalorder %v1136, %v246
          %vm1165 = vcmp.eq.s32.totalorder %v1136, %v247
          %vm1166 = vcmp.eq.s32.totalorder %v1136, %v248
          %vm1167 = vcmp.eq.s32.totalorder %v1136, %v249
          %vm1168 = vcmp.eq.s32.totalorder %v1136, %v250
          %v1169 = vsel %vm1137, 1, 0
          %v1170 = vsel %vm1138, 1, 0
          %v1171 = vsel %vm1139, 1, 0
          %v1172 = vsel %vm1140, 1, 0
          %v1173 = vsel %vm1141, 1, 0
          %v1174 = vsel %vm1142, 1, 0
          %v1175 = vsel %vm1143, 1, 0
          %v1176 = vsel %vm1144, 1, 0
          %v1177 = vsel %vm1145, 1, 0
          %v1178 = vsel %vm1146, 1, 0
          %v1179 = vsel %vm1147, 1, 0
          %v1180 = vsel %vm1148, 1, 0
          %v1181 = vsel %vm1149, 1, 0
          %v1182 = vsel %vm1150, 1, 0
          %v1183 = vsel %vm1151, 1, 0
          %v1184 = vsel %vm1152, 1, 0
          %v1185 = vsel %vm1153, 1, 0
          %v1186 = vsel %vm1154, 1, 0
          %v1187 = vsel %vm1155, 1, 0
          %v1188 = vsel %vm1156, 1, 0
          %v1189 = vsel %vm1157, 1, 0
          %v1190 = vsel %vm1158, 1, 0
          %v1191 = vsel %vm1159, 1, 0
          %v1192 = vsel %vm1160, 1, 0
          %v1193 = vsel %vm1161, 1, 0
          %v1194 = vsel %vm1162, 1, 0
          %v1195 = vsel %vm1163, 1, 0
          %v1196 = vsel %vm1164, 1, 0
          %v1197 = vsel %vm1165, 1, 0
          %v1198 = vsel %vm1166, 1, 0
          %v1199 = vsel %vm1167, 1, 0
          %v1200 = vsel %vm1168, 1, 0
          %v1201 = vcvt.s32.f32 %v1169
          %v1202 = vcvt.s32.f32 %v1170
          %v1203 = vcvt.s32.f32 %v1171
          %v1204 = vcvt.s32.f32 %v1172
          %v1205 = vcvt.s32.f32 %v1173
          %v1206 = vcvt.s32.f32 %v1174
          %v1207 = vcvt.s32.f32 %v1175
          %v1208 = vcvt.s32.f32 %v1176
          %v1209 = vcvt.s32.f32 %v1177
          %v1210 = vcvt.s32.f32 %v1178
          %v1211 = vcvt.s32.f32 %v1179
          %v1212 = vcvt.s32.f32 %v1180
          %v1213 = vcvt.s32.f32 %v1181
          %v1214 = vcvt.s32.f32 %v1182
          %v1215 = vcvt.s32.f32 %v1183
          %v1216 = vcvt.s32.f32 %v1184
          %v1217 = vcvt.s32.f32 %v1185
          %v1218 = vcvt.s32.f32 %v1186
          %v1219 = vcvt.s32.f32 %v1187
          %v1220 = vcvt.s32.f32 %v1188
          %v1221 = vcvt.s32.f32 %v1189
          %v1222 = vcvt.s32.f32 %v1190
          %v1223 = vcvt.s32.f32 %v1191
          %v1224 = vcvt.s32.f32 %v1192
          %v1225 = vcvt.s32.f32 %v1193
          %v1226 = vcvt.s32.f32 %v1194
          %v1227 = vcvt.s32.f32 %v1195
          %v1228 = vcvt.s32.f32 %v1196
          %v1229 = vcvt.s32.f32 %v1197
          %v1230 = vcvt.s32.f32 %v1198
          %v1231 = vcvt.s32.f32 %v1199
          %v1232 = vcvt.s32.f32 %v1200
          %v1233 = vadd.f32 %v1088, %v1201
          %v1234 = vadd.f32 %v1089, %v1202
          %v1235 = vadd.f32 %v1090, %v1203
          %v1236 = vadd.f32 %v1091, %v1204
          %v1237 = vadd.f32 %v1092, %v1205
          %v1238 = vadd.f32 %v1093, %v1206
          %v1239 = vadd.f32 %v1094, %v1207
          %v1240 = vadd.f32 %v1095, %v1208
          %v1241 = vadd.f32 %v1096, %v1209
          %v1242 = vadd.f32 %v1097, %v1210
          %v1243 = vadd.f32 %v1098, %v1211
          %v1244 = vadd.f32 %v1099, %v1212
          %v1245 = vadd.f32 %v1100, %v1213
          %v1246 = vadd.f32 %v1101, %v1214
          %v1247 = vadd.f32 %v1102, %v1215
          %v1248 = vadd.f32 %v1103, %v1216
          %v1249 = vadd.f32 %v1104, %v1217
          %v1250 = vadd.f32 %v1105, %v1218
          %v1251 = vadd.f32 %v1106, %v1219
          %v1252 = vadd.f32 %v1107, %v1220
          %v1253 = vadd.f32 %v1108, %v1221
          %v1254 = vadd.f32 %v1109, %v1222
          %v1255 = vadd.f32 %v1110, %v1223
          %v1256 = vadd.f32 %v1111, %v1224
          %v1257 = vadd.f32 %v1112, %v1225
          %v1258 = vadd.f32 %v1113, %v1226
          %v1259 = vadd.f32 %v1114, %v1227
          %v1260 = vadd.f32 %v1115, %v1228
          %v1261 = vadd.f32 %v1116, %v1229
          %v1262 = vadd.f32 %v1117, %v1230
          %v1263 = vadd.f32 %v1118, %v1231
          %v1264 = vadd.f32 %v1119, %v1232
          %s1265 = scalar_lea.vmem %s0, 224
          %v1266 = vld [vmem:[%s1265] sm:$0xff]
          %v1267 = vld [vmem:[%s1265 + $0x8] sm:$0xff]
          %v1268 = vld [vmem:[%s1265 + $0x10] sm:$0xff]
          %v1269 = vld [vmem:[%s1265 + $0x18] sm:$0xff]
          %1270 = vset.pattern.permute.xlu0 0
          %1271 = vperm.xlu0 %1270, %v1266
          %v1272 = vpop.permute.xlu0 %1271
          %1273 = vset.pattern.permute.xlu0 0
          %1274 = vperm.xlu0 %1273, %v1267
          %v1275 = vpop.permute.xlu0 %1274
          %1276 = vset.pattern.permute.xlu0 0
          %1277 = vperm.xlu0 %1276, %v1268
          %v1278 = vpop.permute.xlu0 %1277
          %1279 = vset.pattern.permute.xlu0 0
          %1280 = vperm.xlu0 %1279, %v1269
          %v1281 = vpop.permute.xlu0 %1280
          %vm1282 = vcmp.eq.s32.totalorder %v1272, %v243
          %vm1283 = vcmp.eq.s32.totalorder %v1272, %v244
          %vm1284 = vcmp.eq.s32.totalorder %v1272, %v245
          %vm1285 = vcmp.eq.s32.totalorder %v1272, %v246
          %vm1286 = vcmp.eq.s32.totalorder %v1272, %v247
          %vm1287 = vcmp.eq.s32.totalorder %v1272, %v248
          %vm1288 = vcmp.eq.s32.totalorder %v1272, %v249
          %vm1289 = vcmp.eq.s32.totalorder %v1272, %v250
          %vm1290 = vcmp.eq.s32.totalorder %v1275, %v243
          %vm1291 = vcmp.eq.s32.totalorder %v1275, %v244
          %vm1292 = vcmp.eq.s32.totalorder %v1275, %v245
          %vm1293 = vcmp.eq.s32.totalorder %v1275, %v246
          %vm1294 = vcmp.eq.s32.totalorder %v1275, %v247
          %vm1295 = vcmp.eq.s32.totalorder %v1275, %v248
          %vm1296 = vcmp.eq.s32.totalorder %v1275, %v249
          %vm1297 = vcmp.eq.s32.totalorder %v1275, %v250
          %vm1298 = vcmp.eq.s32.totalorder %v1278, %v243
          %vm1299 = vcmp.eq.s32.totalorder %v1278, %v244
          %vm1300 = vcmp.eq.s32.totalorder %v1278, %v245
          %vm1301 = vcmp.eq.s32.totalorder %v1278, %v246
          %vm1302 = vcmp.eq.s32.totalorder %v1278, %v247
          %vm1303 = vcmp.eq.s32.totalorder %v1278, %v248
          %vm1304 = vcmp.eq.s32.totalorder %v1278, %v249
          %vm1305 = vcmp.eq.s32.totalorder %v1278, %v250
          %vm1306 = vcmp.eq.s32.totalorder %v1281, %v243
          %vm1307 = vcmp.eq.s32.totalorder %v1281, %v244
          %vm1308 = vcmp.eq.s32.totalorder %v1281, %v245
          %vm1309 = vcmp.eq.s32.totalorder %v1281, %v246
          %vm1310 = vcmp.eq.s32.totalorder %v1281, %v247
          %vm1311 = vcmp.eq.s32.totalorder %v1281, %v248
          %vm1312 = vcmp.eq.s32.totalorder %v1281, %v249
          %vm1313 = vcmp.eq.s32.totalorder %v1281, %v250
          %v1314 = vsel %vm1282, 1, 0
          %v1315 = vsel %vm1283, 1, 0
          %v1316 = vsel %vm1284, 1, 0
          %v1317 = vsel %vm1285, 1, 0
          %v1318 = vsel %vm1286, 1, 0
          %v1319 = vsel %vm1287, 1, 0
          %v1320 = vsel %vm1288, 1, 0
          %v1321 = vsel %vm1289, 1, 0
          %v1322 = vsel %vm1290, 1, 0
          %v1323 = vsel %vm1291, 1, 0
          %v1324 = vsel %vm1292, 1, 0
          %v1325 = vsel %vm1293, 1, 0
          %v1326 = vsel %vm1294, 1, 0
          %v1327 = vsel %vm1295, 1, 0
          %v1328 = vsel %vm1296, 1, 0
          %v1329 = vsel %vm1297, 1, 0
          %v1330 = vsel %vm1298, 1, 0
          %v1331 = vsel %vm1299, 1, 0
          %v1332 = vsel %vm1300, 1, 0
          %v1333 = vsel %vm1301, 1, 0
          %v1334 = vsel %vm1302, 1, 0
          %v1335 = vsel %vm1303, 1, 0
          %v1336 = vsel %vm1304, 1, 0
          %v1337 = vsel %vm1305, 1, 0
          %v1338 = vsel %vm1306, 1, 0
          %v1339 = vsel %vm1307, 1, 0
          %v1340 = vsel %vm1308, 1, 0
          %v1341 = vsel %vm1309, 1, 0
          %v1342 = vsel %vm1310, 1, 0
          %v1343 = vsel %vm1311, 1, 0
          %v1344 = vsel %vm1312, 1, 0
          %v1345 = vsel %vm1313, 1, 0
          %v1346 = vcvt.s32.f32 %v1314
          %v1347 = vcvt.s32.f32 %v1315
          %v1348 = vcvt.s32.f32 %v1316
          %v1349 = vcvt.s32.f32 %v1317
          %v1350 = vcvt.s32.f32 %v1318
          %v1351 = vcvt.s32.f32 %v1319
          %v1352 = vcvt.s32.f32 %v1320
          %v1353 = vcvt.s32.f32 %v1321
          %v1354 = vcvt.s32.f32 %v1322
          %v1355 = vcvt.s32.f32 %v1323
          %v1356 = vcvt.s32.f32 %v1324
          %v1357 = vcvt.s32.f32 %v1325
          %v1358 = vcvt.s32.f32 %v1326
          %v1359 = vcvt.s32.f32 %v1327
          %v1360 = vcvt.s32.f32 %v1328
          %v1361 = vcvt.s32.f32 %v1329
          %v1362 = vcvt.s32.f32 %v1330
          %v1363 = vcvt.s32.f32 %v1331
          %v1364 = vcvt.s32.f32 %v1332
          %v1365 = vcvt.s32.f32 %v1333
          %v1366 = vcvt.s32.f32 %v1334
          %v1367 = vcvt.s32.f32 %v1335
          %v1368 = vcvt.s32.f32 %v1336
          %v1369 = vcvt.s32.f32 %v1337
          %v1370 = vcvt.s32.f32 %v1338
          %v1371 = vcvt.s32.f32 %v1339
          %v1372 = vcvt.s32.f32 %v1340
          %v1373 = vcvt.s32.f32 %v1341
          %v1374 = vcvt.s32.f32 %v1342
          %v1375 = vcvt.s32.f32 %v1343
          %v1376 = vcvt.s32.f32 %v1344
          %v1377 = vcvt.s32.f32 %v1345
          %v1378 = vadd.f32 %v1233, %v1346
          %v1379 = vadd.f32 %v1234, %v1347
          %v1380 = vadd.f32 %v1235, %v1348
          %v1381 = vadd.f32 %v1236, %v1349
          %v1382 = vadd.f32 %v1237, %v1350
          %v1383 = vadd.f32 %v1238, %v1351
          %v1384 = vadd.f32 %v1239, %v1352
          %v1385 = vadd.f32 %v1240, %v1353
          %v1386 = vadd.f32 %v1241, %v1354
          %v1387 = vadd.f32 %v1242, %v1355
          %v1388 = vadd.f32 %v1243, %v1356
          %v1389 = vadd.f32 %v1244, %v1357
          %v1390 = vadd.f32 %v1245, %v1358
          %v1391 = vadd.f32 %v1246, %v1359
          %v1392 = vadd.f32 %v1247, %v1360
          %v1393 = vadd.f32 %v1248, %v1361
          %v1394 = vadd.f32 %v1249, %v1362
          %v1395 = vadd.f32 %v1250, %v1363
          %v1396 = vadd.f32 %v1251, %v1364
          %v1397 = vadd.f32 %v1252, %v1365
          %v1398 = vadd.f32 %v1253, %v1366
          %v1399 = vadd.f32 %v1254, %v1367
          %v1400 = vadd.f32 %v1255, %v1368
          %v1401 = vadd.f32 %v1256, %v1369
          %v1402 = vadd.f32 %v1257, %v1370
          %v1403 = vadd.f32 %v1258, %v1371
          %v1404 = vadd.f32 %v1259, %v1372
          %v1405 = vadd.f32 %v1260, %v1373
          %v1406 = vadd.f32 %v1261, %v1374
          %v1407 = vadd.f32 %v1262, %v1375
          %v1408 = vadd.f32 %v1263, %v1376
          %v1409 = vadd.f32 %v1264, %v1377
          %s1410 = scalar_lea.vmem %s0, 256
          %v1411 = vld [vmem:[%s1410] sm:$0xff]
          %v1412 = vld [vmem:[%s1410 + $0x8] sm:$0xff]
          %v1413 = vld [vmem:[%s1410 + $0x10] sm:$0xff]
          %v1414 = vld [vmem:[%s1410 + $0x18] sm:$0xff]
          %1415 = vset.pattern.permute.xlu0 0
          %1416 = vperm.xlu0 %1415, %v1411
          %v1417 = vpop.permute.xlu0 %1416
          %1418 = vset.pattern.permute.xlu0 0
          %1419 = vperm.xlu0 %1418, %v1412
          %v1420 = vpop.permute.xlu0 %1419
          %1421 = vset.pattern.permute.xlu0 0
          %1422 = vperm.xlu0 %1421, %v1413
          %v1423 = vpop.permute.xlu0 %1422
          %1424 = vset.pattern.permute.xlu0 0
          %1425 = vperm.xlu0 %1424, %v1414
          %v1426 = vpop.permute.xlu0 %1425
          %vm1427 = vcmp.eq.s32.totalorder %v1417, %v243
          %vm1428 = vcmp.eq.s32.totalorder %v1417, %v244
          %vm1429 = vcmp.eq.s32.totalorder %v1417, %v245
          %vm1430 = vcmp.eq.s32.totalorder %v1417, %v246
          %vm1431 = vcmp.eq.s32.totalorder %v1417, %v247
          %vm1432 = vcmp.eq.s32.totalorder %v1417, %v248
          %vm1433 = vcmp.eq.s32.totalorder %v1417, %v249
          %vm1434 = vcmp.eq.s32.totalorder %v1417, %v250
          %vm1435 = vcmp.eq.s32.totalorder %v1420, %v243
          %vm1436 = vcmp.eq.s32.totalorder %v1420, %v244
          %vm1437 = vcmp.eq.s32.totalorder %v1420, %v245
          %vm1438 = vcmp.eq.s32.totalorder %v1420, %v246
          %vm1439 = vcmp.eq.s32.totalorder %v1420, %v247
          %vm1440 = vcmp.eq.s32.totalorder %v1420, %v248
          %vm1441 = vcmp.eq.s32.totalorder %v1420, %v249
          %vm1442 = vcmp.eq.s32.totalorder %v1420, %v250
          %vm1443 = vcmp.eq.s32.totalorder %v1423, %v243
          %vm1444 = vcmp.eq.s32.totalorder %v1423, %v244
          %vm1445 = vcmp.eq.s32.totalorder %v1423, %v245
          %vm1446 = vcmp.eq.s32.totalorder %v1423, %v246
          %vm1447 = vcmp.eq.s32.totalorder %v1423, %v247
          %vm1448 = vcmp.eq.s32.totalorder %v1423, %v248
          %vm1449 = vcmp.eq.s32.totalorder %v1423, %v249
          %vm1450 = vcmp.eq.s32.totalorder %v1423, %v250
          %vm1451 = vcmp.eq.s32.totalorder %v1426, %v243
          %vm1452 = vcmp.eq.s32.totalorder %v1426, %v244
          %vm1453 = vcmp.eq.s32.totalorder %v1426, %v245
          %vm1454 = vcmp.eq.s32.totalorder %v1426, %v246
          %vm1455 = vcmp.eq.s32.totalorder %v1426, %v247
          %vm1456 = vcmp.eq.s32.totalorder %v1426, %v248
          %vm1457 = vcmp.eq.s32.totalorder %v1426, %v249
          %vm1458 = vcmp.eq.s32.totalorder %v1426, %v250
          %v1459 = vsel %vm1427, 1, 0
          %v1460 = vsel %vm1428, 1, 0
          %v1461 = vsel %vm1429, 1, 0
          %v1462 = vsel %vm1430, 1, 0
          %v1463 = vsel %vm1431, 1, 0
          %v1464 = vsel %vm1432, 1, 0
          %v1465 = vsel %vm1433, 1, 0
          %v1466 = vsel %vm1434, 1, 0
          %v1467 = vsel %vm1435, 1, 0
          %v1468 = vsel %vm1436, 1, 0
          %v1469 = vsel %vm1437, 1, 0
          %v1470 = vsel %vm1438, 1, 0
          %v1471 = vsel %vm1439, 1, 0
          %v1472 = vsel %vm1440, 1, 0
          %v1473 = vsel %vm1441, 1, 0
          %v1474 = vsel %vm1442, 1, 0
          %v1475 = vsel %vm1443, 1, 0
          %v1476 = vsel %vm1444, 1, 0
          %v1477 = vsel %vm1445, 1, 0
          %v1478 = vsel %vm1446, 1, 0
          %v1479 = vsel %vm1447, 1, 0
          %v1480 = vsel %vm1448, 1, 0
          %v1481 = vsel %vm1449, 1, 0
          %v1482 = vsel %vm1450, 1, 0
          %v1483 = vsel %vm1451, 1, 0
          %v1484 = vsel %vm1452, 1, 0
          %v1485 = vsel %vm1453, 1, 0
          %v1486 = vsel %vm1454, 1, 0
          %v1487 = vsel %vm1455, 1, 0
          %v1488 = vsel %vm1456, 1, 0
          %v1489 = vsel %vm1457, 1, 0
          %v1490 = vsel %vm1458, 1, 0
          %v1491 = vcvt.s32.f32 %v1459
          %v1492 = vcvt.s32.f32 %v1460
          %v1493 = vcvt.s32.f32 %v1461
          %v1494 = vcvt.s32.f32 %v1462
          %v1495 = vcvt.s32.f32 %v1463
          %v1496 = vcvt.s32.f32 %v1464
          %v1497 = vcvt.s32.f32 %v1465
          %v1498 = vcvt.s32.f32 %v1466
          %v1499 = vcvt.s32.f32 %v1467
          %v1500 = vcvt.s32.f32 %v1468
          %v1501 = vcvt.s32.f32 %v1469
          %v1502 = vcvt.s32.f32 %v1470
          %v1503 = vcvt.s32.f32 %v1471
          %v1504 = vcvt.s32.f32 %v1472
          %v1505 = vcvt.s32.f32 %v1473
          %v1506 = vcvt.s32.f32 %v1474
          %v1507 = vcvt.s32.f32 %v1475
          %v1508 = vcvt.s32.f32 %v1476
          %v1509 = vcvt.s32.f32 %v1477
          %v1510 = vcvt.s32.f32 %v1478
          %v1511 = vcvt.s32.f32 %v1479
          %v1512 = vcvt.s32.f32 %v1480
          %v1513 = vcvt.s32.f32 %v1481
          %v1514 = vcvt.s32.f32 %v1482
          %v1515 = vcvt.s32.f32 %v1483
          %v1516 = vcvt.s32.f32 %v1484
          %v1517 = vcvt.s32.f32 %v1485
          %v1518 = vcvt.s32.f32 %v1486
          %v1519 = vcvt.s32.f32 %v1487
          %v1520 = vcvt.s32.f32 %v1488
          %v1521 = vcvt.s32.f32 %v1489
          %v1522 = vcvt.s32.f32 %v1490
          %v1523 = vadd.f32 %v1378, %v1491
          %v1524 = vadd.f32 %v1379, %v1492
          %v1525 = vadd.f32 %v1380, %v1493
          %v1526 = vadd.f32 %v1381, %v1494
          %v1527 = vadd.f32 %v1382, %v1495
          %v1528 = vadd.f32 %v1383, %v1496
          %v1529 = vadd.f32 %v1384, %v1497
          %v1530 = vadd.f32 %v1385, %v1498
          %v1531 = vadd.f32 %v1386, %v1499
          %v1532 = vadd.f32 %v1387, %v1500
          %v1533 = vadd.f32 %v1388, %v1501
          %v1534 = vadd.f32 %v1389, %v1502
          %v1535 = vadd.f32 %v1390, %v1503
          %v1536 = vadd.f32 %v1391, %v1504
          %v1537 = vadd.f32 %v1392, %v1505
          %v1538 = vadd.f32 %v1393, %v1506
          %v1539 = vadd.f32 %v1394, %v1507
          %v1540 = vadd.f32 %v1395, %v1508
          %v1541 = vadd.f32 %v1396, %v1509
          %v1542 = vadd.f32 %v1397, %v1510
          %v1543 = vadd.f32 %v1398, %v1511
          %v1544 = vadd.f32 %v1399, %v1512
          %v1545 = vadd.f32 %v1400, %v1513
          %v1546 = vadd.f32 %v1401, %v1514
          %v1547 = vadd.f32 %v1402, %v1515
          %v1548 = vadd.f32 %v1403, %v1516
          %v1549 = vadd.f32 %v1404, %v1517
          %v1550 = vadd.f32 %v1405, %v1518
          %v1551 = vadd.f32 %v1406, %v1519
          %v1552 = vadd.f32 %v1407, %v1520
          %v1553 = vadd.f32 %v1408, %v1521
          %v1554 = vadd.f32 %v1409, %v1522
          %s1555 = scalar_lea.vmem %s0, 288
          %v1556 = vld [vmem:[%s1555] sm:$0xff]
          %v1557 = vld [vmem:[%s1555 + $0x8] sm:$0xff]
          %v1558 = vld [vmem:[%s1555 + $0x10] sm:$0xff]
          %v1559 = vld [vmem:[%s1555 + $0x18] sm:$0xff]
          %1560 = vset.pattern.permute.xlu0 0
          %1561 = vperm.xlu0 %1560, %v1556
          %v1562 = vpop.permute.xlu0 %1561
          %1563 = vset.pattern.permute.xlu0 0
          %1564 = vperm.xlu0 %1563, %v1557
          %v1565 = vpop.permute.xlu0 %1564
          %1566 = vset.pattern.permute.xlu0 0
          %1567 = vperm.xlu0 %1566, %v1558
          %v1568 = vpop.permute.xlu0 %1567
          %1569 = vset.pattern.permute.xlu0 0
          %1570 = vperm.xlu0 %1569, %v1559
          %v1571 = vpop.permute.xlu0 %1570
          %vm1572 = vcmp.eq.s32.totalorder %v1562, %v243
          %vm1573 = vcmp.eq.s32.totalorder %v1562, %v244
          %vm1574 = vcmp.eq.s32.totalorder %v1562, %v245
          %vm1575 = vcmp.eq.s32.totalorder %v1562, %v246
          %vm1576 = vcmp.eq.s32.totalorder %v1562, %v247
          %vm1577 = vcmp.eq.s32.totalorder %v1562, %v248
          %vm1578 = vcmp.eq.s32.totalorder %v1562, %v249
          %vm1579 = vcmp.eq.s32.totalorder %v1562, %v250
          %vm1580 = vcmp.eq.s32.totalorder %v1565, %v243
          %vm1581 = vcmp.eq.s32.totalorder %v1565, %v244
          %vm1582 = vcmp.eq.s32.totalorder %v1565, %v245
          %vm1583 = vcmp.eq.s32.totalorder %v1565, %v246
          %vm1584 = vcmp.eq.s32.totalorder %v1565, %v247
          %vm1585 = vcmp.eq.s32.totalorder %v1565, %v248
          %vm1586 = vcmp.eq.s32.totalorder %v1565, %v249
          %vm1587 = vcmp.eq.s32.totalorder %v1565, %v250
          %vm1588 = vcmp.eq.s32.totalorder %v1568, %v243
          %vm1589 = vcmp.eq.s32.totalorder %v1568, %v244
          %vm1590 = vcmp.eq.s32.totalorder %v1568, %v245
          %vm1591 = vcmp.eq.s32.totalorder %v1568, %v246
          %vm1592 = vcmp.eq.s32.totalorder %v1568, %v247
          %vm1593 = vcmp.eq.s32.totalorder %v1568, %v248
          %vm1594 = vcmp.eq.s32.totalorder %v1568, %v249
          %vm1595 = vcmp.eq.s32.totalorder %v1568, %v250
          %vm1596 = vcmp.eq.s32.totalorder %v1571, %v243
          %vm1597 = vcmp.eq.s32.totalorder %v1571, %v244
          %vm1598 = vcmp.eq.s32.totalorder %v1571, %v245
          %vm1599 = vcmp.eq.s32.totalorder %v1571, %v246
          %vm1600 = vcmp.eq.s32.totalorder %v1571, %v247
          %vm1601 = vcmp.eq.s32.totalorder %v1571, %v248
          %vm1602 = vcmp.eq.s32.totalorder %v1571, %v249
          %vm1603 = vcmp.eq.s32.totalorder %v1571, %v250
          %v1604 = vsel %vm1572, 1, 0
          %v1605 = vsel %vm1573, 1, 0
          %v1606 = vsel %vm1574, 1, 0
          %v1607 = vsel %vm1575, 1, 0
          %v1608 = vsel %vm1576, 1, 0
          %v1609 = vsel %vm1577, 1, 0
          %v1610 = vsel %vm1578, 1, 0
          %v1611 = vsel %vm1579, 1, 0
          %v1612 = vsel %vm1580, 1, 0
          %v1613 = vsel %vm1581, 1, 0
          %v1614 = vsel %vm1582, 1, 0
          %v1615 = vsel %vm1583, 1, 0
          %v1616 = vsel %vm1584, 1, 0
          %v1617 = vsel %vm1585, 1, 0
          %v1618 = vsel %vm1586, 1, 0
          %v1619 = vsel %vm1587, 1, 0
          %v1620 = vsel %vm1588, 1, 0
          %v1621 = vsel %vm1589, 1, 0
          %v1622 = vsel %vm1590, 1, 0
          %v1623 = vsel %vm1591, 1, 0
          %v1624 = vsel %vm1592, 1, 0
          %v1625 = vsel %vm1593, 1, 0
          %v1626 = vsel %vm1594, 1, 0
          %v1627 = vsel %vm1595, 1, 0
          %v1628 = vsel %vm1596, 1, 0
          %v1629 = vsel %vm1597, 1, 0
          %v1630 = vsel %vm1598, 1, 0
          %v1631 = vsel %vm1599, 1, 0
          %v1632 = vsel %vm1600, 1, 0
          %v1633 = vsel %vm1601, 1, 0
          %v1634 = vsel %vm1602, 1, 0
          %v1635 = vsel %vm1603, 1, 0
          %v1636 = vcvt.s32.f32 %v1604
          %v1637 = vcvt.s32.f32 %v1605
          %v1638 = vcvt.s32.f32 %v1606
          %v1639 = vcvt.s32.f32 %v1607
          %v1640 = vcvt.s32.f32 %v1608
          %v1641 = vcvt.s32.f32 %v1609
          %v1642 = vcvt.s32.f32 %v1610
          %v1643 = vcvt.s32.f32 %v1611
          %v1644 = vcvt.s32.f32 %v1612
          %v1645 = vcvt.s32.f32 %v1613
          %v1646 = vcvt.s32.f32 %v1614
          %v1647 = vcvt.s32.f32 %v1615
          %v1648 = vcvt.s32.f32 %v1616
          %v1649 = vcvt.s32.f32 %v1617
          %v1650 = vcvt.s32.f32 %v1618
          %v1651 = vcvt.s32.f32 %v1619
          %v1652 = vcvt.s32.f32 %v1620
          %v1653 = vcvt.s32.f32 %v1621
          %v1654 = vcvt.s32.f32 %v1622
          %v1655 = vcvt.s32.f32 %v1623
          %v1656 = vcvt.s32.f32 %v1624
          %v1657 = vcvt.s32.f32 %v1625
          %v1658 = vcvt.s32.f32 %v1626
          %v1659 = vcvt.s32.f32 %v1627
          %v1660 = vcvt.s32.f32 %v1628
          %v1661 = vcvt.s32.f32 %v1629
          %v1662 = vcvt.s32.f32 %v1630
          %v1663 = vcvt.s32.f32 %v1631
          %v1664 = vcvt.s32.f32 %v1632
          %v1665 = vcvt.s32.f32 %v1633
          %v1666 = vcvt.s32.f32 %v1634
          %v1667 = vcvt.s32.f32 %v1635
          %v1668 = vadd.f32 %v1523, %v1636
          %v1669 = vadd.f32 %v1524, %v1637
          %v1670 = vadd.f32 %v1525, %v1638
          %v1671 = vadd.f32 %v1526, %v1639
          %v1672 = vadd.f32 %v1527, %v1640
          %v1673 = vadd.f32 %v1528, %v1641
          %v1674 = vadd.f32 %v1529, %v1642
          %v1675 = vadd.f32 %v1530, %v1643
          %v1676 = vadd.f32 %v1531, %v1644
          %v1677 = vadd.f32 %v1532, %v1645
          %v1678 = vadd.f32 %v1533, %v1646
          %v1679 = vadd.f32 %v1534, %v1647
          %v1680 = vadd.f32 %v1535, %v1648
          %v1681 = vadd.f32 %v1536, %v1649
          %v1682 = vadd.f32 %v1537, %v1650
          %v1683 = vadd.f32 %v1538, %v1651
          %v1684 = vadd.f32 %v1539, %v1652
          %v1685 = vadd.f32 %v1540, %v1653
          %v1686 = vadd.f32 %v1541, %v1654
          %v1687 = vadd.f32 %v1542, %v1655
          %v1688 = vadd.f32 %v1543, %v1656
          %v1689 = vadd.f32 %v1544, %v1657
          %v1690 = vadd.f32 %v1545, %v1658
          %v1691 = vadd.f32 %v1546, %v1659
          %v1692 = vadd.f32 %v1547, %v1660
          %v1693 = vadd.f32 %v1548, %v1661
          %v1694 = vadd.f32 %v1549, %v1662
          %v1695 = vadd.f32 %v1550, %v1663
          %v1696 = vadd.f32 %v1551, %v1664
          %v1697 = vadd.f32 %v1552, %v1665
          %v1698 = vadd.f32 %v1553, %v1666
          %v1699 = vadd.f32 %v1554, %v1667
          %s1700 = scalar_lea.vmem %s0, 320
          %v1701 = vld [vmem:[%s1700] sm:$0xff]
          %v1702 = vld [vmem:[%s1700 + $0x8] sm:$0xff]
          %v1703 = vld [vmem:[%s1700 + $0x10] sm:$0xff]
          %v1704 = vld [vmem:[%s1700 + $0x18] sm:$0xff]
          %1705 = vset.pattern.permute.xlu0 0
          %1706 = vperm.xlu0 %1705, %v1701
          %v1707 = vpop.permute.xlu0 %1706
          %1708 = vset.pattern.permute.xlu0 0
          %1709 = vperm.xlu0 %1708, %v1702
          %v1710 = vpop.permute.xlu0 %1709
          %1711 = vset.pattern.permute.xlu0 0
          %1712 = vperm.xlu0 %1711, %v1703
          %v1713 = vpop.permute.xlu0 %1712
          %1714 = vset.pattern.permute.xlu0 0
          %1715 = vperm.xlu0 %1714, %v1704
          %v1716 = vpop.permute.xlu0 %1715
          %vm1717 = vcmp.eq.s32.totalorder %v1707, %v243
          %vm1718 = vcmp.eq.s32.totalorder %v1707, %v244
          %vm1719 = vcmp.eq.s32.totalorder %v1707, %v245
          %vm1720 = vcmp.eq.s32.totalorder %v1707, %v246
          %vm1721 = vcmp.eq.s32.totalorder %v1707, %v247
          %vm1722 = vcmp.eq.s32.totalorder %v1707, %v248
          %vm1723 = vcmp.eq.s32.totalorder %v1707, %v249
          %vm1724 = vcmp.eq.s32.totalorder %v1707, %v250
          %vm1725 = vcmp.eq.s32.totalorder %v1710, %v243
          %vm1726 = vcmp.eq.s32.totalorder %v1710, %v244
          %vm1727 = vcmp.eq.s32.totalorder %v1710, %v245
          %vm1728 = vcmp.eq.s32.totalorder %v1710, %v246
          %vm1729 = vcmp.eq.s32.totalorder %v1710, %v247
          %vm1730 = vcmp.eq.s32.totalorder %v1710, %v248
          %vm1731 = vcmp.eq.s32.totalorder %v1710, %v249
          %vm1732 = vcmp.eq.s32.totalorder %v1710, %v250
          %vm1733 = vcmp.eq.s32.totalorder %v1713, %v243
          %vm1734 = vcmp.eq.s32.totalorder %v1713, %v244
          %vm1735 = vcmp.eq.s32.totalorder %v1713, %v245
          %vm1736 = vcmp.eq.s32.totalorder %v1713, %v246
          %vm1737 = vcmp.eq.s32.totalorder %v1713, %v247
          %vm1738 = vcmp.eq.s32.totalorder %v1713, %v248
          %vm1739 = vcmp.eq.s32.totalorder %v1713, %v249
          %vm1740 = vcmp.eq.s32.totalorder %v1713, %v250
          %vm1741 = vcmp.eq.s32.totalorder %v1716, %v243
          %vm1742 = vcmp.eq.s32.totalorder %v1716, %v244
          %vm1743 = vcmp.eq.s32.totalorder %v1716, %v245
          %vm1744 = vcmp.eq.s32.totalorder %v1716, %v246
          %vm1745 = vcmp.eq.s32.totalorder %v1716, %v247
          %vm1746 = vcmp.eq.s32.totalorder %v1716, %v248
          %vm1747 = vcmp.eq.s32.totalorder %v1716, %v249
          %vm1748 = vcmp.eq.s32.totalorder %v1716, %v250
          %v1749 = vsel %vm1717, 1, 0
          %v1750 = vsel %vm1718, 1, 0
          %v1751 = vsel %vm1719, 1, 0
          %v1752 = vsel %vm1720, 1, 0
          %v1753 = vsel %vm1721, 1, 0
          %v1754 = vsel %vm1722, 1, 0
          %v1755 = vsel %vm1723, 1, 0
          %v1756 = vsel %vm1724, 1, 0
          %v1757 = vsel %vm1725, 1, 0
          %v1758 = vsel %vm1726, 1, 0
          %v1759 = vsel %vm1727, 1, 0
          %v1760 = vsel %vm1728, 1, 0
          %v1761 = vsel %vm1729, 1, 0
          %v1762 = vsel %vm1730, 1, 0
          %v1763 = vsel %vm1731, 1, 0
          %v1764 = vsel %vm1732, 1, 0
          %v1765 = vsel %vm1733, 1, 0
          %v1766 = vsel %vm1734, 1, 0
          %v1767 = vsel %vm1735, 1, 0
          %v1768 = vsel %vm1736, 1, 0
          %v1769 = vsel %vm1737, 1, 0
          %v1770 = vsel %vm1738, 1, 0
          %v1771 = vsel %vm1739, 1, 0
          %v1772 = vsel %vm1740, 1, 0
          %v1773 = vsel %vm1741, 1, 0
          %v1774 = vsel %vm1742, 1, 0
          %v1775 = vsel %vm1743, 1, 0
          %v1776 = vsel %vm1744, 1, 0
          %v1777 = vsel %vm1745, 1, 0
          %v1778 = vsel %vm1746, 1, 0
          %v1779 = vsel %vm1747, 1, 0
          %v1780 = vsel %vm1748, 1, 0
          %v1781 = vcvt.s32.f32 %v1749
          %v1782 = vcvt.s32.f32 %v1750
          %v1783 = vcvt.s32.f32 %v1751
          %v1784 = vcvt.s32.f32 %v1752
          %v1785 = vcvt.s32.f32 %v1753
          %v1786 = vcvt.s32.f32 %v1754
          %v1787 = vcvt.s32.f32 %v1755
          %v1788 = vcvt.s32.f32 %v1756
          %v1789 = vcvt.s32.f32 %v1757
          %v1790 = vcvt.s32.f32 %v1758
          %v1791 = vcvt.s32.f32 %v1759
          %v1792 = vcvt.s32.f32 %v1760
          %v1793 = vcvt.s32.f32 %v1761
          %v1794 = vcvt.s32.f32 %v1762
          %v1795 = vcvt.s32.f32 %v1763
          %v1796 = vcvt.s32.f32 %v1764
          %v1797 = vcvt.s32.f32 %v1765
          %v1798 = vcvt.s32.f32 %v1766
          %v1799 = vcvt.s32.f32 %v1767
          %v1800 = vcvt.s32.f32 %v1768
          %v1801 = vcvt.s32.f32 %v1769
          %v1802 = vcvt.s32.f32 %v1770
          %v1803 = vcvt.s32.f32 %v1771
          %v1804 = vcvt.s32.f32 %v1772
          %v1805 = vcvt.s32.f32 %v1773
          %v1806 = vcvt.s32.f32 %v1774
          %v1807 = vcvt.s32.f32 %v1775
          %v1808 = vcvt.s32.f32 %v1776
          %v1809 = vcvt.s32.f32 %v1777
          %v1810 = vcvt.s32.f32 %v1778
          %v1811 = vcvt.s32.f32 %v1779
          %v1812 = vcvt.s32.f32 %v1780
          %v1813 = vadd.f32 %v1668, %v1781
          %v1814 = vadd.f32 %v1669, %v1782
          %v1815 = vadd.f32 %v1670, %v1783
          %v1816 = vadd.f32 %v1671, %v1784
          %v1817 = vadd.f32 %v1672, %v1785
          %v1818 = vadd.f32 %v1673, %v1786
          %v1819 = vadd.f32 %v1674, %v1787
          %v1820 = vadd.f32 %v1675, %v1788
          %v1821 = vadd.f32 %v1676, %v1789
          %v1822 = vadd.f32 %v1677, %v1790
          %v1823 = vadd.f32 %v1678, %v1791
          %v1824 = vadd.f32 %v1679, %v1792
          %v1825 = vadd.f32 %v1680, %v1793
          %v1826 = vadd.f32 %v1681, %v1794
          %v1827 = vadd.f32 %v1682, %v1795
          %v1828 = vadd.f32 %v1683, %v1796
          %v1829 = vadd.f32 %v1684, %v1797
          %v1830 = vadd.f32 %v1685, %v1798
          %v1831 = vadd.f32 %v1686, %v1799
          %v1832 = vadd.f32 %v1687, %v1800
          %v1833 = vadd.f32 %v1688, %v1801
          %v1834 = vadd.f32 %v1689, %v1802
          %v1835 = vadd.f32 %v1690, %v1803
          %v1836 = vadd.f32 %v1691, %v1804
          %v1837 = vadd.f32 %v1692, %v1805
          %v1838 = vadd.f32 %v1693, %v1806
          %v1839 = vadd.f32 %v1694, %v1807
          %v1840 = vadd.f32 %v1695, %v1808
          %v1841 = vadd.f32 %v1696, %v1809
          %v1842 = vadd.f32 %v1697, %v1810
          %v1843 = vadd.f32 %v1698, %v1811
          %v1844 = vadd.f32 %v1699, %v1812
          %s1845 = scalar_lea.vmem %s0, 352
          %v1846 = vld [vmem:[%s1845] sm:$0xff]
          %v1847 = vld [vmem:[%s1845 + $0x8] sm:$0xff]
          %v1848 = vld [vmem:[%s1845 + $0x10] sm:$0xff]
          %v1849 = vld [vmem:[%s1845 + $0x18] sm:$0xff]
          %1850 = vset.pattern.permute.xlu0 0
          %1851 = vperm.xlu0 %1850, %v1846
          %v1852 = vpop.permute.xlu0 %1851
          %1853 = vset.pattern.permute.xlu0 0
          %1854 = vperm.xlu0 %1853, %v1847
          %v1855 = vpop.permute.xlu0 %1854
          %1856 = vset.pattern.permute.xlu0 0
          %1857 = vperm.xlu0 %1856, %v1848
          %v1858 = vpop.permute.xlu0 %1857
          %1859 = vset.pattern.permute.xlu0 0
          %1860 = vperm.xlu0 %1859, %v1849
          %v1861 = vpop.permute.xlu0 %1860
          %vm1862 = vcmp.eq.s32.totalorder %v1852, %v243
          %vm1863 = vcmp.eq.s32.totalorder %v1852, %v244
          %vm1864 = vcmp.eq.s32.totalorder %v1852, %v245
          %vm1865 = vcmp.eq.s32.totalorder %v1852, %v246
          %vm1866 = vcmp.eq.s32.totalorder %v1852, %v247
          %vm1867 = vcmp.eq.s32.totalorder %v1852, %v248
          %vm1868 = vcmp.eq.s32.totalorder %v1852, %v249
          %vm1869 = vcmp.eq.s32.totalorder %v1852, %v250
          %vm1870 = vcmp.eq.s32.totalorder %v1855, %v243
          %vm1871 = vcmp.eq.s32.totalorder %v1855, %v244
          %vm1872 = vcmp.eq.s32.totalorder %v1855, %v245
          %vm1873 = vcmp.eq.s32.totalorder %v1855, %v246
          %vm1874 = vcmp.eq.s32.totalorder %v1855, %v247
          %vm1875 = vcmp.eq.s32.totalorder %v1855, %v248
          %vm1876 = vcmp.eq.s32.totalorder %v1855, %v249
          %vm1877 = vcmp.eq.s32.totalorder %v1855, %v250
          %vm1878 = vcmp.eq.s32.totalorder %v1858, %v243
          %vm1879 = vcmp.eq.s32.totalorder %v1858, %v244
          %vm1880 = vcmp.eq.s32.totalorder %v1858, %v245
          %vm1881 = vcmp.eq.s32.totalorder %v1858, %v246
          %vm1882 = vcmp.eq.s32.totalorder %v1858, %v247
          %vm1883 = vcmp.eq.s32.totalorder %v1858, %v248
          %vm1884 = vcmp.eq.s32.totalorder %v1858, %v249
          %vm1885 = vcmp.eq.s32.totalorder %v1858, %v250
          %vm1886 = vcmp.eq.s32.totalorder %v1861, %v243
          %vm1887 = vcmp.eq.s32.totalorder %v1861, %v244
          %vm1888 = vcmp.eq.s32.totalorder %v1861, %v245
          %vm1889 = vcmp.eq.s32.totalorder %v1861, %v246
          %vm1890 = vcmp.eq.s32.totalorder %v1861, %v247
          %vm1891 = vcmp.eq.s32.totalorder %v1861, %v248
          %vm1892 = vcmp.eq.s32.totalorder %v1861, %v249
          %vm1893 = vcmp.eq.s32.totalorder %v1861, %v250
          %v1894 = vsel %vm1862, 1, 0
          %v1895 = vsel %vm1863, 1, 0
          %v1896 = vsel %vm1864, 1, 0
          %v1897 = vsel %vm1865, 1, 0
          %v1898 = vsel %vm1866, 1, 0
          %v1899 = vsel %vm1867, 1, 0
          %v1900 = vsel %vm1868, 1, 0
          %v1901 = vsel %vm1869, 1, 0
          %v1902 = vsel %vm1870, 1, 0
          %v1903 = vsel %vm1871, 1, 0
          %v1904 = vsel %vm1872, 1, 0
          %v1905 = vsel %vm1873, 1, 0
          %v1906 = vsel %vm1874, 1, 0
          %v1907 = vsel %vm1875, 1, 0
          %v1908 = vsel %vm1876, 1, 0
          %v1909 = vsel %vm1877, 1, 0
          %v1910 = vsel %vm1878, 1, 0
          %v1911 = vsel %vm1879, 1, 0
          %v1912 = vsel %vm1880, 1, 0
          %v1913 = vsel %vm1881, 1, 0
          %v1914 = vsel %vm1882, 1, 0
          %v1915 = vsel %vm1883, 1, 0
          %v1916 = vsel %vm1884, 1, 0
          %v1917 = vsel %vm1885, 1, 0
          %v1918 = vsel %vm1886, 1, 0
          %v1919 = vsel %vm1887, 1, 0
          %v1920 = vsel %vm1888, 1, 0
          %v1921 = vsel %vm1889, 1, 0
          %v1922 = vsel %vm1890, 1, 0
          %v1923 = vsel %vm1891, 1, 0
          %v1924 = vsel %vm1892, 1, 0
          %v1925 = vsel %vm1893, 1, 0
          %v1926 = vcvt.s32.f32 %v1894
          %v1927 = vcvt.s32.f32 %v1895
          %v1928 = vcvt.s32.f32 %v1896
          %v1929 = vcvt.s32.f32 %v1897
          %v1930 = vcvt.s32.f32 %v1898
          %v1931 = vcvt.s32.f32 %v1899
          %v1932 = vcvt.s32.f32 %v1900
          %v1933 = vcvt.s32.f32 %v1901
          %v1934 = vcvt.s32.f32 %v1902
          %v1935 = vcvt.s32.f32 %v1903
          %v1936 = vcvt.s32.f32 %v1904
          %v1937 = vcvt.s32.f32 %v1905
          %v1938 = vcvt.s32.f32 %v1906
          %v1939 = vcvt.s32.f32 %v1907
          %v1940 = vcvt.s32.f32 %v1908
          %v1941 = vcvt.s32.f32 %v1909
          %v1942 = vcvt.s32.f32 %v1910
          %v1943 = vcvt.s32.f32 %v1911
          %v1944 = vcvt.s32.f32 %v1912
          %v1945 = vcvt.s32.f32 %v1913
          %v1946 = vcvt.s32.f32 %v1914
          %v1947 = vcvt.s32.f32 %v1915
          %v1948 = vcvt.s32.f32 %v1916
          %v1949 = vcvt.s32.f32 %v1917
          %v1950 = vcvt.s32.f32 %v1918
          %v1951 = vcvt.s32.f32 %v1919
          %v1952 = vcvt.s32.f32 %v1920
          %v1953 = vcvt.s32.f32 %v1921
          %v1954 = vcvt.s32.f32 %v1922
          %v1955 = vcvt.s32.f32 %v1923
          %v1956 = vcvt.s32.f32 %v1924
          %v1957 = vcvt.s32.f32 %v1925
          %v1958 = vadd.f32 %v1813, %v1926
          %v1959 = vadd.f32 %v1814, %v1927
          %v1960 = vadd.f32 %v1815, %v1928
          %v1961 = vadd.f32 %v1816, %v1929
          %v1962 = vadd.f32 %v1817, %v1930
          %v1963 = vadd.f32 %v1818, %v1931
          %v1964 = vadd.f32 %v1819, %v1932
          %v1965 = vadd.f32 %v1820, %v1933
          %v1966 = vadd.f32 %v1821, %v1934
          %v1967 = vadd.f32 %v1822, %v1935
          %v1968 = vadd.f32 %v1823, %v1936
          %v1969 = vadd.f32 %v1824, %v1937
          %v1970 = vadd.f32 %v1825, %v1938
          %v1971 = vadd.f32 %v1826, %v1939
          %v1972 = vadd.f32 %v1827, %v1940
          %v1973 = vadd.f32 %v1828, %v1941
          %v1974 = vadd.f32 %v1829, %v1942
          %v1975 = vadd.f32 %v1830, %v1943
          %v1976 = vadd.f32 %v1831, %v1944
          %v1977 = vadd.f32 %v1832, %v1945
          %v1978 = vadd.f32 %v1833, %v1946
          %v1979 = vadd.f32 %v1834, %v1947
          %v1980 = vadd.f32 %v1835, %v1948
          %v1981 = vadd.f32 %v1836, %v1949
          %v1982 = vadd.f32 %v1837, %v1950
          %v1983 = vadd.f32 %v1838, %v1951
          %v1984 = vadd.f32 %v1839, %v1952
          %v1985 = vadd.f32 %v1840, %v1953
          %v1986 = vadd.f32 %v1841, %v1954
          %v1987 = vadd.f32 %v1842, %v1955
          %v1988 = vadd.f32 %v1843, %v1956
          %v1989 = vadd.f32 %v1844, %v1957
          %s1990 = scalar_lea.vmem %s0, 384
          %v1991 = vld [vmem:[%s1990] sm:$0xff]
          %v1992 = vld [vmem:[%s1990 + $0x8] sm:$0xff]
          %v1993 = vld [vmem:[%s1990 + $0x10] sm:$0xff]
          %v1994 = vld [vmem:[%s1990 + $0x18] sm:$0xff]
          %1995 = vset.pattern.permute.xlu0 0
          %1996 = vperm.xlu0 %1995, %v1991
          %v1997 = vpop.permute.xlu0 %1996
          %1998 = vset.pattern.permute.xlu0 0
          %1999 = vperm.xlu0 %1998, %v1992
          %v2000 = vpop.permute.xlu0 %1999
          %2001 = vset.pattern.permute.xlu0 0
          %2002 = vperm.xlu0 %2001, %v1993
          %v2003 = vpop.permute.xlu0 %2002
          %2004 = vset.pattern.permute.xlu0 0
          %2005 = vperm.xlu0 %2004, %v1994
          %v2006 = vpop.permute.xlu0 %2005
          %vm2007 = vcmp.eq.s32.totalorder %v1997, %v243
          %vm2008 = vcmp.eq.s32.totalorder %v1997, %v244
          %vm2009 = vcmp.eq.s32.totalorder %v1997, %v245
          %vm2010 = vcmp.eq.s32.totalorder %v1997, %v246
          %vm2011 = vcmp.eq.s32.totalorder %v1997, %v247
          %vm2012 = vcmp.eq.s32.totalorder %v1997, %v248
          %vm2013 = vcmp.eq.s32.totalorder %v1997, %v249
          %vm2014 = vcmp.eq.s32.totalorder %v1997, %v250
          %vm2015 = vcmp.eq.s32.totalorder %v2000, %v243
          %vm2016 = vcmp.eq.s32.totalorder %v2000, %v244
          %vm2017 = vcmp.eq.s32.totalorder %v2000, %v245
          %vm2018 = vcmp.eq.s32.totalorder %v2000, %v246
          %vm2019 = vcmp.eq.s32.totalorder %v2000, %v247
          %vm2020 = vcmp.eq.s32.totalorder %v2000, %v248
          %vm2021 = vcmp.eq.s32.totalorder %v2000, %v249
          %vm2022 = vcmp.eq.s32.totalorder %v2000, %v250
          %vm2023 = vcmp.eq.s32.totalorder %v2003, %v243
          %vm2024 = vcmp.eq.s32.totalorder %v2003, %v244
          %vm2025 = vcmp.eq.s32.totalorder %v2003, %v245
          %vm2026 = vcmp.eq.s32.totalorder %v2003, %v246
          %vm2027 = vcmp.eq.s32.totalorder %v2003, %v247
          %vm2028 = vcmp.eq.s32.totalorder %v2003, %v248
          %vm2029 = vcmp.eq.s32.totalorder %v2003, %v249
          %vm2030 = vcmp.eq.s32.totalorder %v2003, %v250
          %vm2031 = vcmp.eq.s32.totalorder %v2006, %v243
          %vm2032 = vcmp.eq.s32.totalorder %v2006, %v244
          %vm2033 = vcmp.eq.s32.totalorder %v2006, %v245
          %vm2034 = vcmp.eq.s32.totalorder %v2006, %v246
          %vm2035 = vcmp.eq.s32.totalorder %v2006, %v247
          %vm2036 = vcmp.eq.s32.totalorder %v2006, %v248
          %vm2037 = vcmp.eq.s32.totalorder %v2006, %v249
          %vm2038 = vcmp.eq.s32.totalorder %v2006, %v250
          %v2039 = vsel %vm2007, 1, 0
          %v2040 = vsel %vm2008, 1, 0
          %v2041 = vsel %vm2009, 1, 0
          %v2042 = vsel %vm2010, 1, 0
          %v2043 = vsel %vm2011, 1, 0
          %v2044 = vsel %vm2012, 1, 0
          %v2045 = vsel %vm2013, 1, 0
          %v2046 = vsel %vm2014, 1, 0
          %v2047 = vsel %vm2015, 1, 0
          %v2048 = vsel %vm2016, 1, 0
          %v2049 = vsel %vm2017, 1, 0
          %v2050 = vsel %vm2018, 1, 0
          %v2051 = vsel %vm2019, 1, 0
          %v2052 = vsel %vm2020, 1, 0
          %v2053 = vsel %vm2021, 1, 0
          %v2054 = vsel %vm2022, 1, 0
          %v2055 = vsel %vm2023, 1, 0
          %v2056 = vsel %vm2024, 1, 0
          %v2057 = vsel %vm2025, 1, 0
          %v2058 = vsel %vm2026, 1, 0
          %v2059 = vsel %vm2027, 1, 0
          %v2060 = vsel %vm2028, 1, 0
          %v2061 = vsel %vm2029, 1, 0
          %v2062 = vsel %vm2030, 1, 0
          %v2063 = vsel %vm2031, 1, 0
          %v2064 = vsel %vm2032, 1, 0
          %v2065 = vsel %vm2033, 1, 0
          %v2066 = vsel %vm2034, 1, 0
          %v2067 = vsel %vm2035, 1, 0
          %v2068 = vsel %vm2036, 1, 0
          %v2069 = vsel %vm2037, 1, 0
          %v2070 = vsel %vm2038, 1, 0
          %v2071 = vcvt.s32.f32 %v2039
          %v2072 = vcvt.s32.f32 %v2040
          %v2073 = vcvt.s32.f32 %v2041
          %v2074 = vcvt.s32.f32 %v2042
          %v2075 = vcvt.s32.f32 %v2043
          %v2076 = vcvt.s32.f32 %v2044
          %v2077 = vcvt.s32.f32 %v2045
          %v2078 = vcvt.s32.f32 %v2046
          %v2079 = vcvt.s32.f32 %v2047
          %v2080 = vcvt.s32.f32 %v2048
          %v2081 = vcvt.s32.f32 %v2049
          %v2082 = vcvt.s32.f32 %v2050
          %v2083 = vcvt.s32.f32 %v2051
          %v2084 = vcvt.s32.f32 %v2052
          %v2085 = vcvt.s32.f32 %v2053
          %v2086 = vcvt.s32.f32 %v2054
          %v2087 = vcvt.s32.f32 %v2055
          %v2088 = vcvt.s32.f32 %v2056
          %v2089 = vcvt.s32.f32 %v2057
          %v2090 = vcvt.s32.f32 %v2058
          %v2091 = vcvt.s32.f32 %v2059
          %v2092 = vcvt.s32.f32 %v2060
          %v2093 = vcvt.s32.f32 %v2061
          %v2094 = vcvt.s32.f32 %v2062
          %v2095 = vcvt.s32.f32 %v2063
          %v2096 = vcvt.s32.f32 %v2064
          %v2097 = vcvt.s32.f32 %v2065
          %v2098 = vcvt.s32.f32 %v2066
          %v2099 = vcvt.s32.f32 %v2067
          %v2100 = vcvt.s32.f32 %v2068
          %v2101 = vcvt.s32.f32 %v2069
          %v2102 = vcvt.s32.f32 %v2070
          %v2103 = vadd.f32 %v1958, %v2071
          %v2104 = vadd.f32 %v1959, %v2072
          %v2105 = vadd.f32 %v1960, %v2073
          %v2106 = vadd.f32 %v1961, %v2074
          %v2107 = vadd.f32 %v1962, %v2075
          %v2108 = vadd.f32 %v1963, %v2076
          %v2109 = vadd.f32 %v1964, %v2077
          %v2110 = vadd.f32 %v1965, %v2078
          %v2111 = vadd.f32 %v1966, %v2079
          %v2112 = vadd.f32 %v1967, %v2080
          %v2113 = vadd.f32 %v1968, %v2081
          %v2114 = vadd.f32 %v1969, %v2082
          %v2115 = vadd.f32 %v1970, %v2083
          %v2116 = vadd.f32 %v1971, %v2084
          %v2117 = vadd.f32 %v1972, %v2085
          %v2118 = vadd.f32 %v1973, %v2086
          %v2119 = vadd.f32 %v1974, %v2087
          %v2120 = vadd.f32 %v1975, %v2088
          %v2121 = vadd.f32 %v1976, %v2089
          %v2122 = vadd.f32 %v1977, %v2090
          %v2123 = vadd.f32 %v1978, %v2091
          %v2124 = vadd.f32 %v1979, %v2092
          %v2125 = vadd.f32 %v1980, %v2093
          %v2126 = vadd.f32 %v1981, %v2094
          %v2127 = vadd.f32 %v1982, %v2095
          %v2128 = vadd.f32 %v1983, %v2096
          %v2129 = vadd.f32 %v1984, %v2097
          %v2130 = vadd.f32 %v1985, %v2098
          %v2131 = vadd.f32 %v1986, %v2099
          %v2132 = vadd.f32 %v1987, %v2100
          %v2133 = vadd.f32 %v1988, %v2101
          %v2134 = vadd.f32 %v1989, %v2102
          %s2135 = scalar_lea.vmem %s0, 416
          %v2136 = vld [vmem:[%s2135] sm:$0xff]
          %v2137 = vld [vmem:[%s2135 + $0x8] sm:$0xff]
          %v2138 = vld [vmem:[%s2135 + $0x10] sm:$0xff]
          %v2139 = vld [vmem:[%s2135 + $0x18] sm:$0xff]
          %2140 = vset.pattern.permute.xlu0 0
          %2141 = vperm.xlu0 %2140, %v2136
          %v2142 = vpop.permute.xlu0 %2141
          %2143 = vset.pattern.permute.xlu0 0
          %2144 = vperm.xlu0 %2143, %v2137
          %v2145 = vpop.permute.xlu0 %2144
          %2146 = vset.pattern.permute.xlu0 0
          %2147 = vperm.xlu0 %2146, %v2138
          %v2148 = vpop.permute.xlu0 %2147
          %2149 = vset.pattern.permute.xlu0 0
          %2150 = vperm.xlu0 %2149, %v2139
          %v2151 = vpop.permute.xlu0 %2150
          %vm2152 = vcmp.eq.s32.totalorder %v2142, %v243
          %vm2153 = vcmp.eq.s32.totalorder %v2142, %v244
          %vm2154 = vcmp.eq.s32.totalorder %v2142, %v245
          %vm2155 = vcmp.eq.s32.totalorder %v2142, %v246
          %vm2156 = vcmp.eq.s32.totalorder %v2142, %v247
          %vm2157 = vcmp.eq.s32.totalorder %v2142, %v248
          %vm2158 = vcmp.eq.s32.totalorder %v2142, %v249
          %vm2159 = vcmp.eq.s32.totalorder %v2142, %v250
          %vm2160 = vcmp.eq.s32.totalorder %v2145, %v243
          %vm2161 = vcmp.eq.s32.totalorder %v2145, %v244
          %vm2162 = vcmp.eq.s32.totalorder %v2145, %v245
          %vm2163 = vcmp.eq.s32.totalorder %v2145, %v246
          %vm2164 = vcmp.eq.s32.totalorder %v2145, %v247
          %vm2165 = vcmp.eq.s32.totalorder %v2145, %v248
          %vm2166 = vcmp.eq.s32.totalorder %v2145, %v249
          %vm2167 = vcmp.eq.s32.totalorder %v2145, %v250
          %vm2168 = vcmp.eq.s32.totalorder %v2148, %v243
          %vm2169 = vcmp.eq.s32.totalorder %v2148, %v244
          %vm2170 = vcmp.eq.s32.totalorder %v2148, %v245
          %vm2171 = vcmp.eq.s32.totalorder %v2148, %v246
          %vm2172 = vcmp.eq.s32.totalorder %v2148, %v247
          %vm2173 = vcmp.eq.s32.totalorder %v2148, %v248
          %vm2174 = vcmp.eq.s32.totalorder %v2148, %v249
          %vm2175 = vcmp.eq.s32.totalorder %v2148, %v250
          %vm2176 = vcmp.eq.s32.totalorder %v2151, %v243
          %vm2177 = vcmp.eq.s32.totalorder %v2151, %v244
          %vm2178 = vcmp.eq.s32.totalorder %v2151, %v245
          %vm2179 = vcmp.eq.s32.totalorder %v2151, %v246
          %vm2180 = vcmp.eq.s32.totalorder %v2151, %v247
          %vm2181 = vcmp.eq.s32.totalorder %v2151, %v248
          %vm2182 = vcmp.eq.s32.totalorder %v2151, %v249
          %vm2183 = vcmp.eq.s32.totalorder %v2151, %v250
          %v2184 = vsel %vm2152, 1, 0
          %v2185 = vsel %vm2153, 1, 0
          %v2186 = vsel %vm2154, 1, 0
          %v2187 = vsel %vm2155, 1, 0
          %v2188 = vsel %vm2156, 1, 0
          %v2189 = vsel %vm2157, 1, 0
          %v2190 = vsel %vm2158, 1, 0
          %v2191 = vsel %vm2159, 1, 0
          %v2192 = vsel %vm2160, 1, 0
          %v2193 = vsel %vm2161, 1, 0
          %v2194 = vsel %vm2162, 1, 0
          %v2195 = vsel %vm2163, 1, 0
          %v2196 = vsel %vm2164, 1, 0
          %v2197 = vsel %vm2165, 1, 0
          %v2198 = vsel %vm2166, 1, 0
          %v2199 = vsel %vm2167, 1, 0
          %v2200 = vsel %vm2168, 1, 0
          %v2201 = vsel %vm2169, 1, 0
          %v2202 = vsel %vm2170, 1, 0
          %v2203 = vsel %vm2171, 1, 0
          %v2204 = vsel %vm2172, 1, 0
          %v2205 = vsel %vm2173, 1, 0
          %v2206 = vsel %vm2174, 1, 0
          %v2207 = vsel %vm2175, 1, 0
          %v2208 = vsel %vm2176, 1, 0
          %v2209 = vsel %vm2177, 1, 0
          %v2210 = vsel %vm2178, 1, 0
          %v2211 = vsel %vm2179, 1, 0
          %v2212 = vsel %vm2180, 1, 0
          %v2213 = vsel %vm2181, 1, 0
          %v2214 = vsel %vm2182, 1, 0
          %v2215 = vsel %vm2183, 1, 0
          %v2216 = vcvt.s32.f32 %v2184
          %v2217 = vcvt.s32.f32 %v2185
          %v2218 = vcvt.s32.f32 %v2186
          %v2219 = vcvt.s32.f32 %v2187
          %v2220 = vcvt.s32.f32 %v2188
          %v2221 = vcvt.s32.f32 %v2189
          %v2222 = vcvt.s32.f32 %v2190
          %v2223 = vcvt.s32.f32 %v2191
          %v2224 = vcvt.s32.f32 %v2192
          %v2225 = vcvt.s32.f32 %v2193
          %v2226 = vcvt.s32.f32 %v2194
          %v2227 = vcvt.s32.f32 %v2195
          %v2228 = vcvt.s32.f32 %v2196
          %v2229 = vcvt.s32.f32 %v2197
          %v2230 = vcvt.s32.f32 %v2198
          %v2231 = vcvt.s32.f32 %v2199
          %v2232 = vcvt.s32.f32 %v2200
          %v2233 = vcvt.s32.f32 %v2201
          %v2234 = vcvt.s32.f32 %v2202
          %v2235 = vcvt.s32.f32 %v2203
          %v2236 = vcvt.s32.f32 %v2204
          %v2237 = vcvt.s32.f32 %v2205
          %v2238 = vcvt.s32.f32 %v2206
          %v2239 = vcvt.s32.f32 %v2207
          %v2240 = vcvt.s32.f32 %v2208
          %v2241 = vcvt.s32.f32 %v2209
          %v2242 = vcvt.s32.f32 %v2210
          %v2243 = vcvt.s32.f32 %v2211
          %v2244 = vcvt.s32.f32 %v2212
          %v2245 = vcvt.s32.f32 %v2213
          %v2246 = vcvt.s32.f32 %v2214
          %v2247 = vcvt.s32.f32 %v2215
          %v2248 = vadd.f32 %v2103, %v2216
          %v2249 = vadd.f32 %v2104, %v2217
          %v2250 = vadd.f32 %v2105, %v2218
          %v2251 = vadd.f32 %v2106, %v2219
          %v2252 = vadd.f32 %v2107, %v2220
          %v2253 = vadd.f32 %v2108, %v2221
          %v2254 = vadd.f32 %v2109, %v2222
          %v2255 = vadd.f32 %v2110, %v2223
          %v2256 = vadd.f32 %v2111, %v2224
          %v2257 = vadd.f32 %v2112, %v2225
          %v2258 = vadd.f32 %v2113, %v2226
          %v2259 = vadd.f32 %v2114, %v2227
          %v2260 = vadd.f32 %v2115, %v2228
          %v2261 = vadd.f32 %v2116, %v2229
          %v2262 = vadd.f32 %v2117, %v2230
          %v2263 = vadd.f32 %v2118, %v2231
          %v2264 = vadd.f32 %v2119, %v2232
          %v2265 = vadd.f32 %v2120, %v2233
          %v2266 = vadd.f32 %v2121, %v2234
          %v2267 = vadd.f32 %v2122, %v2235
          %v2268 = vadd.f32 %v2123, %v2236
          %v2269 = vadd.f32 %v2124, %v2237
          %v2270 = vadd.f32 %v2125, %v2238
          %v2271 = vadd.f32 %v2126, %v2239
          %v2272 = vadd.f32 %v2127, %v2240
          %v2273 = vadd.f32 %v2128, %v2241
          %v2274 = vadd.f32 %v2129, %v2242
          %v2275 = vadd.f32 %v2130, %v2243
          %v2276 = vadd.f32 %v2131, %v2244
          %v2277 = vadd.f32 %v2132, %v2245
          %v2278 = vadd.f32 %v2133, %v2246
          %v2279 = vadd.f32 %v2134, %v2247
          %s2280 = scalar_lea.vmem %s0, 448
          %v2281 = vld [vmem:[%s2280] sm:$0xff]
          %v2282 = vld [vmem:[%s2280 + $0x8] sm:$0xff]
          %v2283 = vld [vmem:[%s2280 + $0x10] sm:$0xff]
          %v2284 = vld [vmem:[%s2280 + $0x18] sm:$0xff]
          %2285 = vset.pattern.permute.xlu0 0
          %2286 = vperm.xlu0 %2285, %v2281
          %v2287 = vpop.permute.xlu0 %2286
          %2288 = vset.pattern.permute.xlu0 0
          %2289 = vperm.xlu0 %2288, %v2282
          %v2290 = vpop.permute.xlu0 %2289
          %2291 = vset.pattern.permute.xlu0 0
          %2292 = vperm.xlu0 %2291, %v2283
          %v2293 = vpop.permute.xlu0 %2292
          %2294 = vset.pattern.permute.xlu0 0
          %2295 = vperm.xlu0 %2294, %v2284
          %v2296 = vpop.permute.xlu0 %2295
          %vm2297 = vcmp.eq.s32.totalorder %v2287, %v243
          %vm2298 = vcmp.eq.s32.totalorder %v2287, %v244
          %vm2299 = vcmp.eq.s32.totalorder %v2287, %v245
          %vm2300 = vcmp.eq.s32.totalorder %v2287, %v246
          %vm2301 = vcmp.eq.s32.totalorder %v2287, %v247
          %vm2302 = vcmp.eq.s32.totalorder %v2287, %v248
          %vm2303 = vcmp.eq.s32.totalorder %v2287, %v249
          %vm2304 = vcmp.eq.s32.totalorder %v2287, %v250
          %vm2305 = vcmp.eq.s32.totalorder %v2290, %v243
          %vm2306 = vcmp.eq.s32.totalorder %v2290, %v244
          %vm2307 = vcmp.eq.s32.totalorder %v2290, %v245
          %vm2308 = vcmp.eq.s32.totalorder %v2290, %v246
          %vm2309 = vcmp.eq.s32.totalorder %v2290, %v247
          %vm2310 = vcmp.eq.s32.totalorder %v2290, %v248
          %vm2311 = vcmp.eq.s32.totalorder %v2290, %v249
          %vm2312 = vcmp.eq.s32.totalorder %v2290, %v250
          %vm2313 = vcmp.eq.s32.totalorder %v2293, %v243
          %vm2314 = vcmp.eq.s32.totalorder %v2293, %v244
          %vm2315 = vcmp.eq.s32.totalorder %v2293, %v245
          %vm2316 = vcmp.eq.s32.totalorder %v2293, %v246
          %vm2317 = vcmp.eq.s32.totalorder %v2293, %v247
          %vm2318 = vcmp.eq.s32.totalorder %v2293, %v248
          %vm2319 = vcmp.eq.s32.totalorder %v2293, %v249
          %vm2320 = vcmp.eq.s32.totalorder %v2293, %v250
          %vm2321 = vcmp.eq.s32.totalorder %v2296, %v243
          %vm2322 = vcmp.eq.s32.totalorder %v2296, %v244
          %vm2323 = vcmp.eq.s32.totalorder %v2296, %v245
          %vm2324 = vcmp.eq.s32.totalorder %v2296, %v246
          %vm2325 = vcmp.eq.s32.totalorder %v2296, %v247
          %vm2326 = vcmp.eq.s32.totalorder %v2296, %v248
          %vm2327 = vcmp.eq.s32.totalorder %v2296, %v249
          %vm2328 = vcmp.eq.s32.totalorder %v2296, %v250
          %v2329 = vsel %vm2297, 1, 0
          %v2330 = vsel %vm2298, 1, 0
          %v2331 = vsel %vm2299, 1, 0
          %v2332 = vsel %vm2300, 1, 0
          %v2333 = vsel %vm2301, 1, 0
          %v2334 = vsel %vm2302, 1, 0
          %v2335 = vsel %vm2303, 1, 0
          %v2336 = vsel %vm2304, 1, 0
          %v2337 = vsel %vm2305, 1, 0
          %v2338 = vsel %vm2306, 1, 0
          %v2339 = vsel %vm2307, 1, 0
          %v2340 = vsel %vm2308, 1, 0
          %v2341 = vsel %vm2309, 1, 0
          %v2342 = vsel %vm2310, 1, 0
          %v2343 = vsel %vm2311, 1, 0
          %v2344 = vsel %vm2312, 1, 0
          %v2345 = vsel %vm2313, 1, 0
          %v2346 = vsel %vm2314, 1, 0
          %v2347 = vsel %vm2315, 1, 0
          %v2348 = vsel %vm2316, 1, 0
          %v2349 = vsel %vm2317, 1, 0
          %v2350 = vsel %vm2318, 1, 0
          %v2351 = vsel %vm2319, 1, 0
          %v2352 = vsel %vm2320, 1, 0
          %v2353 = vsel %vm2321, 1, 0
          %v2354 = vsel %vm2322, 1, 0
          %v2355 = vsel %vm2323, 1, 0
          %v2356 = vsel %vm2324, 1, 0
          %v2357 = vsel %vm2325, 1, 0
          %v2358 = vsel %vm2326, 1, 0
          %v2359 = vsel %vm2327, 1, 0
          %v2360 = vsel %vm2328, 1, 0
          %v2361 = vcvt.s32.f32 %v2329
          %v2362 = vcvt.s32.f32 %v2330
          %v2363 = vcvt.s32.f32 %v2331
          %v2364 = vcvt.s32.f32 %v2332
          %v2365 = vcvt.s32.f32 %v2333
          %v2366 = vcvt.s32.f32 %v2334
          %v2367 = vcvt.s32.f32 %v2335
          %v2368 = vcvt.s32.f32 %v2336
          %v2369 = vcvt.s32.f32 %v2337
          %v2370 = vcvt.s32.f32 %v2338
          %v2371 = vcvt.s32.f32 %v2339
          %v2372 = vcvt.s32.f32 %v2340
          %v2373 = vcvt.s32.f32 %v2341
          %v2374 = vcvt.s32.f32 %v2342
          %v2375 = vcvt.s32.f32 %v2343
          %v2376 = vcvt.s32.f32 %v2344
          %v2377 = vcvt.s32.f32 %v2345
          %v2378 = vcvt.s32.f32 %v2346
          %v2379 = vcvt.s32.f32 %v2347
          %v2380 = vcvt.s32.f32 %v2348
          %v2381 = vcvt.s32.f32 %v2349
          %v2382 = vcvt.s32.f32 %v2350
          %v2383 = vcvt.s32.f32 %v2351
          %v2384 = vcvt.s32.f32 %v2352
          %v2385 = vcvt.s32.f32 %v2353
          %v2386 = vcvt.s32.f32 %v2354
          %v2387 = vcvt.s32.f32 %v2355
          %v2388 = vcvt.s32.f32 %v2356
          %v2389 = vcvt.s32.f32 %v2357
          %v2390 = vcvt.s32.f32 %v2358
          %v2391 = vcvt.s32.f32 %v2359
          %v2392 = vcvt.s32.f32 %v2360
          %v2393 = vadd.f32 %v2248, %v2361
          %v2394 = vadd.f32 %v2249, %v2362
          %v2395 = vadd.f32 %v2250, %v2363
          %v2396 = vadd.f32 %v2251, %v2364
          %v2397 = vadd.f32 %v2252, %v2365
          %v2398 = vadd.f32 %v2253, %v2366
          %v2399 = vadd.f32 %v2254, %v2367
          %v2400 = vadd.f32 %v2255, %v2368
          %v2401 = vadd.f32 %v2256, %v2369
          %v2402 = vadd.f32 %v2257, %v2370
          %v2403 = vadd.f32 %v2258, %v2371
          %v2404 = vadd.f32 %v2259, %v2372
          %v2405 = vadd.f32 %v2260, %v2373
          %v2406 = vadd.f32 %v2261, %v2374
          %v2407 = vadd.f32 %v2262, %v2375
          %v2408 = vadd.f32 %v2263, %v2376
          %v2409 = vadd.f32 %v2264, %v2377
          %v2410 = vadd.f32 %v2265, %v2378
          %v2411 = vadd.f32 %v2266, %v2379
          %v2412 = vadd.f32 %v2267, %v2380
          %v2413 = vadd.f32 %v2268, %v2381
          %v2414 = vadd.f32 %v2269, %v2382
          %v2415 = vadd.f32 %v2270, %v2383
          %v2416 = vadd.f32 %v2271, %v2384
          %v2417 = vadd.f32 %v2272, %v2385
          %v2418 = vadd.f32 %v2273, %v2386
          %v2419 = vadd.f32 %v2274, %v2387
          %v2420 = vadd.f32 %v2275, %v2388
          %v2421 = vadd.f32 %v2276, %v2389
          %v2422 = vadd.f32 %v2277, %v2390
          %v2423 = vadd.f32 %v2278, %v2391
          %v2424 = vadd.f32 %v2279, %v2392
          %s2425 = scalar_lea.vmem %s0, 480
          %v2426 = vld [vmem:[%s2425] sm:$0xff]
          %v2427 = vld [vmem:[%s2425 + $0x8] sm:$0xff]
          %v2428 = vld [vmem:[%s2425 + $0x10] sm:$0xff]
          %v2429 = vld [vmem:[%s2425 + $0x18] sm:$0xff]
          %2430 = vset.pattern.permute.xlu0 0
          %2431 = vperm.xlu0 %2430, %v2426
          %v2432 = vpop.permute.xlu0 %2431
          %2433 = vset.pattern.permute.xlu0 0
          %2434 = vperm.xlu0 %2433, %v2427
          %v2435 = vpop.permute.xlu0 %2434
          %2436 = vset.pattern.permute.xlu0 0
          %2437 = vperm.xlu0 %2436, %v2428
          %v2438 = vpop.permute.xlu0 %2437
          %2439 = vset.pattern.permute.xlu0 0
          %2440 = vperm.xlu0 %2439, %v2429
          %v2441 = vpop.permute.xlu0 %2440
          %vm2442 = vcmp.eq.s32.totalorder %v2432, %v243
          %vm2443 = vcmp.eq.s32.totalorder %v2432, %v244
          %vm2444 = vcmp.eq.s32.totalorder %v2432, %v245
          %vm2445 = vcmp.eq.s32.totalorder %v2432, %v246
          %vm2446 = vcmp.eq.s32.totalorder %v2432, %v247
          %vm2447 = vcmp.eq.s32.totalorder %v2432, %v248
          %vm2448 = vcmp.eq.s32.totalorder %v2432, %v249
          %vm2449 = vcmp.eq.s32.totalorder %v2432, %v250
          %vm2450 = vcmp.eq.s32.totalorder %v2435, %v243
          %vm2451 = vcmp.eq.s32.totalorder %v2435, %v244
          %vm2452 = vcmp.eq.s32.totalorder %v2435, %v245
          %vm2453 = vcmp.eq.s32.totalorder %v2435, %v246
          %vm2454 = vcmp.eq.s32.totalorder %v2435, %v247
          %vm2455 = vcmp.eq.s32.totalorder %v2435, %v248
          %vm2456 = vcmp.eq.s32.totalorder %v2435, %v249
          %vm2457 = vcmp.eq.s32.totalorder %v2435, %v250
          %vm2458 = vcmp.eq.s32.totalorder %v2438, %v243
          %vm2459 = vcmp.eq.s32.totalorder %v2438, %v244
          %vm2460 = vcmp.eq.s32.totalorder %v2438, %v245
          %vm2461 = vcmp.eq.s32.totalorder %v2438, %v246
          %vm2462 = vcmp.eq.s32.totalorder %v2438, %v247
          %vm2463 = vcmp.eq.s32.totalorder %v2438, %v248
          %vm2464 = vcmp.eq.s32.totalorder %v2438, %v249
          %vm2465 = vcmp.eq.s32.totalorder %v2438, %v250
          %vm2466 = vcmp.eq.s32.totalorder %v2441, %v243
          %vm2467 = vcmp.eq.s32.totalorder %v2441, %v244
          %vm2468 = vcmp.eq.s32.totalorder %v2441, %v245
          %vm2469 = vcmp.eq.s32.totalorder %v2441, %v246
          %vm2470 = vcmp.eq.s32.totalorder %v2441, %v247
          %vm2471 = vcmp.eq.s32.totalorder %v2441, %v248
          %vm2472 = vcmp.eq.s32.totalorder %v2441, %v249
          %vm2473 = vcmp.eq.s32.totalorder %v2441, %v250
          %v2474 = vsel %vm2442, 1, 0
          %v2475 = vsel %vm2443, 1, 0
          %v2476 = vsel %vm2444, 1, 0
          %v2477 = vsel %vm2445, 1, 0
          %v2478 = vsel %vm2446, 1, 0
          %v2479 = vsel %vm2447, 1, 0
          %v2480 = vsel %vm2448, 1, 0
          %v2481 = vsel %vm2449, 1, 0
          %v2482 = vsel %vm2450, 1, 0
          %v2483 = vsel %vm2451, 1, 0
          %v2484 = vsel %vm2452, 1, 0
          %v2485 = vsel %vm2453, 1, 0
          %v2486 = vsel %vm2454, 1, 0
          %v2487 = vsel %vm2455, 1, 0
          %v2488 = vsel %vm2456, 1, 0
          %v2489 = vsel %vm2457, 1, 0
          %v2490 = vsel %vm2458, 1, 0
          %v2491 = vsel %vm2459, 1, 0
          %v2492 = vsel %vm2460, 1, 0
          %v2493 = vsel %vm2461, 1, 0
          %v2494 = vsel %vm2462, 1, 0
          %v2495 = vsel %vm2463, 1, 0
          %v2496 = vsel %vm2464, 1, 0
          %v2497 = vsel %vm2465, 1, 0
          %v2498 = vsel %vm2466, 1, 0
          %v2499 = vsel %vm2467, 1, 0
          %v2500 = vsel %vm2468, 1, 0
          %v2501 = vsel %vm2469, 1, 0
          %v2502 = vsel %vm2470, 1, 0
          %v2503 = vsel %vm2471, 1, 0
          %v2504 = vsel %vm2472, 1, 0
          %v2505 = vsel %vm2473, 1, 0
          %v2506 = vcvt.s32.f32 %v2474
          %v2507 = vcvt.s32.f32 %v2475
          %v2508 = vcvt.s32.f32 %v2476
          %v2509 = vcvt.s32.f32 %v2477
          %v2510 = vcvt.s32.f32 %v2478
          %v2511 = vcvt.s32.f32 %v2479
          %v2512 = vcvt.s32.f32 %v2480
          %v2513 = vcvt.s32.f32 %v2481
          %v2514 = vcvt.s32.f32 %v2482
          %v2515 = vcvt.s32.f32 %v2483
          %v2516 = vcvt.s32.f32 %v2484
          %v2517 = vcvt.s32.f32 %v2485
          %v2518 = vcvt.s32.f32 %v2486
          %v2519 = vcvt.s32.f32 %v2487
          %v2520 = vcvt.s32.f32 %v2488
          %v2521 = vcvt.s32.f32 %v2489
          %v2522 = vcvt.s32.f32 %v2490
          %v2523 = vcvt.s32.f32 %v2491
          %v2524 = vcvt.s32.f32 %v2492
          %v2525 = vcvt.s32.f32 %v2493
          %v2526 = vcvt.s32.f32 %v2494
          %v2527 = vcvt.s32.f32 %v2495
          %v2528 = vcvt.s32.f32 %v2496
          %v2529 = vcvt.s32.f32 %v2497
          %v2530 = vcvt.s32.f32 %v2498
          %v2531 = vcvt.s32.f32 %v2499
          %v2532 = vcvt.s32.f32 %v2500
          %v2533 = vcvt.s32.f32 %v2501
          %v2534 = vcvt.s32.f32 %v2502
          %v2535 = vcvt.s32.f32 %v2503
          %v2536 = vcvt.s32.f32 %v2504
          %v2537 = vcvt.s32.f32 %v2505
          %v2538 = vadd.f32 %v2393, %v2506
          %v2539 = vadd.f32 %v2394, %v2507
          %v2540 = vadd.f32 %v2395, %v2508
          %v2541 = vadd.f32 %v2396, %v2509
          %v2542 = vadd.f32 %v2397, %v2510
          %v2543 = vadd.f32 %v2398, %v2511
          %v2544 = vadd.f32 %v2399, %v2512
          %v2545 = vadd.f32 %v2400, %v2513
          %v2546 = vadd.f32 %v2401, %v2514
          %v2547 = vadd.f32 %v2402, %v2515
          %v2548 = vadd.f32 %v2403, %v2516
          %v2549 = vadd.f32 %v2404, %v2517
          %v2550 = vadd.f32 %v2405, %v2518
          %v2551 = vadd.f32 %v2406, %v2519
          %v2552 = vadd.f32 %v2407, %v2520
          %v2553 = vadd.f32 %v2408, %v2521
          %v2554 = vadd.f32 %v2409, %v2522
          %v2555 = vadd.f32 %v2410, %v2523
          %v2556 = vadd.f32 %v2411, %v2524
          %v2557 = vadd.f32 %v2412, %v2525
          %v2558 = vadd.f32 %v2413, %v2526
          %v2559 = vadd.f32 %v2414, %v2527
          %v2560 = vadd.f32 %v2415, %v2528
          %v2561 = vadd.f32 %v2416, %v2529
          %v2562 = vadd.f32 %v2417, %v2530
          %v2563 = vadd.f32 %v2418, %v2531
          %v2564 = vadd.f32 %v2419, %v2532
          %v2565 = vadd.f32 %v2420, %v2533
          %v2566 = vadd.f32 %v2421, %v2534
          %v2567 = vadd.f32 %v2422, %v2535
          %v2568 = vadd.f32 %v2423, %v2536
          %v2569 = vadd.f32 %v2424, %v2537
          %v2570 = vpack.c.bf16 %v2546, %v2538
          %v2571 = vpack.c.bf16 %v2547, %v2539
          %v2572 = vpack.c.bf16 %v2548, %v2540
          %v2573 = vpack.c.bf16 %v2549, %v2541
          %v2574 = vpack.c.bf16 %v2550, %v2542
          %v2575 = vpack.c.bf16 %v2551, %v2543
          %v2576 = vpack.c.bf16 %v2552, %v2544
          %v2577 = vpack.c.bf16 %v2553, %v2545
          %v2578 = vpack.c.bf16 %v2562, %v2554
          %v2579 = vpack.c.bf16 %v2563, %v2555
          %v2580 = vpack.c.bf16 %v2564, %v2556
          %v2581 = vpack.c.bf16 %v2565, %v2557
          %v2582 = vpack.c.bf16 %v2566, %v2558
          %v2583 = vpack.c.bf16 %v2567, %v2559
          %v2584 = vpack.c.bf16 %v2568, %v2560
          %v2585 = vpack.c.bf16 %v2569, %v2561
          %v2586 = vld [vmem:[%s1] sm:$0xf]
          %v2587 = vld [vmem:[%s1 + $0x4] sm:$0xf]
          %v2588 = vld [vmem:[%s1 + $0x8] sm:$0xf]
          %v2589 = vld [vmem:[%s1 + $0xc] sm:$0xf]
          %v2590 = vld [vmem:[%s1 + $0x10] sm:$0xf]
          %v2591 = vld [vmem:[%s1 + $0x14] sm:$0xf]
          %v2592 = vld [vmem:[%s1 + $0x18] sm:$0xf]
          %v2593 = vld [vmem:[%s1 + $0x1c] sm:$0xf]
          %v2594 = vld [vmem:[%s1 + $0x20] sm:$0xf]
          %v2595 = vld [vmem:[%s1 + $0x24] sm:$0xf]
          %v2596 = vld [vmem:[%s1 + $0x28] sm:$0xf]
          %v2597 = vld [vmem:[%s1 + $0x2c] sm:$0xf]
          %v2598 = vld [vmem:[%s1 + $0x30] sm:$0xf]
          %v2599 = vld [vmem:[%s1 + $0x34] sm:$0xf]
          %v2600 = vld [vmem:[%s1 + $0x38] sm:$0xf]
          %v2601 = vld [vmem:[%s1 + $0x3c] sm:$0xf]
          %v2602 = vld [vmem:[%s1 + $0x40] sm:$0xf]
          %v2603 = vld [vmem:[%s1 + $0x44] sm:$0xf]
          %v2604 = vld [vmem:[%s1 + $0x48] sm:$0xf]
          %v2605 = vld [vmem:[%s1 + $0x4c] sm:$0xf]
          %v2606 = vld [vmem:[%s1 + $0x50] sm:$0xf]
          %v2607 = vld [vmem:[%s1 + $0x54] sm:$0xf]
          %v2608 = vld [vmem:[%s1 + $0x58] sm:$0xf]
          %v2609 = vld [vmem:[%s1 + $0x5c] sm:$0xf]
          %v2610 = vld [vmem:[%s1 + $0x60] sm:$0xf]
          %v2611 = vld [vmem:[%s1 + $0x64] sm:$0xf]
          %v2612 = vld [vmem:[%s1 + $0x68] sm:$0xf]
          %v2613 = vld [vmem:[%s1 + $0x6c] sm:$0xf]
          %v2614 = vld [vmem:[%s1 + $0x70] sm:$0xf]
          %v2615 = vld [vmem:[%s1 + $0x74] sm:$0xf]
          %v2616 = vld [vmem:[%s1 + $0x78] sm:$0xf]
          %v2617 = vld [vmem:[%s1 + $0x7c] sm:$0xf]
          %v2618 = vld [vmem:[%s1 + $0x80] sm:$0xf]
          %v2619 = vld [vmem:[%s1 + $0x84] sm:$0xf]
          %v2620 = vld [vmem:[%s1 + $0x88] sm:$0xf]
          %v2621 = vld [vmem:[%s1 + $0x8c] sm:$0xf]
          %v2622 = vld [vmem:[%s1 + $0x90] sm:$0xf]
          %v2623 = vld [vmem:[%s1 + $0x94] sm:$0xf]
          %v2624 = vld [vmem:[%s1 + $0x98] sm:$0xf]
          %v2625 = vld [vmem:[%s1 + $0x9c] sm:$0xf]
          %v2626 = vld [vmem:[%s1 + $0xa0] sm:$0xf]
          %v2627 = vld [vmem:[%s1 + $0xa4] sm:$0xf]
          %v2628 = vld [vmem:[%s1 + $0xa8] sm:$0xf]
          %v2629 = vld [vmem:[%s1 + $0xac] sm:$0xf]
          %v2630 = vld [vmem:[%s1 + $0xb0] sm:$0xf]
          %v2631 = vld [vmem:[%s1 + $0xb4] sm:$0xf]
          %v2632 = vld [vmem:[%s1 + $0xb8] sm:$0xf]
          %v2633 = vld [vmem:[%s1 + $0xbc] sm:$0xf]
          %v2634 = vld [vmem:[%s1 + $0xc0] sm:$0xf]
          %v2635 = vld [vmem:[%s1 + $0xc4] sm:$0xf]
          %v2636 = vld [vmem:[%s1 + $0xc8] sm:$0xf]
          %v2637 = vld [vmem:[%s1 + $0xcc] sm:$0xf]
          %v2638 = vld [vmem:[%s1 + $0xd0] sm:$0xf]
          %v2639 = vld [vmem:[%s1 + $0xd4] sm:$0xf]
          %v2640 = vld [vmem:[%s1 + $0xd8] sm:$0xf]
          %v2641 = vld [vmem:[%s1 + $0xdc] sm:$0xf]
          %v2642 = vld [vmem:[%s1 + $0xe0] sm:$0xf]
          %v2643 = vld [vmem:[%s1 + $0xe4] sm:$0xf]
          %v2644 = vld [vmem:[%s1 + $0xe8] sm:$0xf]
          %v2645 = vld [vmem:[%s1 + $0xec] sm:$0xf]
          %v2646 = vld [vmem:[%s1 + $0xf0] sm:$0xf]
          %v2647 = vld [vmem:[%s1 + $0xf4] sm:$0xf]
          %v2648 = vld [vmem:[%s1 + $0xf8] sm:$0xf]
          %v2649 = vld [vmem:[%s1 + $0xfc] sm:$0xf]
          %v2650 = vld [vmem:[%s1 + $0x100] sm:$0xf]
          %v2651 = vld [vmem:[%s1 + $0x104] sm:$0xf]
          %v2652 = vld [vmem:[%s1 + $0x108] sm:$0xf]
          %v2653 = vld [vmem:[%s1 + $0x10c] sm:$0xf]
          %v2654 = vld [vmem:[%s1 + $0x110] sm:$0xf]
          %v2655 = vld [vmem:[%s1 + $0x114] sm:$0xf]
          %v2656 = vld [vmem:[%s1 + $0x118] sm:$0xf]
          %v2657 = vld [vmem:[%s1 + $0x11c] sm:$0xf]
          %v2658 = vld [vmem:[%s1 + $0x120] sm:$0xf]
          %v2659 = vld [vmem:[%s1 + $0x124] sm:$0xf]
          %v2660 = vld [vmem:[%s1 + $0x128] sm:$0xf]
          %v2661 = vld [vmem:[%s1 + $0x12c] sm:$0xf]
          %v2662 = vld [vmem:[%s1 + $0x130] sm:$0xf]
          %v2663 = vld [vmem:[%s1 + $0x134] sm:$0xf]
          %v2664 = vld [vmem:[%s1 + $0x138] sm:$0xf]
          %v2665 = vld [vmem:[%s1 + $0x13c] sm:$0xf]
          %v2666 = vld [vmem:[%s1 + $0x140] sm:$0xf]
          %v2667 = vld [vmem:[%s1 + $0x144] sm:$0xf]
          %v2668 = vld [vmem:[%s1 + $0x148] sm:$0xf]
          %v2669 = vld [vmem:[%s1 + $0x14c] sm:$0xf]
          %v2670 = vld [vmem:[%s1 + $0x150] sm:$0xf]
          %v2671 = vld [vmem:[%s1 + $0x154] sm:$0xf]
          %v2672 = vld [vmem:[%s1 + $0x158] sm:$0xf]
          %v2673 = vld [vmem:[%s1 + $0x15c] sm:$0xf]
          %v2674 = vld [vmem:[%s1 + $0x160] sm:$0xf]
          %v2675 = vld [vmem:[%s1 + $0x164] sm:$0xf]
          %v2676 = vld [vmem:[%s1 + $0x168] sm:$0xf]
          %v2677 = vld [vmem:[%s1 + $0x16c] sm:$0xf]
          %v2678 = vld [vmem:[%s1 + $0x170] sm:$0xf]
          %v2679 = vld [vmem:[%s1 + $0x174] sm:$0xf]
          %v2680 = vld [vmem:[%s1 + $0x178] sm:$0xf]
          %v2681 = vld [vmem:[%s1 + $0x17c] sm:$0xf]
          %v2682 = vld [vmem:[%s1 + $0x180] sm:$0xf]
          %v2683 = vld [vmem:[%s1 + $0x184] sm:$0xf]
          %v2684 = vld [vmem:[%s1 + $0x188] sm:$0xf]
          %v2685 = vld [vmem:[%s1 + $0x18c] sm:$0xf]
          %v2686 = vld [vmem:[%s1 + $0x190] sm:$0xf]
          %v2687 = vld [vmem:[%s1 + $0x194] sm:$0xf]
          %v2688 = vld [vmem:[%s1 + $0x198] sm:$0xf]
          %v2689 = vld [vmem:[%s1 + $0x19c] sm:$0xf]
          %v2690 = vld [vmem:[%s1 + $0x1a0] sm:$0xf]
          %v2691 = vld [vmem:[%s1 + $0x1a4] sm:$0xf]
          %v2692 = vld [vmem:[%s1 + $0x1a8] sm:$0xf]
          %v2693 = vld [vmem:[%s1 + $0x1ac] sm:$0xf]
          %v2694 = vld [vmem:[%s1 + $0x1b0] sm:$0xf]
          %v2695 = vld [vmem:[%s1 + $0x1b4] sm:$0xf]
          %v2696 = vld [vmem:[%s1 + $0x1b8] sm:$0xf]
          %v2697 = vld [vmem:[%s1 + $0x1bc] sm:$0xf]
          %v2698 = vld [vmem:[%s1 + $0x1c0] sm:$0xf]
          %v2699 = vld [vmem:[%s1 + $0x1c4] sm:$0xf]
          %v2700 = vld [vmem:[%s1 + $0x1c8] sm:$0xf]
          %v2701 = vld [vmem:[%s1 + $0x1cc] sm:$0xf]
          %v2702 = vld [vmem:[%s1 + $0x1d0] sm:$0xf]
          %v2703 = vld [vmem:[%s1 + $0x1d4] sm:$0xf]
          %v2704 = vld [vmem:[%s1 + $0x1d8] sm:$0xf]
          %v2705 = vld [vmem:[%s1 + $0x1dc] sm:$0xf]
          %v2706 = vld [vmem:[%s1 + $0x1e0] sm:$0xf]
          %v2707 = vld [vmem:[%s1 + $0x1e4] sm:$0xf]
          %v2708 = vld [vmem:[%s1 + $0x1e8] sm:$0xf]
          %v2709 = vld [vmem:[%s1 + $0x1ec] sm:$0xf]
          %v2710 = vld [vmem:[%s1 + $0x1f0] sm:$0xf]
          %v2711 = vld [vmem:[%s1 + $0x1f4] sm:$0xf]
          %v2712 = vld [vmem:[%s1 + $0x1f8] sm:$0xf]
          %v2713 = vld [vmem:[%s1 + $0x1fc] sm:$0xf]
          %v2842 = vunpack.c.l.b16 %v2586
          %v2843 = vunpack.c.l.b16 %v2587
          %v2844 = vunpack.c.l.b16 %v2588
          %v2845 = vunpack.c.l.b16 %v2589
          %v2846 = vunpack.c.l.b16 %v2590
          %v2847 = vunpack.c.l.b16 %v2591
          %v2848 = vunpack.c.l.b16 %v2592
          %v2849 = vunpack.c.l.b16 %v2593
          %v2850 = vunpack.c.l.b16 %v2594
          %v2851 = vunpack.c.l.b16 %v2595
          %v2852 = vunpack.c.l.b16 %v2596
          %v2853 = vunpack.c.l.b16 %v2597
          %v2854 = vunpack.c.l.b16 %v2598
          %v2855 = vunpack.c.l.b16 %v2599
          %v2856 = vunpack.c.l.b16 %v2600
          %v2857 = vunpack.c.l.b16 %v2601
          %v2858 = vunpack.c.l.b16 %v2602
          %v2859 = vunpack.c.l.b16 %v2603
          %v2860 = vunpack.c.l.b16 %v2604
          %v2861 = vunpack.c.l.b16 %v2605
          %v2862 = vunpack.c.l.b16 %v2606
          %v2863 = vunpack.c.l.b16 %v2607
          %v2864 = vunpack.c.l.b16 %v2608
          %v2865 = vunpack.c.l.b16 %v2609
          %v2866 = vunpack.c.l.b16 %v2610
          %v2867 = vunpack.c.l.b16 %v2611
          %v2868 = vunpack.c.l.b16 %v2612
          %v2869 = vunpack.c.l.b16 %v2613
          %v2870 = vunpack.c.l.b16 %v2614
          %v2871 = vunpack.c.l.b16 %v2615
          %v2872 = vunpack.c.l.b16 %v2616
          %v2873 = vunpack.c.l.b16 %v2617
          %v2874 = vunpack.c.l.b16 %v2618
          %v2875 = vunpack.c.l.b16 %v2619
          %v2876 = vunpack.c.l.b16 %v2620
          %v2877 = vunpack.c.l.b16 %v2621
          %v2878 = vunpack.c.l.b16 %v2622
          %v2879 = vunpack.c.l.b16 %v2623
          %v2880 = vunpack.c.l.b16 %v2624
          %v2881 = vunpack.c.l.b16 %v2625
          %v2882 = vunpack.c.l.b16 %v2626
          %v2883 = vunpack.c.l.b16 %v2627
          %v2884 = vunpack.c.l.b16 %v2628
          %v2885 = vunpack.c.l.b16 %v2629
          %v2886 = vunpack.c.l.b16 %v2630
          %v2887 = vunpack.c.l.b16 %v2631
          %v2888 = vunpack.c.l.b16 %v2632
          %v2889 = vunpack.c.l.b16 %v2633
          %v2890 = vunpack.c.l.b16 %v2634
          %v2891 = vunpack.c.l.b16 %v2635
          %v2892 = vunpack.c.l.b16 %v2636
          %v2893 = vunpack.c.l.b16 %v2637
          %v2894 = vunpack.c.l.b16 %v2638
          %v2895 = vunpack.c.l.b16 %v2639
          %v2896 = vunpack.c.l.b16 %v2640
          %v2897 = vunpack.c.l.b16 %v2641
          %v2898 = vunpack.c.l.b16 %v2642
          %v2899 = vunpack.c.l.b16 %v2643
          %v2900 = vunpack.c.l.b16 %v2644
          %v2901 = vunpack.c.l.b16 %v2645
          %v2902 = vunpack.c.l.b16 %v2646
          %v2903 = vunpack.c.l.b16 %v2647
          %v2904 = vunpack.c.l.b16 %v2648
          %v2905 = vunpack.c.l.b16 %v2649
          %v2906 = vunpack.c.l.b16 %v2650
          %v2907 = vunpack.c.l.b16 %v2651
          %v2908 = vunpack.c.l.b16 %v2652
          %v2909 = vunpack.c.l.b16 %v2653
          %v2910 = vunpack.c.l.b16 %v2654
          %v2911 = vunpack.c.l.b16 %v2655
          %v2912 = vunpack.c.l.b16 %v2656
          %v2913 = vunpack.c.l.b16 %v2657
          %v2914 = vunpack.c.l.b16 %v2658
          %v2915 = vunpack.c.l.b16 %v2659
          %v2916 = vunpack.c.l.b16 %v2660
          %v2917 = vunpack.c.l.b16 %v2661
          %v2918 = vunpack.c.l.b16 %v2662
          %v2919 = vunpack.c.l.b16 %v2663
          %v2920 = vunpack.c.l.b16 %v2664
          %v2921 = vunpack.c.l.b16 %v2665
          %v2922 = vunpack.c.l.b16 %v2666
          %v2923 = vunpack.c.l.b16 %v2667
          %v2924 = vunpack.c.l.b16 %v2668
          %v2925 = vunpack.c.l.b16 %v2669
          %v2926 = vunpack.c.l.b16 %v2670
          %v2927 = vunpack.c.l.b16 %v2671
          %v2928 = vunpack.c.l.b16 %v2672
          %v2929 = vunpack.c.l.b16 %v2673
          %v2930 = vunpack.c.l.b16 %v2674
          %v2931 = vunpack.c.l.b16 %v2675
          %v2932 = vunpack.c.l.b16 %v2676
          %v2933 = vunpack.c.l.b16 %v2677
          %v2934 = vunpack.c.l.b16 %v2678
          %v2935 = vunpack.c.l.b16 %v2679
          %v2936 = vunpack.c.l.b16 %v2680
          %v2937 = vunpack.c.l.b16 %v2681
          %v2938 = vunpack.c.l.b16 %v2682
          %v2939 = vunpack.c.l.b16 %v2683
          %v2940 = vunpack.c.l.b16 %v2684
          %v2941 = vunpack.c.l.b16 %v2685
          %v2942 = vunpack.c.l.b16 %v2686
          %v2943 = vunpack.c.l.b16 %v2687
          %v2944 = vunpack.c.l.b16 %v2688
          %v2945 = vunpack.c.l.b16 %v2689
          %v2946 = vunpack.c.l.b16 %v2690
          %v2947 = vunpack.c.l.b16 %v2691
          %v2948 = vunpack.c.l.b16 %v2692
          %v2949 = vunpack.c.l.b16 %v2693
          %v2950 = vunpack.c.l.b16 %v2694
          %v2951 = vunpack.c.l.b16 %v2695
          %v2952 = vunpack.c.l.b16 %v2696
          %v2953 = vunpack.c.l.b16 %v2697
          %v2954 = vunpack.c.l.b16 %v2698
          %v2955 = vunpack.c.l.b16 %v2699
          %v2956 = vunpack.c.l.b16 %v2700
          %v2957 = vunpack.c.l.b16 %v2701
          %v2958 = vunpack.c.l.b16 %v2702
          %v2959 = vunpack.c.l.b16 %v2703
          %v2960 = vunpack.c.l.b16 %v2704
          %v2961 = vunpack.c.l.b16 %v2705
          %v2962 = vunpack.c.l.b16 %v2706
          %v2963 = vunpack.c.l.b16 %v2707
          %v2964 = vunpack.c.l.b16 %v2708
          %v2965 = vunpack.c.l.b16 %v2709
          %v2966 = vunpack.c.l.b16 %v2710
          %v2967 = vunpack.c.l.b16 %v2711
          %v2968 = vunpack.c.l.b16 %v2712
          %v2969 = vunpack.c.l.b16 %v2713
          %v2970 = vpack.c.b16 %v2843, %v2842
          %v2971 = vpack.c.b16 %v2845, %v2844
          %v2972 = vpack.c.b16 %v2847, %v2846
          %v2973 = vpack.c.b16 %v2849, %v2848
          %v2974 = vpack.c.b16 %v2851, %v2850
          %v2975 = vpack.c.b16 %v2853, %v2852
          %v2976 = vpack.c.b16 %v2855, %v2854
          %v2977 = vpack.c.b16 %v2857, %v2856
          %v2978 = vpack.c.b16 %v2859, %v2858
          %v2979 = vpack.c.b16 %v2861, %v2860
          %v2980 = vpack.c.b16 %v2863, %v2862
          %v2981 = vpack.c.b16 %v2865, %v2864
          %v2982 = vpack.c.b16 %v2867, %v2866
          %v2983 = vpack.c.b16 %v2869, %v2868
          %v2984 = vpack.c.b16 %v2871, %v2870
          %v2985 = vpack.c.b16 %v2873, %v2872
          %v2986 = vpack.c.b16 %v2875, %v2874
          %v2987 = vpack.c.b16 %v2877, %v2876
          %v2988 = vpack.c.b16 %v2879, %v2878
          %v2989 = vpack.c.b16 %v2881, %v2880
          %v2990 = vpack.c.b16 %v2883, %v2882
          %v2991 = vpack.c.b16 %v2885, %v2884
          %v2992 = vpack.c.b16 %v2887, %v2886
          %v2993 = vpack.c.b16 %v2889, %v2888
          %v2994 = vpack.c.b16 %v2891, %v2890
          %v2995 = vpack.c.b16 %v2893, %v2892
          %v2996 = vpack.c.b16 %v2895, %v2894
          %v2997 = vpack.c.b16 %v2897, %v2896
          %v2998 = vpack.c.b16 %v2899, %v2898
          %v2999 = vpack.c.b16 %v2901, %v2900
          %v3000 = vpack.c.b16 %v2903, %v2902
          %v3001 = vpack.c.b16 %v2905, %v2904
          %v3002 = vpack.c.b16 %v2907, %v2906
          %v3003 = vpack.c.b16 %v2909, %v2908
          %v3004 = vpack.c.b16 %v2911, %v2910
          %v3005 = vpack.c.b16 %v2913, %v2912
          %v3006 = vpack.c.b16 %v2915, %v2914
          %v3007 = vpack.c.b16 %v2917, %v2916
          %v3008 = vpack.c.b16 %v2919, %v2918
          %v3009 = vpack.c.b16 %v2921, %v2920
          %v3010 = vpack.c.b16 %v2923, %v2922
          %v3011 = vpack.c.b16 %v2925, %v2924
          %v3012 = vpack.c.b16 %v2927, %v2926
          %v3013 = vpack.c.b16 %v2929, %v2928
          %v3014 = vpack.c.b16 %v2931, %v2930
          %v3015 = vpack.c.b16 %v2933, %v2932
          %v3016 = vpack.c.b16 %v2935, %v2934
          %v3017 = vpack.c.b16 %v2937, %v2936
          %v3018 = vpack.c.b16 %v2939, %v2938
          %v3019 = vpack.c.b16 %v2941, %v2940
          %v3020 = vpack.c.b16 %v2943, %v2942
          %v3021 = vpack.c.b16 %v2945, %v2944
          %v3022 = vpack.c.b16 %v2947, %v2946
          %v3023 = vpack.c.b16 %v2949, %v2948
          %v3024 = vpack.c.b16 %v2951, %v2950
          %v3025 = vpack.c.b16 %v2953, %v2952
          %v3026 = vpack.c.b16 %v2955, %v2954
          %v3027 = vpack.c.b16 %v2957, %v2956
          %v3028 = vpack.c.b16 %v2959, %v2958
          %v3029 = vpack.c.b16 %v2961, %v2960
          %v3030 = vpack.c.b16 %v2963, %v2962
          %v3031 = vpack.c.b16 %v2965, %v2964
          %v3032 = vpack.c.b16 %v2967, %v2966
          %v3033 = vpack.c.b16 %v2969, %v2968
          %3098 = vmatprep.subr.bf16.mxu0 0
          %3099 = vmatpush1.bf16.msra.mxu0 %v2970
          %3100 = vmatprep.subr.bf16.mxu0 0
          %3101 = vmatpush1.bf16.msra.mxu0 %v2971
          %3102 = vmatprep.subr.bf16.mxu0 0
          %3103 = vmatpush1.bf16.msra.mxu0 %v2972
          %3104 = vmatprep.subr.bf16.mxu0 0
          %3105 = vmatpush1.bf16.msra.mxu0 %v2973
          %3106 = vmatprep.subr.bf16.mxu0 0
          %3107 = vmatpush1.bf16.msra.mxu0 %v2974
          %3108 = vmatprep.subr.bf16.mxu0 0
          %3109 = vmatpush1.bf16.msra.mxu0 %v2975
          %3110 = vmatprep.subr.bf16.mxu0 0
          %3111 = vmatpush1.bf16.msra.mxu0 %v2976
          %3112 = vmatprep.subr.bf16.mxu0 0
          %3113 = vmatpush1.bf16.msra.mxu0 %v2977
          %3114 = vmatprep.subr.bf16.mxu0 0
          %3115 = vmatpush1.bf16.msra.mxu0 %v2978
          %3116 = vmatprep.subr.bf16.mxu0 0
          %3117 = vmatpush1.bf16.msra.mxu0 %v2979
          %3118 = vmatprep.subr.bf16.mxu0 0
          %3119 = vmatpush1.bf16.msra.mxu0 %v2980
          %3120 = vmatprep.subr.bf16.mxu0 0
          %3121 = vmatpush1.bf16.msra.mxu0 %v2981
          %3122 = vmatprep.subr.bf16.mxu0 0
          %3123 = vmatpush1.bf16.msra.mxu0 %v2982
          %3124 = vmatprep.subr.bf16.mxu0 0
          %3125 = vmatpush1.bf16.msra.mxu0 %v2983
          %3126 = vmatprep.subr.bf16.mxu0 0
          %3127 = vmatpush1.bf16.msra.mxu0 %v2984
          %3128 = vmatprep.subr.bf16.mxu0 0
          %3129 = vmatpush1.bf16.msra.mxu0 %v2985
          %3130 = vmatprep.mubr.bf16.mxu0 %v2571
          %3131 = vmatmul.mubr.bf16.gmra.mrb[0].mxu0 %v2570
          %v3132 = vpop.f32.mrb[0].mxu0
          %v3133 = vadd.f32 0.0, %v3132
          %v3134 = vpop.f32.mrb[0].mxu0
          %v3135 = vpop.f32.mrb[0].mxu0
          %v3136 = vadd.f32 0.0, %v3135
          %v3137 = vpop.f32.mrb[0].mxu0
          %3138 = vmatprep.mubr.bf16.mxu0 %v2579
          %3139 = vmatmul.mubr.bf16.gmra.mrb[0].mxu0 %v2578
          %v3140 = vpop.f32.mrb[0].mxu0
          %v3141 = vadd.f32 0.0, %v3140
          %v3142 = vpop.f32.mrb[0].mxu0
          %v3143 = vpop.f32.mrb[0].mxu0
          %v3144 = vadd.f32 0.0, %v3143
          %v3145 = vpop.f32.mrb[0].mxu0
          %3146 = vdwg.mxu0
          %3147 = vmatprep.subr.bf16.mxu0 0
          %3148 = vmatpush1.bf16.msra.mxu0 %v2986
          %3149 = vmatprep.subr.bf16.mxu0 0
          %3150 = vmatpush1.bf16.msra.mxu0 %v2987
          %3151 = vmatprep.subr.bf16.mxu0 0
          %3152 = vmatpush1.bf16.msra.mxu0 %v2988
          %3153 = vmatprep.subr.bf16.mxu0 0
          %3154 = vmatpush1.bf16.msra.mxu0 %v2989
          %3155 = vmatprep.subr.bf16.mxu0 0
          %3156 = vmatpush1.bf16.msra.mxu0 %v2990
          %3157 = vmatprep.subr.bf16.mxu0 0
          %3158 = vmatpush1.bf16.msra.mxu0 %v2991
          %3159 = vmatprep.subr.bf16.mxu0 0
          %3160 = vmatpush1.bf16.msra.mxu0 %v2992
          %3161 = vmatprep.subr.bf16.mxu0 0
          %3162 = vmatpush1.bf16.msra.mxu0 %v2993
          %3163 = vmatprep.subr.bf16.mxu0 0
          %3164 = vmatpush1.bf16.msra.mxu0 %v2994
          %3165 = vmatprep.subr.bf16.mxu0 0
          %3166 = vmatpush1.bf16.msra.mxu0 %v2995
          %3167 = vmatprep.subr.bf16.mxu0 0
          %3168 = vmatpush1.bf16.msra.mxu0 %v2996
          %3169 = vmatprep.subr.bf16.mxu0 0
          %3170 = vmatpush1.bf16.msra.mxu0 %v2997
          %3171 = vmatprep.subr.bf16.mxu0 0
          %3172 = vmatpush1.bf16.msra.mxu0 %v2998
          %3173 = vmatprep.subr.bf16.mxu0 0
          %3174 = vmatpush1.bf16.msra.mxu0 %v2999
          %3175 = vmatprep.subr.bf16.mxu0 0
          %3176 = vmatpush1.bf16.msra.mxu0 %v3000
          %3177 = vmatprep.subr.bf16.mxu0 0
          %3178 = vmatpush1.bf16.msra.mxu0 %v3001
          %3179 = vmatprep.mubr.bf16.mxu0 %v2573
          %3180 = vmatmul.mubr.bf16.gmra.mrb[0].mxu0 %v2572
          %v3181 = vpop.f32.mrb[0].mxu0
          %v3182 = vadd.f32 %v3133, %v3181
          %v3183 = vpop.f32.mrb[0].mxu0
          %v3184 = vpop.f32.mrb[0].mxu0
          %v3185 = vadd.f32 %v3136, %v3184
          %v3186 = vpop.f32.mrb[0].mxu0
          %3187 = vmatprep.mubr.bf16.mxu0 %v2581
          %3188 = vmatmul.mubr.bf16.gmra.mrb[0].mxu0 %v2580
          %v3189 = vpop.f32.mrb[0].mxu0
          %v3190 = vadd.f32 %v3141, %v3189
          %v3191 = vpop.f32.mrb[0].mxu0
          %v3192 = vpop.f32.mrb[0].mxu0
          %v3193 = vadd.f32 %v3144, %v3192
          %v3194 = vpop.f32.mrb[0].mxu0
          %3195 = vdwg.mxu0
          %3196 = vmatprep.subr.bf16.mxu0 0
          %3197 = vmatpush1.bf16.msra.mxu0 %v3002
          %3198 = vmatprep.subr.bf16.mxu0 0
          %3199 = vmatpush1.bf16.msra.mxu0 %v3003
          %3200 = vmatprep.subr.bf16.mxu0 0
          %3201 = vmatpush1.bf16.msra.mxu0 %v3004
          %3202 = vmatprep.subr.bf16.mxu0 0
          %3203 = vmatpush1.bf16.msra.mxu0 %v3005
          %3204 = vmatprep.subr.bf16.mxu0 0
          %3205 = vmatpush1.bf16.msra.mxu0 %v3006
          %3206 = vmatprep.subr.bf16.mxu0 0
          %3207 = vmatpush1.bf16.msra.mxu0 %v3007
          %3208 = vmatprep.subr.bf16.mxu0 0
          %3209 = vmatpush1.bf16.msra.mxu0 %v3008
          %3210 = vmatprep.subr.bf16.mxu0 0
          %3211 = vmatpush1.bf16.msra.mxu0 %v3009
          %3212 = vmatprep.subr.bf16.mxu0 0
          %3213 = vmatpush1.bf16.msra.mxu0 %v3010
          %3214 = vmatprep.subr.bf16.mxu0 0
          %3215 = vmatpush1.bf16.msra.mxu0 %v3011
          %3216 = vmatprep.subr.bf16.mxu0 0
          %3217 = vmatpush1.bf16.msra.mxu0 %v3012
          %3218 = vmatprep.subr.bf16.mxu0 0
          %3219 = vmatpush1.bf16.msra.mxu0 %v3013
          %3220 = vmatprep.subr.bf16.mxu0 0
          %3221 = vmatpush1.bf16.msra.mxu0 %v3014
          %3222 = vmatprep.subr.bf16.mxu0 0
          %3223 = vmatpush1.bf16.msra.mxu0 %v3015
          %3224 = vmatprep.subr.bf16.mxu0 0
          %3225 = vmatpush1.bf16.msra.mxu0 %v3016
          %3226 = vmatprep.subr.bf16.mxu0 0
          %3227 = vmatpush1.bf16.msra.mxu0 %v3017
          %3228 = vmatprep.mubr.bf16.mxu0 %v2575
          %3229 = vmatmul.mubr.bf16.gmra.mrb[0].mxu0 %v2574
          %v3230 = vpop.f32.mrb[0].mxu0
          %v3231 = vadd.f32 %v3182, %v3230
          %v3232 = vpop.f32.mrb[0].mxu0
          %v3233 = vpop.f32.mrb[0].mxu0
          %v3234 = vadd.f32 %v3185, %v3233
          %v3235 = vpop.f32.mrb[0].mxu0
          %3236 = vmatprep.mubr.bf16.mxu0 %v2583
          %3237 = vmatmul.mubr.bf16.gmra.mrb[0].mxu0 %v2582
          %v3238 = vpop.f32.mrb[0].mxu0
          %v3239 = vadd.f32 %v3190, %v3238
          %v3240 = vpop.f32.mrb[0].mxu0
          %v3241 = vpop.f32.mrb[0].mxu0
          %v3242 = vadd.f32 %v3193, %v3241
          %v3243 = vpop.f32.mrb[0].mxu0
          %3244 = vdwg.mxu0
          %3245 = vmatprep.subr.bf16.mxu0 0
          %3246 = vmatpush1.bf16.msra.mxu0 %v3018
          %3247 = vmatprep.subr.bf16.mxu0 0
          %3248 = vmatpush1.bf16.msra.mxu0 %v3019
          %3249 = vmatprep.subr.bf16.mxu0 0
          %3250 = vmatpush1.bf16.msra.mxu0 %v3020
          %3251 = vmatprep.subr.bf16.mxu0 0
          %3252 = vmatpush1.bf16.msra.mxu0 %v3021
          %3253 = vmatprep.subr.bf16.mxu0 0
          %3254 = vmatpush1.bf16.msra.mxu0 %v3022
          %3255 = vmatprep.subr.bf16.mxu0 0
          %3256 = vmatpush1.bf16.msra.mxu0 %v3023
          %3257 = vmatprep.subr.bf16.mxu0 0
          %3258 = vmatpush1.bf16.msra.mxu0 %v3024
          %3259 = vmatprep.subr.bf16.mxu0 0
          %3260 = vmatpush1.bf16.msra.mxu0 %v3025
          %3261 = vmatprep.subr.bf16.mxu0 0
          %3262 = vmatpush1.bf16.msra.mxu0 %v3026
          %3263 = vmatprep.subr.bf16.mxu0 0
          %3264 = vmatpush1.bf16.msra.mxu0 %v3027
          %3265 = vmatprep.subr.bf16.mxu0 0
          %3266 = vmatpush1.bf16.msra.mxu0 %v3028
          %3267 = vmatprep.subr.bf16.mxu0 0
          %3268 = vmatpush1.bf16.msra.mxu0 %v3029
          %3269 = vmatprep.subr.bf16.mxu0 0
          %3270 = vmatpush1.bf16.msra.mxu0 %v3030
          %3271 = vmatprep.subr.bf16.mxu0 0
          %3272 = vmatpush1.bf16.msra.mxu0 %v3031
          %3273 = vmatprep.subr.bf16.mxu0 0
          %3274 = vmatpush1.bf16.msra.mxu0 %v3032
          %3275 = vmatprep.subr.bf16.mxu0 0
          %3276 = vmatpush1.bf16.msra.mxu0 %v3033
          %3277 = vmatprep.mubr.bf16.mxu0 %v2577
          %3278 = vmatmul.mubr.bf16.gmra.mrb[0].mxu0 %v2576
          %v3279 = vpop.f32.mrb[0].mxu0
          %v3280 = vadd.f32 %v3231, %v3279
          %v3281 = vpop.f32.mrb[0].mxu0
          %v3282 = vpop.f32.mrb[0].mxu0
          %v3283 = vadd.f32 %v3234, %v3282
          %v3284 = vpop.f32.mrb[0].mxu0
          %3285 = vmatprep.mubr.bf16.mxu0 %v2585
          %3286 = vmatmul.mubr.bf16.gmra.mrb[0].mxu0 %v2584
          %v3287 = vpop.f32.mrb[0].mxu0
          %v3288 = vadd.f32 %v3239, %v3287
          %v3289 = vpop.f32.mrb[0].mxu0
          %v3290 = vpop.f32.mrb[0].mxu0
          %v3291 = vadd.f32 %v3242, %v3290
          %v3292 = vpop.f32.mrb[0].mxu0
          %3293 = vdwg.mxu0
          %v3294 = vpack.c.bf16 %v3283, %v3280
          %v3295 = vpack.c.bf16 %v3291, %v3288
          %3296 = vst [vmem:[#allocation2] sm:$0xff] %v3294
          %3297 = vst [vmem:[#allocation2 + $0x8] sm:$0xff] %v3295
        $region44: #{tpu_custom_call.1} parent=35 // pred_fallthru
          _
        %v3298 = vld [vmem:[#allocation2] sm:$0xff]
        %v3299 = vld [vmem:[#allocation2 + $0x8] sm:$0xff]
        %v3300 = vld [vmem:[%s201] sm:$0xff]
        %v3301 = vld [vmem:[%s201 + $0x8] sm:$0xff]
        %v3302 = vld [vmem:[%s201 + $0x10] sm:$0xff]
        %v3303 = vld [vmem:[%s201 + $0x18] sm:$0xff]
        %v3304 = vld [vmem:[%s201 + $0x20] sm:$0xff]
        %v3305 = vld [vmem:[%s201 + $0x28] sm:$0xff]
        %v3306 = vld [vmem:[%s201 + $0x30] sm:$0xff]
        %v3307 = vld [vmem:[%s201 + $0x38] sm:$0xff]
        %v3308 = vld [vmem:[%s201 + $0x40] sm:$0xff]
        %v3309 = vld [vmem:[%s201 + $0x48] sm:$0xff]
        %v3310 = vld [vmem:[%s201 + $0x50] sm:$0xff]
        %v3311 = vld [vmem:[%s201 + $0x58] sm:$0xff]
        %v3312 = vld [vmem:[%s201 + $0x60] sm:$0xff]
        %v3313 = vld [vmem:[%s201 + $0x68] sm:$0xff]
        %v3314 = vld [vmem:[%s201 + $0x70] sm:$0xff]
        %v3315 = vld [vmem:[%s201 + $0x78] sm:$0xff]
        %v3316 = vld [vmem:[%s234] sm:$0x3]
        %v3318 = vlaneseq
        %v3319 = vshrl.u32 %v3318, 7
        %v3320 = vsub.s32 0, %v3319
        %v3321 = vrot.slane %v3316, %v3320
        %v3322 = vlaneseq
        %v3323 = vshrl.u32 %v3322, 7
        %v3324 = vsub.s32 1, %v3323
        %v3325 = vrot.slane %v3316, %v3324
        %v3344 = vunpack.c.l.b16 %v3300
        %v3345 = vunpack.c.h.b16 %v3300
        %v3346 = vunpack.c.l.b16 %v3301
        %v3347 = vunpack.c.h.b16 %v3301
        %v3348 = vunpack.c.l.b16 %v3302
        %v3349 = vunpack.c.h.b16 %v3302
        %v3350 = vunpack.c.l.b16 %v3303
        %v3351 = vunpack.c.h.b16 %v3303
        %v3352 = vunpack.c.l.b16 %v3304
        %v3353 = vunpack.c.h.b16 %v3304
        %v3354 = vunpack.c.l.b16 %v3305
        %v3355 = vunpack.c.h.b16 %v3305
        %v3356 = vunpack.c.l.b16 %v3306
        %v3357 = vunpack.c.h.b16 %v3306
        %v3358 = vunpack.c.l.b16 %v3307
        %v3359 = vunpack.c.h.b16 %v3307
        %v3360 = vunpack.c.l.b16 %v3308
        %v3361 = vunpack.c.h.b16 %v3308
        %v3362 = vunpack.c.l.b16 %v3309
        %v3363 = vunpack.c.h.b16 %v3309
        %v3364 = vunpack.c.l.b16 %v3310
        %v3365 = vunpack.c.h.b16 %v3310
        %v3366 = vunpack.c.l.b16 %v3311
        %v3367 = vunpack.c.h.b16 %v3311
        %v3368 = vunpack.c.l.b16 %v3312
        %v3369 = vunpack.c.h.b16 %v3312
        %v3370 = vunpack.c.l.b16 %v3313
        %v3371 = vunpack.c.h.b16 %v3313
        %v3372 = vunpack.c.l.b16 %v3314
        %v3373 = vunpack.c.h.b16 %v3314
        %v3374 = vunpack.c.l.b16 %v3315
        %v3375 = vunpack.c.h.b16 %v3315
        %v3376 = vpack.c.b16 %v3346, %v3344
        %v3377 = vpack.c.b16 %v3347, %v3345
        %v3378 = vpack.c.b16 %v3350, %v3348
        %v3379 = vpack.c.b16 %v3351, %v3349
        %v3380 = vpack.c.b16 %v3354, %v3352
        %v3381 = vpack.c.b16 %v3355, %v3353
        %v3382 = vpack.c.b16 %v3358, %v3356
        %v3383 = vpack.c.b16 %v3359, %v3357
        %v3384 = vpack.c.b16 %v3362, %v3360
        %v3385 = vpack.c.b16 %v3363, %v3361
        %v3386 = vpack.c.b16 %v3366, %v3364
        %v3387 = vpack.c.b16 %v3367, %v3365
        %v3388 = vpack.c.b16 %v3370, %v3368
        %v3389 = vpack.c.b16 %v3371, %v3369
        %v3390 = vpack.c.b16 %v3374, %v3372
        %v3391 = vpack.c.b16 %v3375, %v3373
        %3408 = vmatprep.subr.bf16.mxu0 %v3377
        %3409 = vmatpush1.bf16.msra.mxu0 %v3376
        %3410 = vmatprep.subr.bf16.mxu0 %v3379
        %3411 = vmatpush1.bf16.msra.mxu0 %v3378
        %3412 = vmatprep.subr.bf16.mxu0 %v3381
        %3413 = vmatpush1.bf16.msra.mxu0 %v3380
        %3414 = vmatprep.subr.bf16.mxu0 %v3383
        %3415 = vmatpush1.bf16.msra.mxu0 %v3382
        %3416 = vmatprep.subr.bf16.mxu0 %v3385
        %3417 = vmatpush1.bf16.msra.mxu0 %v3384
        %3418 = vmatprep.subr.bf16.mxu0 %v3387
        %3419 = vmatpush1.bf16.msra.mxu0 %v3386
        %3420 = vmatprep.subr.bf16.mxu0 %v3389
        %3421 = vmatpush1.bf16.msra.mxu0 %v3388
        %3422 = vmatprep.subr.bf16.mxu0 %v3391
        %3423 = vmatpush1.bf16.msra.mxu0 %v3390
        %3424 = vmatprep.subr.bf16.mxu0 0
        %3425 = vmatpush1.bf16.msra.mxu0 0
        %3426 = vmatprep.subr.bf16.mxu0 0
        %3427 = vmatpush1.bf16.msra.mxu0 0
        %3428 = vmatprep.subr.bf16.mxu0 0
        %3429 = vmatpush1.bf16.msra.mxu0 0
        %3430 = vmatprep.subr.bf16.mxu0 0
        %3431 = vmatpush1.bf16.msra.mxu0 0
        %3432 = vmatprep.subr.bf16.mxu0 0
        %3433 = vmatpush1.bf16.msra.mxu0 0
        %3434 = vmatprep.subr.bf16.mxu0 0
        %3435 = vmatpush1.bf16.msra.mxu0 0
        %3436 = vmatprep.subr.bf16.mxu0 0
        %3437 = vmatpush1.bf16.msra.mxu0 0
        %3438 = vmatprep.subr.bf16.mxu0 0
        %3439 = vmatpush1.bf16.msra.mxu0 0
        %3440 = vmatprep.mubr.bf16.mxu0 0
        %3441 = vmatmul.mubr.bf16.gmra.mrb[0].mxu0 %v3298
        %v3442 = vpop.f32.mrb[0].mxu0
        %v3443 = vadd.f32 %v3321, %v3442
        %v3444 = vpop.f32.mrb[0].mxu0
        %v3445 = vadd.f32 %v3325, %v3444
        %v3446 = vpop.f32.mrb[0].mxu0
        %v3447 = vadd.f32 %v3321, %v3446
        %v3448 = vpop.f32.mrb[0].mxu0
        %v3449 = vadd.f32 %v3325, %v3448
        %3450 = vmatprep.mubr.bf16.mxu0 0
        %3451 = vmatmul.mubr.bf16.gmra.mrb[0].mxu0 %v3299
        %v3452 = vpop.f32.mrb[0].mxu0
        %v3453 = vadd.f32 %v3321, %v3452
        %v3454 = vpop.f32.mrb[0].mxu0
        %v3455 = vadd.f32 %v3325, %v3454
        %v3456 = vpop.f32.mrb[0].mxu0
        %v3457 = vadd.f32 %v3321, %v3456
        %v3458 = vpop.f32.mrb[0].mxu0
        %v3459 = vadd.f32 %v3325, %v3458
        %3460 = vdwg.mxu0
        %3461 = vst [vmem:[%s229] sm:$0xff] %v3443
        %3462 = vst [vmem:[%s229 + $0x8] sm:$0xff] %v3445
        %3463 = vst [vmem:[%s229 + $0x10] sm:$0xff] %v3447
        %3464 = vst [vmem:[%s229 + $0x18] sm:$0xff] %v3449
        %3465 = vst [vmem:[%s229 + $0x20] sm:$0xff] %v3453
        %3466 = vst [vmem:[%s229 + $0x28] sm:$0xff] %v3455
        %3467 = vst [vmem:[%s229 + $0x30] sm:$0xff] %v3457
        %3468 = vst [vmem:[%s229 + $0x38] sm:$0xff] %v3459
        %s3469 = sand.u32 %s123, 1
        %s3470 = scalar_lea.sflag [#allocation5], %s3469
        %s3471 = sand.u32 %s123, 1
        %s3472 = smul.addr %s3471, 64
        %s3473 = scalar_lea.vmem [#allocation6], %s3472
        // Predicated region
        $region45: #{tpu_custom_call.1} parent=35 // pred_check
          %p3474 = pneg %p133
        $region46: #{tpu_custom_call.1} parent=35 // pred_check_branch
          %3476 = sbr.rel (%p3474) target = $region48
        $region47: #{tpu_custom_call.1} parent=35 // pred_region
          %s3477 = smul.u32 2, %s21
          %s3479 = ssub.s32 1024, 1024
          %3480 = vsyncadd %s3470, %s3479
          %s3481 = smul.addr %s3477, 128
          %s3482 = scalar_lea.hbm %s4, %s3481
          %s3483 = sshll.u32 %s3473, 4
          %s3484 = int_to_ptr.vmem [resolvable:$true] %s3483
          %3489 = dma.vmem_to_hbm [thread:$0]  %s3484, 1024, %s3482, %s3470, 256, 1024, 16
        $region48: #{tpu_custom_call.1} parent=35 // pred_fallthru
          _
      $region36: #{tpu_custom_call.1} parent=5 // pred_fallthru
        _
      %p3490 = scmp.le.s32.totalorder 2, %s16
      // Predicated region
      $region49: #{tpu_custom_call.1} parent=5 // pred_check
        %p3491 = pneg %p3490
      $region50: #{tpu_custom_call.1} parent=5 // pred_check_branch
        %3493 = sbr.rel (%p3491) target = $region52
      $region51: #{tpu_custom_call.1} parent=5 // pred_region
        %s3494 = ssub.s32 %s16, 2
        // Predicated region
        $region53: #{tpu_custom_call.1} parent=51 // pred_check
          %p3495 = pneg %p139
        $region54: #{tpu_custom_call.1} parent=51 // pred_check_branch
          %3497 = sbr.rel (%p3495) target = $region56
        $region55: #{tpu_custom_call.1} parent=51 // pred_region
          %s3498 = sand.u32 %s124, 1
          %s3499 = scalar_lea.sflag [#allocation5], %s3498
          %s3500 = sand.u32 %s124, 1
          %s3501 = smul.addr %s3500, 64
          %s3502 = scalar_lea.vmem [#allocation6], %s3501
          %3503 = dma.done %s3499, 1024
        $region56: #{tpu_custom_call.1} parent=51 // pred_fallthru
          _
      $region52: #{tpu_custom_call.1} parent=5 // pred_fallthru
        _
    $region6: #{tpu_custom_call.1} parent=1 // loop_footer
      %s20 = sadd.s32 1, %s16
    $region7: #{tpu_custom_call.1} parent=1 // loop_footer_branch
      %15 = sbr.rel target = $region3
    $region8: #{tpu_custom_call.1} parent=1 // loop_exit
      _
    %3504 = vsyncpa [#allocation4], 1
    %s3505 = scalar_lea.sflag [#allocation4], 1
    %3506 = vsyncpa %s3505, 1
    %3507 = vsyncpa [#allocation5], 1
    %s3508 = scalar_lea.sflag [#allocation5], 1
    %3509 = vsyncpa %s3508, 1

</llo_original>
